<compile_context>
chip_gen: v7x
topology: tpu7x:2x2x1
jax: 0.10.0
libtpu: 0.0.40
codegen_flags: <defaults>
</compile_context>

<pallas_src>
import numpy as np

import jax
import jax.numpy as jnp
from jax import lax
from jax.experimental import pallas as pl
from jax.experimental.pallas import tpu as pltpu


# ---------------------------------------------------------------------------
# Fused kernel: whole network for one batch tile, three MXU matmuls.
# ---------------------------------------------------------------------------
def _net_kernel(x_ref, a1_ref, b1_ref, a2_ref, b2_ref, wf_ref, bf_ref,
                out_ref):
    bt = out_ref.shape[0]                       # images in this batch tile

    # ---- conv1 + bias + ReLU + 2x2 max-pool: one K=168 bf16 matmul --------
    # x_ref rows: ((parity p)*6 + pooled-row t)*bt + image b ; lanes: input
    # row 4t+2p+c (c=0..5), col w.  a1 columns: four 128-lane (u,r) blocks,
    # each holding pw*10 + co (lanes 120..127 zero-padded).
    acc1 = jnp.dot(x_ref[...], a1_ref[...],
                   preferred_element_type=jnp.float32)          # (12*bt, 512)
    y1 = jnp.maximum(acc1 + b1_ref[...], 0.0)
    p1 = jnp.maximum(jnp.maximum(y1[:, 0:128], y1[:, 128:256]),
                     jnp.maximum(y1[:, 256:384], y1[:, 384:512]))  # (12*bt,128)

    # ---- conv2 + bias + ReLU + 2x2 max-pool: one K=768 bf16 matmul --------
    # pooled-1 row 2*ph2 + c2 (term c2) lives in the (c2 % 2) parity half of
    # p1 at row offset (c2 // 2)*bt: contiguous, 8-aligned slices.
    even = p1[0:6 * bt, :]                      # pooled rows 0,2,...,10
    odd = p1[6 * bt:12 * bt, :]                 # pooled rows 1,3,...,11
    parts = []
    for c2 in range(6):
        src = even if c2 % 2 == 0 else odd
        off = (c2 // 2) * bt
        parts.append(src[off:off + 4 * bt, :])
    lhs2 = jnp.concatenate(parts, axis=1).astype(jnp.bfloat16)  # (4*bt, 768)
    acc2 = jnp.dot(lhs2, a2_ref[...],
                   preferred_element_type=jnp.float32)          # (4*bt, 512)
    y2 = jnp.maximum(acc2 + b2_ref[...], 0.0)
    p2 = jnp.maximum(jnp.maximum(y2[:, 0:128], y2[:, 128:256]),
                     jnp.maximum(y2[:, 256:384], y2[:, 384:512]))  # (4*bt,128)

    # ---- flatten (torch NCHW order baked into wf) + fused linear1..3 ------
    # p2 rows are ph2-major, image-minor, so the per-image feature vector is
    # just an aligned lane-concat of the four ph2 row blocks.
    q = jnp.concatenate([p2[0:bt, :], p2[bt:2 * bt, :],
                         p2[2 * bt:3 * bt, :], p2[3 * bt:4 * bt, :]],
                        axis=1)                                  # (bt, 512)
    out_ref[...] = (jnp.dot(q, wf_ref[...],
                            preferred_element_type=jnp.float32)
                    + bf_ref[...])                               # (bt, 128)


# ---------------------------------------------------------------------------
# One-time parameter preparation (banded conv matrices, fused linear weights)
# ---------------------------------------------------------------------------
def prepare_params(params):
    w1 = np.asarray(params["w_conv1"], np.float32)              # (10, 1, 5, 5)
    w2 = np.asarray(params["w_conv2"], np.float32)              # (20, 10, 5, 5)
    bc1 = np.asarray(params["b_conv1"], np.float32)
    bc2 = np.asarray(params["b_conv2"], np.float32)

    # --- conv1 banded weight a1: (168, 512) -------------------------------
    # rows: c*28 + w_in ; cols: (u*2 + r)*128 + pw*10 + co (pad lanes zero).
    c = np.arange(6)[:, None, None]
    w_in = np.arange(28)[None, :, None]
    j = np.arange(512)[None, None, :]
    blk, wn = j // 128, j % 128
    u, r = blk // 2, blk % 2
    pw, co = wn // 10, wn % 10
    kh, kw = c - u, w_in - 2 * pw - r
    valid = (wn < 120) & (kh >= 0) & (kh <= 4) & (kw >= 0) & (kw <= 4)
    a1 = np.where(valid,
                  w1[co, 0, np.clip(kh, 0, 4), np.clip(kw, 0, 4)], 0.0)
    a1 = a1.reshape(168, 512)
    wn1 = np.arange(512) % 128
    b1 = np.where(wn1 < 120, bc1[wn1 % 10], 0.0)[None, :]

    # --- conv2 banded weight a2: (768, 512) -------------------------------
    # rows: c2*128 + (w1i*10 + ci) (rows 120..127 of each block zero);
    # cols: (u2*2 + r2)*128 + pw2*20 + co2 (pad lanes zero).
    c2 = np.arange(6)[:, None, None]
    kk = np.arange(128)[None, :, None]
    j2 = np.arange(512)[None, None, :]
    w1i, ci = kk // 10, kk % 10
    blk2, wn2 = j2 // 128, j2 % 128
    u2, r2 = blk2 // 2, blk2 % 2
    pw2, co2 = wn2 // 20, wn2 % 20
    kh2, kw2 = c2 - u2, w1i - 2 * pw2 - r2
    valid2 = ((kk < 120) & (wn2 < 80) &
              (kh2 >= 0) & (kh2 <= 4) & (kw2 >= 0) & (kw2 <= 4))
    a2 = np.where(valid2,
                  w2[co2, ci, np.clip(kh2, 0, 4), np.clip(kw2, 0, 4)], 0.0)
    a2 = a2.reshape(768, 512)
    wn2f = np.arange(512) % 128
    b2 = np.where(wn2f < 80, bc2[wn2f % 20], 0.0)[None, :]

    # --- fused linear1 @ linear2 @ linear3 (no activations between them) --
    wl1 = np.asarray(params["w_lin1"], np.float32)              # (128, 320)
    wl2 = np.asarray(params["w_lin2"], np.float32)              # (32, 128)
    wl3 = np.asarray(params["w_lin3"], np.float32)              # (10, 32)
    bl1 = np.asarray(params["b_lin1"], np.float32)
    bl2 = np.asarray(params["b_lin2"], np.float32)
    bl3 = np.asarray(params["b_lin3"], np.float32)
    wfused = wl1.T @ wl2.T @ wl3.T                              # (320, 10)
    bfused = (bl1 @ wl2.T + bl2) @ wl3.T + bl3                  # (10,)
    # Kernel feature order: ph2-block*128 + pw2*20 + co2; torch flatten
    # (NCHW) order: co2*16 + ph2*4 + pw2.  Pad output lanes to 128.
    jg, pwg, cog = np.meshgrid(np.arange(4), np.arange(4), np.arange(20),
                               indexing="ij")
    rows = (jg * 128 + pwg * 20 + cog).reshape(-1)
    feat = (cog * 16 + jg * 4 + pwg).reshape(-1)
    wf = np.zeros((512, 128), np.float32)
    wf[rows, :10] = wfused[feat, :]
    bf = np.zeros((1, 128), np.float32)
    bf[0, :10] = bfused

    return {
        "a1": jnp.asarray(a1, jnp.bfloat16),
        "b1": jnp.asarray(b1, jnp.float32),
        "a2": jnp.asarray(a2, jnp.bfloat16),
        "b2": jnp.asarray(b2, jnp.float32),
        "wf": jnp.asarray(wf, jnp.float32),
        "bf": jnp.asarray(bf, jnp.float32),
    }


# ---------------------------------------------------------------------------
# Parameters (deterministic synthetic init, shapes as in the PyTorch module)
# ---------------------------------------------------------------------------
def init_params(key):
    ks = jax.random.split(key, 10)
    s = 0.1
    return {
        "w_conv1": jax.random.normal(ks[0], (10, 1, 5, 5), jnp.float32) * s,
        "b_conv1": jax.random.normal(ks[1], (10,), jnp.float32) * s,
        "w_conv2": jax.random.normal(ks[2], (20, 10, 5, 5), jnp.float32) * s,
        "b_conv2": jax.random.normal(ks[3], (20,), jnp.float32) * s,
        "w_lin1": jax.random.normal(ks[4], (128, 320), jnp.float32) * s,
        "b_lin1": jax.random.normal(ks[5], (128,), jnp.float32) * s,
        "w_lin2": jax.random.normal(ks[6], (32, 128), jnp.float32) * s,
        "b_lin2": jax.random.normal(ks[7], (32,), jnp.float32) * s,
        "w_lin3": jax.random.normal(ks[8], (10, 32), jnp.float32) * s,
        "b_lin3": jax.random.normal(ks[9], (10,), jnp.float32) * s,
    }


def _choose_bt(bp):
    if bp % 64 == 0:
        return 32            # grid >= 2 for B >= 64 (v7x megacore)
    if bp % 32 == 0:
        return 16
    return 8


# ---------------------------------------------------------------------------
# Forward pass: one fused pallas_call over batch tiles
# ---------------------------------------------------------------------------
@jax.jit
def net_forward(x, prepped):
    # x: (B, 1, 28, 28) NCHW float32, as in the PyTorch module.
    B = x.shape[0]
    Bp = ((B + 7) // 8) * 8
    bt = _choose_bt(Bp)
    nsteps = Bp // bt

    x2 = x.reshape(B, 28, 28).astype(jnp.float32)
    if Bp != B:
        x2 = jnp.pad(x2, ((0, Bp - B), (0, 0), (0, 0)))

    # Lane-stack the six input rows each conv1 matmul row needs (host side),
    # ordered (parity p, pooled row t, image b) so every in-kernel slice is
    # 8-aligned:  xprep[(i*12 + p*6 + t)*bt + b, c*28 + w] = x[i*bt+b, 4t+2p+c, w]
    pg = np.arange(2)[:, None, None]
    tg = np.arange(6)[None, :, None]
    cg = np.arange(6)[None, None, :]
    rows = (4 * tg + 2 * pg + cg).reshape(-1)                   # (72,), < 28
    xw = x2[:, rows, :]                                         # (Bp, 72, 28)
    xw = xw.reshape(nsteps, bt, 2, 6, 6, 28).transpose(0, 2, 3, 1, 4, 5)
    xprep = xw.reshape(nsteps * 12 * bt, 6 * 28).astype(jnp.bfloat16)

    out = pl.pallas_call(
        _net_kernel,
        out_shape=jax.ShapeDtypeStruct((Bp, 128), jnp.float32),
        grid_spec=pltpu.PrefetchScalarGridSpec(
            num_scalar_prefetch=0,
            grid=(nsteps,),
            in_specs=[
                pl.BlockSpec((12 * bt, 168), lambda i: (i, 0)),  # activations
                pl.BlockSpec((168, 512), lambda i: (0, 0)),      # a1 (bf16)
                pl.BlockSpec((1, 512), lambda i: (0, 0)),        # b1
                pl.BlockSpec((768, 512), lambda i: (0, 0)),      # a2 (bf16)
                pl.BlockSpec((1, 512), lambda i: (0, 0)),        # b2
                pl.BlockSpec((512, 128), lambda i: (0, 0)),      # fused linear
                pl.BlockSpec((1, 128), lambda i: (0, 0)),        # fused bias
            ],
            out_specs=pl.BlockSpec((bt, 128), lambda i: (i, 0)),
        ),
        compiler_params=pltpu.CompilerParams(
            dimension_semantics=("parallel",),
            vmem_limit_bytes=32 * 1024 * 1024,
        ),
    )(xprep, prepped["a1"], prepped["b1"], prepped["a2"], prepped["b2"],
      prepped["wf"], prepped["bf"])

    return out[:B, :10]                                          # (B, 10)


# ---------------------------------------------------------------------------
# Pure-JAX float32 reference of the PyTorch forward pass
# ---------------------------------------------------------------------------
def net_reference(x, params):
    hp = lax.Precision.HIGHEST
    y = lax.conv_general_dilated(x, params["w_conv1"], (1, 1), "VALID",
                                 dimension_numbers=("NCHW", "OIHW", "NCHW"),
                                 precision=hp)
    y = jnp.maximum(y + params["b_conv1"][None, :, None, None], 0.0)
    b, cch, h, w = y.shape
    y = y.reshape(b, cch, h // 2, 2, w // 2, 2).max(axis=(3, 5))
    y = lax.conv_general_dilated(y, params["w_conv2"], (1, 1), "VALID",
                                 dimension_numbers=("NCHW", "OIHW", "NCHW"),
                                 precision=hp)
    y = jnp.maximum(y + params["b_conv2"][None, :, None, None], 0.0)
    b, cch, h, w = y.shape
    y = y.reshape(b, cch, h // 2, 2, w // 2, 2).max(axis=(3, 5))
    f = y.reshape(b, -1)                                         # (B, 320)
    f = jnp.dot(f, params["w_lin1"].T, precision=hp) + params["b_lin1"]
    f = jnp.dot(f, params["w_lin2"].T, precision=hp) + params["b_lin2"]
    f = jnp.dot(f, params["w_lin3"].T, precision=hp) + params["b_lin3"]
    return f


if __name__ == "__main__":
    key = jax.random.PRNGKey(0)
    pkey, xkey = jax.random.split(key)
    params = init_params(pkey)
    prepped = prepare_params(params)
    # 28x28 single-channel input (implied by the 320-feature flatten),
    # batch 64 as in the PyTorch DataLoader.
    x = jax.random.normal(xkey, (64, 1, 28, 28), jnp.float32)

    out = net_forward(x, prepped)
    jax.block_until_ready(out)
    assert out.shape == (64, 10) and out.dtype == jnp.float32
    assert bool(jnp.all(jnp.isfinite(out)))

    # Numerical check against the f32 reference (kernel feeds bf16 operands
    # to the MXU with f32 accumulation, so allow a modest tolerance).
    ref = net_reference(x, params)
    err = float(jnp.max(jnp.abs(out - ref)))
    assert err < 0.1, f"max |kernel - reference| = {err}"
    print("KERNEL_OK")
</pallas_src>

<mosaic_0001>
module attributes {stable_mosaic.version = 11 : i64} {
  func.func @_net_kernel(%arg0: i32, %arg1: memref<384x168xbf16, #tpu.memory_space<vmem>>, %arg2: memref<168x512xbf16, #tpu.memory_space<vmem>>, %arg3: memref<1x512xf32, #tpu.memory_space<vmem>>, %arg4: memref<768x512xbf16, #tpu.memory_space<vmem>>, %arg5: memref<1x512xf32, #tpu.memory_space<vmem>>, %arg6: memref<512x128xf32, #tpu.memory_space<vmem>>, %arg7: memref<1x128xf32, #tpu.memory_space<vmem>>, %arg8: memref<32x128xf32, #tpu.memory_space<vmem>>) attributes {dimension_semantics = [#tpu.dimension_semantics<parallel>], iteration_bounds = array<i64: 2>, scalar_prefetch = 0 : i64, scratch_operands = 0 : i64, tpu.core_type = #tpu.core_type<tc>, window_params = [{transform_indices = @transform_0, window_bounds = array<i64: 384, 168>}, {pipeline_mode = #tpu.pipeline_mode<synchronous>, transform_indices = @transform_1, window_bounds = array<i64: 168, 512>}, {pipeline_mode = #tpu.pipeline_mode<synchronous>, transform_indices = @transform_2, window_bounds = array<i64: 1, 512>}, {pipeline_mode = #tpu.pipeline_mode<synchronous>, transform_indices = @transform_3, window_bounds = array<i64: 768, 512>}, {pipeline_mode = #tpu.pipeline_mode<synchronous>, transform_indices = @transform_4, window_bounds = array<i64: 1, 512>}, {pipeline_mode = #tpu.pipeline_mode<synchronous>, transform_indices = @transform_5, window_bounds = array<i64: 512, 128>}, {pipeline_mode = #tpu.pipeline_mode<synchronous>, transform_indices = @transform_6, window_bounds = array<i64: 1, 128>}, {transform_indices = @transform_7, window_bounds = array<i64: 32, 128>}]} {
    %c0 = arith.constant 0 : index
    %c0_0 = arith.constant 0 : index
    %0 = vector.load %arg1[%c0, %c0_0] : memref<384x168xbf16, #tpu.memory_space<vmem>>, vector<384x168xbf16>
    %c0_1 = arith.constant 0 : index
    %c0_2 = arith.constant 0 : index
    %1 = vector.load %arg2[%c0_1, %c0_2] : memref<168x512xbf16, #tpu.memory_space<vmem>>, vector<168x512xbf16>
    %cst = arith.constant dense<0.000000e+00> : vector<384x512xf32>
    %2 = tpu.matmul %0, %1, %cst {dimension_numbers = #tpu.dot_dimension_numbers<[1], [0], [0], [1], [0, 0, 1, 1], [], []>} : vector<384x168xbf16>, vector<168x512xbf16>, vector<384x512xf32> -> vector<384x512xf32>
    %c0_3 = arith.constant 0 : index
    %c0_4 = arith.constant 0 : index
    %3 = vector.load %arg3[%c0_3, %c0_4] : memref<1x512xf32, #tpu.memory_space<vmem>>, vector<1x512xf32>
    %4 = vector.broadcast %3 : vector<1x512xf32> to vector<384x512xf32>
    %5 = arith.addf %2, %4 : vector<384x512xf32>
    %cst_5 = arith.constant 0.000000e+00 : f32
    %6 = vector.broadcast %cst_5 : f32 to vector<384x512xf32>
    %7 = arith.maximumf %5, %6 : vector<384x512xf32>
    %8 = vector.extract_strided_slice %7 {offsets = [0, 0], sizes = [384, 128], strides = [1, 1]} : vector<384x512xf32> to vector<384x128xf32>
    %9 = vector.extract_strided_slice %7 {offsets = [0, 128], sizes = [384, 128], strides = [1, 1]} : vector<384x512xf32> to vector<384x128xf32>
    %10 = arith.maximumf %8, %9 : vector<384x128xf32>
    %11 = vector.extract_strided_slice %7 {offsets = [0, 256], sizes = [384, 128], strides = [1, 1]} : vector<384x512xf32> to vector<384x128xf32>
    %12 = vector.extract_strided_slice %7 {offsets = [0, 384], sizes = [384, 128], strides = [1, 1]} : vector<384x512xf32> to vector<384x128xf32>
    %13 = arith.maximumf %11, %12 : vector<384x128xf32>
    %14 = arith.maximumf %10, %13 : vector<384x128xf32>
    %15 = vector.extract_strided_slice %14 {offsets = [0, 0], sizes = [192, 128], strides = [1, 1]} : vector<384x128xf32> to vector<192x128xf32>
    %16 = vector.extract_strided_slice %14 {offsets = [192, 0], sizes = [192, 128], strides = [1, 1]} : vector<384x128xf32> to vector<192x128xf32>
    %17 = vector.extract_strided_slice %15 {offsets = [0, 0], sizes = [128, 128], strides = [1, 1]} : vector<192x128xf32> to vector<128x128xf32>
    %18 = vector.extract_strided_slice %16 {offsets = [0, 0], sizes = [128, 128], strides = [1, 1]} : vector<192x128xf32> to vector<128x128xf32>
    %19 = vector.extract_strided_slice %15 {offsets = [32, 0], sizes = [128, 128], strides = [1, 1]} : vector<192x128xf32> to vector<128x128xf32>
    %20 = vector.extract_strided_slice %16 {offsets = [32, 0], sizes = [128, 128], strides = [1, 1]} : vector<192x128xf32> to vector<128x128xf32>
    %21 = vector.extract_strided_slice %15 {offsets = [64, 0], sizes = [128, 128], strides = [1, 1]} : vector<192x128xf32> to vector<128x128xf32>
    %22 = vector.extract_strided_slice %16 {offsets = [64, 0], sizes = [128, 128], strides = [1, 1]} : vector<192x128xf32> to vector<128x128xf32>
    %23 = tpu.concatenate %17, %18, %19, %20, %21, %22 in 1 : vector<128x128xf32>, vector<128x128xf32>, vector<128x128xf32>, vector<128x128xf32>, vector<128x128xf32>, vector<128x128xf32> -> vector<128x768xf32>
    %24 = arith.truncf %23 : vector<128x768xf32> to vector<128x768xbf16>
    %c0_6 = arith.constant 0 : index
    %c0_7 = arith.constant 0 : index
    %25 = vector.load %arg4[%c0_6, %c0_7] : memref<768x512xbf16, #tpu.memory_space<vmem>>, vector<768x512xbf16>
    %cst_8 = arith.constant dense<0.000000e+00> : vector<128x512xf32>
    %26 = tpu.matmul %24, %25, %cst_8 {dimension_numbers = #tpu.dot_dimension_numbers<[1], [0], [0], [1], [0, 0, 1, 1], [], []>} : vector<128x768xbf16>, vector<768x512xbf16>, vector<128x512xf32> -> vector<128x512xf32>
    %c0_9 = arith.constant 0 : index
    %c0_10 = arith.constant 0 : index
    %27 = vector.load %arg5[%c0_9, %c0_10] : memref<1x512xf32, #tpu.memory_space<vmem>>, vector<1x512xf32>
    %28 = vector.broadcast %27 : vector<1x512xf32> to vector<128x512xf32>
    %29 = arith.addf %26, %28 : vector<128x512xf32>
    %cst_11 = arith.constant 0.000000e+00 : f32
    %30 = vector.broadcast %cst_11 : f32 to vector<128x512xf32>
    %31 = arith.maximumf %29, %30 : vector<128x512xf32>
    %32 = vector.extract_strided_slice %31 {offsets = [0, 0], sizes = [128, 128], strides = [1, 1]} : vector<128x512xf32> to vector<128x128xf32>
    %33 = vector.extract_strided_slice %31 {offsets = [0, 128], sizes = [128, 128], strides = [1, 1]} : vector<128x512xf32> to vector<128x128xf32>
    %34 = arith.maximumf %32, %33 : vector<128x128xf32>
    %35 = vector.extract_strided_slice %31 {offsets = [0, 256], sizes = [128, 128], strides = [1, 1]} : vector<128x512xf32> to vector<128x128xf32>
    %36 = vector.extract_strided_slice %31 {offsets = [0, 384], sizes = [128, 128], strides = [1, 1]} : vector<128x512xf32> to vector<128x128xf32>
    %37 = arith.maximumf %35, %36 : vector<128x128xf32>
    %38 = arith.maximumf %34, %37 : vector<128x128xf32>
    %39 = vector.extract_strided_slice %38 {offsets = [0, 0], sizes = [32, 128], strides = [1, 1]} : vector<128x128xf32> to vector<32x128xf32>
    %40 = vector.extract_strided_slice %38 {offsets = [32, 0], sizes = [32, 128], strides = [1, 1]} : vector<128x128xf32> to vector<32x128xf32>
    %41 = vector.extract_strided_slice %38 {offsets = [64, 0], sizes = [32, 128], strides = [1, 1]} : vector<128x128xf32> to vector<32x128xf32>
    %42 = vector.extract_strided_slice %38 {offsets = [96, 0], sizes = [32, 128], strides = [1, 1]} : vector<128x128xf32> to vector<32x128xf32>
    %43 = tpu.concatenate %39, %40, %41, %42 in 1 : vector<32x128xf32>, vector<32x128xf32>, vector<32x128xf32>, vector<32x128xf32> -> vector<32x512xf32>
    %c0_12 = arith.constant 0 : index
    %c0_13 = arith.constant 0 : index
    %44 = vector.load %arg6[%c0_12, %c0_13] : memref<512x128xf32, #tpu.memory_space<vmem>>, vector<512x128xf32>
    %cst_14 = arith.constant dense<0.000000e+00> : vector<32x128xf32>
    %45 = tpu.matmul %43, %44, %cst_14 {dimension_numbers = #tpu.dot_dimension_numbers<[1], [0], [0], [1], [0, 0, 1, 1], [], []>} : vector<32x512xf32>, vector<512x128xf32>, vector<32x128xf32> -> vector<32x128xf32>
    %c0_15 = arith.constant 0 : index
    %c0_16 = arith.constant 0 : index
    %46 = vector.load %arg7[%c0_15, %c0_16] : memref<1x128xf32, #tpu.memory_space<vmem>>, vector<1x128xf32>
    %47 = vector.broadcast %46 : vector<1x128xf32> to vector<32x128xf32>
    %48 = arith.addf %45, %47 : vector<32x128xf32>
    %c0_17 = arith.constant 0 : index
    %c0_18 = arith.constant 0 : index
    %49 = vector.load %arg8[%c0_17, %c0_18] : memref<32x128xf32, #tpu.memory_space<vmem>>, vector<32x128xf32>
    tpu.vector_store %arg8[%c0_17, %c0_18], %48 {strides = array<i32>} : memref<32x128xf32, #tpu.memory_space<vmem>>, vector<32x128xf32>,
    return
  }
  func.func @transform_0(%arg0: i32) -> (i32, i32) {
    %c0_i32 = arith.constant 0 : i32
    %c0_i32_0 = arith.constant 0 : i32
    return %arg0, %c0_i32 : i32, i32
  }
  func.func @transform_1(%arg0: i32) -> (i32, i32) {
    %c0_i32 = arith.constant 0 : i32
    %c0_i32_0 = arith.constant 0 : i32
    %c0_i32_1 = arith.constant 0 : i32
    return %c0_i32, %c0_i32_0 : i32, i32
  }
  func.func @transform_2(%arg0: i32) -> (i32, i32) {
    %c0_i32 = arith.constant 0 : i32
    %c0_i32_0 = arith.constant 0 : i32
    %c0_i32_1 = arith.constant 0 : i32
    return %c0_i32, %c0_i32_0 : i32, i32
  }
  func.func @transform_3(%arg0: i32) -> (i32, i32) {
    %c0_i32 = arith.constant 0 : i32
    %c0_i32_0 = arith.constant 0 : i32
    %c0_i32_1 = arith.constant 0 : i32
    return %c0_i32, %c0_i32_0 : i32, i32
  }
  func.func @transform_4(%arg0: i32) -> (i32, i32) {
    %c0_i32 = arith.constant 0 : i32
    %c0_i32_0 = arith.constant 0 : i32
    %c0_i32_1 = arith.constant 0 : i32
    return %c0_i32, %c0_i32_0 : i32, i32
  }
  func.func @transform_5(%arg0: i32) -> (i32, i32) {
    %c0_i32 = arith.constant 0 : i32
    %c0_i32_0 = arith.constant 0 : i32
    %c0_i32_1 = arith.constant 0 : i32
    return %c0_i32, %c0_i32_0 : i32, i32
  }
  func.func @transform_6(%arg0: i32) -> (i32, i32) {
    %c0_i32 = arith.constant 0 : i32
    %c0_i32_0 = arith.constant 0 : i32
    %c0_i32_1 = arith.constant 0 : i32
    return %c0_i32, %c0_i32_0 : i32, i32
  }
  func.func @transform_7(%arg0: i32) -> (i32, i32) {
    %c0_i32 = arith.constant 0 : i32
    %c0_i32_0 = arith.constant 0 : i32
    return %arg0, %c0_i32 : i32, i32
  }
}

</mosaic_0001>

<llo_original>
// kernel: net_forward.1
$region0: #{net_forward.1}
  #allocation0 [shape = 'u32[]', space=smem, size = 0x4, offset = 0x4, fixed_abs, tag = 'smem constant byte address 0x4 - core index']
  #allocation1 [shape = 'u32[144,128]{1,0:T(1,128)}', space=vmem, size = 0x12000, scoped, tag = 'internal scratch']
  %s0 = inlined_call_operand.vmem [shape: bf16[768,168], index: 0, kind: input, shape index: {}]
  %s1 = inlined_call_operand.vmem [shape: bf16[168,512], index: 1, kind: input, shape index: {}]
  %s2 = inlined_call_operand.vmem [shape: f32[1,512], index: 2, kind: input, shape index: {}]
  %s3 = inlined_call_operand.vmem [shape: bf16[768,512], index: 3, kind: input, shape index: {}]
  %s4 = inlined_call_operand.vmem [shape: f32[1,512], index: 4, kind: input, shape index: {}]
  %s5 = inlined_call_operand.vmem [shape: f32[512,128], index: 5, kind: input, shape index: {}]
  %s6 = inlined_call_operand.vmem [shape: f32[1,128], index: 6, kind: input, shape index: {}]
  %s7 = inlined_call_operand.vmem [shape: f32[64,128], index: 7, kind: output, shape index: {}]
  %s8 = sld [smem:[#allocation0]]
  $region61: #{net_forward.1} parent=0
    _
  %s10 = ssub.s32 1, %s8
  %s11 = scalar_select 0, %s10, %s8
  loop: start=0, step=1, limit=4
  $region2: #{net_forward.1} parent=0 // loop_pre_header
    _
  $region3: #{net_forward.1} parent=0 // loop_header
    %s13 = sphi 0, %s17
    %p14 = scmp.ge.s32.totalorder %s13, 4
    %s23 = sphi 0, %s25
    %s26 = sphi 0, %s23
    %s27 = sphi 0, %s26
    %s43 = sphi 0, %s27
    %s47 = sphi 0, %s47
    %s49 = sphi 0, %s47
    %s50 = sphi 0, %s49
    %s64 = sphi 0, %s50
    %s68 = sphi 0, %s68
    %s70 = sphi 0, %s68
    %s71 = sphi 0, %s70
    %s85 = sphi 0, %s71
    %s89 = sphi 0, %s89
    %s91 = sphi 0, %s89
    %s92 = sphi 0, %s91
    %s106 = sphi 0, %s92
    %s110 = sphi 0, %s110
    %s112 = sphi 0, %s110
    %s113 = sphi 0, %s112
    %s127 = sphi 0, %s113
    %s131 = sphi 0, %s131
    %s133 = sphi 0, %s131
    %s134 = sphi 0, %s133
    %s148 = sphi 0, %s134
    %s152 = sphi 0, %s152
    %s154 = sphi 0, %s152
    %s155 = sphi 0, %s154
    %s169 = sphi 0, %s155
    %s175 = sphi 0, %s177
    %s178 = sphi 0, %s175
    %s179 = sphi 0, %s178
    %s195 = sphi 0, %s179
  $region4: #{net_forward.1} parent=0 // loop_header_branch
    %16 = sbr.rel (%p14) target = $region8
  $region5: #{net_forward.1} parent=0 // loop_body
    %s18 = ssub.s32 %s13, 1
    %s19 = ssub.s32 %s13, 2
    %s20 = sadd.s32 %s13, 1
    %s21 = ssub.s32 %s13, %s20
    %p22 = scmp.eq.s32.totalorder %s21, 0
    %s24 = sadd.s32 %s23, 1
    %s25 = scalar_select %p22, %s23, %s24
    %p28 = pneg %p22
    %p29 = scmp.eq.s32.totalorder %s13, 1
    %p30 = por %p28, %p29
    %p31 = scmp.ne.s32.totalorder %s23, %s26
    %p32 = scmp.eq.s32.totalorder %s13, 0
    %p33 = por %p31, %p32
    %p34 = scmp.ne.s32.totalorder %s23, %s26
    %p35 = scmp.eq.s32.totalorder %s18, 1
    %p36 = por %p34, %p35
    %p37 = scmp.ne.s32.totalorder %s26, %s27
    %p38 = scmp.eq.s32.totalorder %s18, 0
    %p39 = por %p37, %p38
    %p40 = scmp.ne.s32.totalorder %s26, %s27
    %p41 = scmp.eq.s32.totalorder %s19, 1
    %p42 = por %p40, %p41
    %p44 = scmp.ne.s32.totalorder %s27, %s43
    %p45 = scmp.eq.s32.totalorder %s19, 0
    %p46 = por %p44, %p45
    %s48 = sadd.s32 %s47, 1
    %p51 = scmp.eq.s32.totalorder %s13, 1
    %p52 = scmp.ne.s32.totalorder %s47, %s49
    %p53 = scmp.eq.s32.totalorder %s13, 0
    %p54 = por %p52, %p53
    %p55 = scmp.ne.s32.totalorder %s47, %s49
    %p56 = scmp.eq.s32.totalorder %s18, 1
    %p57 = por %p55, %p56
    %p58 = scmp.ne.s32.totalorder %s49, %s50
    %p59 = scmp.eq.s32.totalorder %s18, 0
    %p60 = por %p58, %p59
    %p61 = scmp.ne.s32.totalorder %s49, %s50
    %p62 = scmp.eq.s32.totalorder %s19, 1
    %p63 = por %p61, %p62
    %p65 = scmp.ne.s32.totalorder %s50, %s64
    %p66 = scmp.eq.s32.totalorder %s19, 0
    %p67 = por %p65, %p66
    %s69 = sadd.s32 %s68, 1
    %p72 = scmp.eq.s32.totalorder %s13, 1
    %p73 = scmp.ne.s32.totalorder %s68, %s70
    %p74 = scmp.eq.s32.totalorder %s13, 0
    %p75 = por %p73, %p74
    %p76 = scmp.ne.s32.totalorder %s68, %s70
    %p77 = scmp.eq.s32.totalorder %s18, 1
    %p78 = por %p76, %p77
    %p79 = scmp.ne.s32.totalorder %s70, %s71
    %p80 = scmp.eq.s32.totalorder %s18, 0
    %p81 = por %p79, %p80
    %p82 = scmp.ne.s32.totalorder %s70, %s71
    %p83 = scmp.eq.s32.totalorder %s19, 1
    %p84 = por %p82, %p83
    %p86 = scmp.ne.s32.totalorder %s71, %s85
    %p87 = scmp.eq.s32.totalorder %s19, 0
    %p88 = por %p86, %p87
    %s90 = sadd.s32 %s89, 1
    %p93 = scmp.eq.s32.totalorder %s13, 1
    %p94 = scmp.ne.s32.totalorder %s89, %s91
    %p95 = scmp.eq.s32.totalorder %s13, 0
    %p96 = por %p94, %p95
    %p97 = scmp.ne.s32.totalorder %s89, %s91
    %p98 = scmp.eq.s32.totalorder %s18, 1
    %p99 = por %p97, %p98
    %p100 = scmp.ne.s32.totalorder %s91, %s92
    %p101 = scmp.eq.s32.totalorder %s18, 0
    %p102 = por %p100, %p101
    %p103 = scmp.ne.s32.totalorder %s91, %s92
    %p104 = scmp.eq.s32.totalorder %s19, 1
    %p105 = por %p103, %p104
    %p107 = scmp.ne.s32.totalorder %s92, %s106
    %p108 = scmp.eq.s32.totalorder %s19, 0
    %p109 = por %p107, %p108
    %s111 = sadd.s32 %s110, 1
    %p114 = scmp.eq.s32.totalorder %s13, 1
    %p115 = scmp.ne.s32.totalorder %s110, %s112
    %p116 = scmp.eq.s32.totalorder %s13, 0
    %p117 = por %p115, %p116
    %p118 = scmp.ne.s32.totalorder %s110, %s112
    %p119 = scmp.eq.s32.totalorder %s18, 1
    %p120 = por %p118, %p119
    %p121 = scmp.ne.s32.totalorder %s112, %s113
    %p122 = scmp.eq.s32.totalorder %s18, 0
    %p123 = por %p121, %p122
    %p124 = scmp.ne.s32.totalorder %s112, %s113
    %p125 = scmp.eq.s32.totalorder %s19, 1
    %p126 = por %p124, %p125
    %p128 = scmp.ne.s32.totalorder %s113, %s127
    %p129 = scmp.eq.s32.totalorder %s19, 0
    %p130 = por %p128, %p129
    %s132 = sadd.s32 %s131, 1
    %p135 = scmp.eq.s32.totalorder %s13, 1
    %p136 = scmp.ne.s32.totalorder %s131, %s133
    %p137 = scmp.eq.s32.totalorder %s13, 0
    %p138 = por %p136, %p137
    %p139 = scmp.ne.s32.totalorder %s131, %s133
    %p140 = scmp.eq.s32.totalorder %s18, 1
    %p141 = por %p139, %p140
    %p142 = scmp.ne.s32.totalorder %s133, %s134
    %p143 = scmp.eq.s32.totalorder %s18, 0
    %p144 = por %p142, %p143
    %p145 = scmp.ne.s32.totalorder %s133, %s134
    %p146 = scmp.eq.s32.totalorder %s19, 1
    %p147 = por %p145, %p146
    %p149 = scmp.ne.s32.totalorder %s134, %s148
    %p150 = scmp.eq.s32.totalorder %s19, 0
    %p151 = por %p149, %p150
    %s153 = sadd.s32 %s152, 1
    %p156 = scmp.eq.s32.totalorder %s13, 1
    %p157 = scmp.ne.s32.totalorder %s152, %s154
    %p158 = scmp.eq.s32.totalorder %s13, 0
    %p159 = por %p157, %p158
    %p160 = scmp.ne.s32.totalorder %s152, %s154
    %p161 = scmp.eq.s32.totalorder %s18, 1
    %p162 = por %p160, %p161
    %p163 = scmp.ne.s32.totalorder %s154, %s155
    %p164 = scmp.eq.s32.totalorder %s18, 0
    %p165 = por %p163, %p164
    %p166 = scmp.ne.s32.totalorder %s154, %s155
    %p167 = scmp.eq.s32.totalorder %s19, 1
    %p168 = por %p166, %p167
    %p170 = scmp.ne.s32.totalorder %s155, %s169
    %p171 = scmp.eq.s32.totalorder %s19, 0
    %p172 = por %p170, %p171
    %s173 = ssub.s32 %s13, %s20
    %p174 = scmp.eq.s32.totalorder %s173, 0
    %s176 = sadd.s32 %s175, 1
    %s177 = scalar_select %p174, %s175, %s176
    %p180 = pneg %p174
    %p181 = scmp.eq.s32.totalorder %s13, 1
    %p182 = por %p180, %p181
    %p183 = scmp.ne.s32.totalorder %s175, %s178
    %p184 = scmp.eq.s32.totalorder %s13, 0
    %p185 = por %p183, %p184
    %p186 = scmp.ne.s32.totalorder %s175, %s178
    %p187 = scmp.eq.s32.totalorder %s18, 1
    %p188 = por %p186, %p187
    %p189 = scmp.ne.s32.totalorder %s178, %s179
    %p190 = scmp.eq.s32.totalorder %s18, 0
    %p191 = por %p189, %p190
    %p192 = scmp.ne.s32.totalorder %s178, %s179
    %p193 = scmp.eq.s32.totalorder %s19, 1
    %p194 = por %p192, %p193
    %p196 = scmp.ne.s32.totalorder %s179, %s195
    %p197 = scmp.eq.s32.totalorder %s19, 0
    %p198 = por %p196, %p197
    %p199 = scmp.le.s32.totalorder 1, %s13
    %p200 = scmp.lt.s32.totalorder %s13, 3
    %p201 = pnand %p199, %p200
    %p202 = pneg %p201
    // Predicated region
    $region9: #{net_forward.1} parent=5 // pred_check
      _
    $region10: #{net_forward.1} parent=5 // pred_check_branch
      %204 = sbr.rel (%p201) target = $region12
    $region11: #{net_forward.1} parent=5 // pred_region
      %s205 = ssub.s32 %s13, 1
      // Predicated region
      $region13: #{net_forward.1} parent=11 // pred_check
        %p206 = pneg %p60
      $region14: #{net_forward.1} parent=11 // pred_check_branch
        %208 = sbr.rel (%p206) target = $region16
      $region15: #{net_forward.1} parent=11 // pred_region
        _
      $region16: #{net_forward.1} parent=11 // pred_fallthru
        _
      // Predicated region
      $region17: #{net_forward.1} parent=11 // pred_check
        %p209 = pneg %p81
      $region18: #{net_forward.1} parent=11 // pred_check_branch
        %211 = sbr.rel (%p209) target = $region20
      $region19: #{net_forward.1} parent=11 // pred_region
        _
      $region20: #{net_forward.1} parent=11 // pred_fallthru
        _
      // Predicated region
      $region21: #{net_forward.1} parent=11 // pred_check
        %p212 = pneg %p102
      $region22: #{net_forward.1} parent=11 // pred_check_branch
        %214 = sbr.rel (%p212) target = $region24
      $region23: #{net_forward.1} parent=11 // pred_region
        _
      $region24: #{net_forward.1} parent=11 // pred_fallthru
        _
      // Predicated region
      $region25: #{net_forward.1} parent=11 // pred_check
        %p215 = pneg %p123
      $region26: #{net_forward.1} parent=11 // pred_check_branch
        %217 = sbr.rel (%p215) target = $region28
      $region27: #{net_forward.1} parent=11 // pred_region
        _
      $region28: #{net_forward.1} parent=11 // pred_fallthru
        _
      // Predicated region
      $region29: #{net_forward.1} parent=11 // pred_check
        %p218 = pneg %p144
      $region30: #{net_forward.1} parent=11 // pred_check_branch
        %220 = sbr.rel (%p218) target = $region32
      $region31: #{net_forward.1} parent=11 // pred_region
        _
      $region32: #{net_forward.1} parent=11 // pred_fallthru
        _
      // Predicated region
      $region33: #{net_forward.1} parent=11 // pred_check
        %p221 = pneg %p165
      $region34: #{net_forward.1} parent=11 // pred_check_branch
        %223 = sbr.rel (%p221) target = $region36
      $region35: #{net_forward.1} parent=11 // pred_region
        _
      $region36: #{net_forward.1} parent=11 // pred_fallthru
        _
    $region12: #{net_forward.1} parent=5 // pred_fallthru
      _
    %p224 = scmp.lt.s32.totalorder %s13, 2
    // Predicated region
    $region37: #{net_forward.1} parent=5 // pred_check
      %p225 = pneg %p224
    $region38: #{net_forward.1} parent=5 // pred_check_branch
      %227 = sbr.rel (%p225) target = $region40
    $region39: #{net_forward.1} parent=5 // pred_region
      // Predicated region
      $region41: #{net_forward.1} parent=39 // pred_check
        %p228 = pneg %p33
      $region42: #{net_forward.1} parent=39 // pred_check_branch
        %230 = sbr.rel (%p228) target = $region44
      $region43: #{net_forward.1} parent=39 // pred_region
        %s231 = smul.u32 48, %s13
        %p232 = scmp.lt.s32.totalorder %s231, 95
        %s233 = scalar_select %p232, %s231, 95
        %s234 = smul.addr %s233, 2
        %s235 = smul.addr %s234, 4
        %s236 = scalar_lea.vmem %s0, %s235
        %s237 = smul.u32 48, %s13
      $region44: #{net_forward.1} parent=39 // pred_fallthru
        _
    $region40: #{net_forward.1} parent=5 // pred_fallthru
      _
    %p238 = scmp.le.s32.totalorder 1, %s13
    %p239 = scmp.lt.s32.totalorder %s13, 3
    %p240 = pnand %p238, %p239
    %p241 = pneg %p240
    // Predicated region
    $region45: #{net_forward.1} parent=5 // pred_check
      _
    $region46: #{net_forward.1} parent=5 // pred_check_branch
      %243 = sbr.rel (%p240) target = $region48
    $region47: #{net_forward.1} parent=5 // pred_region
      %s244 = ssub.s32 %s13, 1
      %s245 = smul.u32 48, %s18
      %p246 = scmp.lt.s32.totalorder %s245, 95
      %s247 = scalar_select %p246, %s245, 95
      %s248 = smul.addr %s247, 2
      %s249 = smul.addr %s248, 4
      %s250 = scalar_lea.vmem %s0, %s249
      %p251 = pneg %p39
      %p252 = pneg %p36
      %p253 = pneg %p60
      %p254 = pneg %p57
      %p255 = pneg %p81
      %p256 = pneg %p78
      %p257 = pneg %p102
      %p258 = pneg %p99
      %p259 = pneg %p123
      %p260 = pneg %p120
      %p261 = pneg %p144
      %p262 = pneg %p141
      %p263 = pneg %p165
      %p264 = pneg %p162
      %p265 = pneg %p191
      %p266 = pneg %p188
      %s267 = smul.u32 4, %s18
      %p268 = scmp.lt.s32.totalorder %s267, 7
      %s269 = scalar_select %p268, %s267, 7
      %s270 = smul.addr %s269, 8
      %s271 = scalar_lea.vmem %s7, %s270
      %s272 = smul.u32 48, %s18
      %p273 = scmp.lt.s32.totalorder %s272, 95
      %s274 = scalar_select %p273, %s272, 95
      %s275 = smul.addr %s274, 2
      %s276 = smul.addr %s275, 4
      %s277 = scalar_lea.vmem %s0, %s276
      %s278 = smul.u32 48, %s18
      %s279 = smul.u32 4, %s18
      %p280 = scmp.lt.s32.totalorder %s279, 7
      %s281 = scalar_select %p280, %s279, 7
      %s282 = smul.addr %s281, 8
      %s283 = scalar_lea.vmem %s7, %s282
      %s284 = smul.u32 4, %s18
      %v286 = vld [vmem:[%s277] sm:$0xff]
      %v287 = vld [vmem:[%s277 + $0x8] sm:$0xff]
      %v288 = vld [vmem:[%s277 + $0x10] sm:$0xff]
      %v289 = vld [vmem:[%s277 + $0x18] sm:$0xff]
      %v290 = vld [vmem:[%s277 + $0x20] sm:$0xff]
      %v291 = vld [vmem:[%s277 + $0x28] sm:$0xff]
      %v292 = vld [vmem:[%s277 + $0x30] sm:$0xff]
      %v293 = vld [vmem:[%s277 + $0x38] sm:$0xff]
      %v294 = vld [vmem:[%s277 + $0x40] sm:$0xff]
      %v295 = vld [vmem:[%s277 + $0x48] sm:$0xff]
      %v296 = vld [vmem:[%s277 + $0x50] sm:$0xff]
      %v297 = vld [vmem:[%s277 + $0x58] sm:$0xff]
      %v298 = vld [vmem:[%s277 + $0x60] sm:$0xff]
      %v299 = vld [vmem:[%s277 + $0x68] sm:$0xff]
      %v300 = vld [vmem:[%s277 + $0x70] sm:$0xff]
      %v301 = vld [vmem:[%s277 + $0x78] sm:$0xff]
      %v302 = vld [vmem:[%s277 + $0x80] sm:$0xff]
      %v303 = vld [vmem:[%s277 + $0x88] sm:$0xff]
      %v304 = vld [vmem:[%s277 + $0x90] sm:$0xff]
      %v305 = vld [vmem:[%s277 + $0x98] sm:$0xff]
      %v306 = vld [vmem:[%s277 + $0xa0] sm:$0xff]
      %v307 = vld [vmem:[%s277 + $0xa8] sm:$0xff]
      %v308 = vld [vmem:[%s277 + $0xb0] sm:$0xff]
      %v309 = vld [vmem:[%s277 + $0xb8] sm:$0xff]
      %v310 = vld [vmem:[%s277 + $0xc0] sm:$0xff]
      %v311 = vld [vmem:[%s277 + $0xc8] sm:$0xff]
      %v312 = vld [vmem:[%s277 + $0xd0] sm:$0xff]
      %v313 = vld [vmem:[%s277 + $0xd8] sm:$0xff]
      %v314 = vld [vmem:[%s277 + $0xe0] sm:$0xff]
      %v315 = vld [vmem:[%s277 + $0xe8] sm:$0xff]
      %v316 = vld [vmem:[%s277 + $0xf0] sm:$0xff]
      %v317 = vld [vmem:[%s277 + $0xf8] sm:$0xff]
      %v318 = vld [vmem:[%s277 + $0x100] sm:$0xff]
      %v319 = vld [vmem:[%s277 + $0x108] sm:$0xff]
      %v320 = vld [vmem:[%s277 + $0x110] sm:$0xff]
      %v321 = vld [vmem:[%s277 + $0x118] sm:$0xff]
      %v322 = vld [vmem:[%s277 + $0x120] sm:$0xff]
      %v323 = vld [vmem:[%s277 + $0x128] sm:$0xff]
      %v324 = vld [vmem:[%s277 + $0x130] sm:$0xff]
      %v325 = vld [vmem:[%s277 + $0x138] sm:$0xff]
      %v326 = vld [vmem:[%s277 + $0x140] sm:$0xff]
      %v327 = vld [vmem:[%s277 + $0x148] sm:$0xff]
      %v328 = vld [vmem:[%s277 + $0x150] sm:$0xff]
      %v329 = vld [vmem:[%s277 + $0x158] sm:$0xff]
      %v330 = vld [vmem:[%s277 + $0x160] sm:$0xff]
      %v331 = vld [vmem:[%s277 + $0x168] sm:$0xff]
      %v332 = vld [vmem:[%s277 + $0x170] sm:$0xff]
      %v333 = vld [vmem:[%s277 + $0x178] sm:$0xff]
      %v334 = vld [vmem:[%s1] sm:$0xff]
      %v335 = vld [vmem:[%s1 + $0x8] sm:$0xff]
      %v336 = vld [vmem:[%s1 + $0x10] sm:$0xff]
      %v337 = vld [vmem:[%s1 + $0x18] sm:$0xff]
      %v338 = vld [vmem:[%s1 + $0x20] sm:$0xff]
      %v339 = vld [vmem:[%s1 + $0x28] sm:$0xff]
      %v340 = vld [vmem:[%s1 + $0x30] sm:$0xff]
      %v341 = vld [vmem:[%s1 + $0x38] sm:$0xff]
      %v342 = vld [vmem:[%s1 + $0x40] sm:$0xff]
      %v343 = vld [vmem:[%s1 + $0x48] sm:$0xff]
      %v344 = vld [vmem:[%s1 + $0x50] sm:$0xff]
      %v345 = vld [vmem:[%s1 + $0x58] sm:$0xff]
      %v346 = vld [vmem:[%s1 + $0x60] sm:$0xff]
      %v347 = vld [vmem:[%s1 + $0x68] sm:$0xff]
      %v348 = vld [vmem:[%s1 + $0x70] sm:$0xff]
      %v349 = vld [vmem:[%s1 + $0x78] sm:$0xff]
      %v350 = vld [vmem:[%s1 + $0x80] sm:$0xff]
      %v351 = vld [vmem:[%s1 + $0x88] sm:$0xff]
      %v352 = vld [vmem:[%s1 + $0x90] sm:$0xff]
      %v353 = vld [vmem:[%s1 + $0x98] sm:$0xff]
      %v354 = vld [vmem:[%s1 + $0xa0] sm:$0xff]
      %v355 = vld [vmem:[%s1 + $0xa8] sm:$0xff]
      %v356 = vld [vmem:[%s1 + $0xb0] sm:$0xff]
      %v357 = vld [vmem:[%s1 + $0xb8] sm:$0xff]
      %v358 = vld [vmem:[%s1 + $0xc0] sm:$0xff]
      %v359 = vld [vmem:[%s1 + $0xc8] sm:$0xff]
      %v360 = vld [vmem:[%s1 + $0xd0] sm:$0xff]
      %v361 = vld [vmem:[%s1 + $0xd8] sm:$0xff]
      %v362 = vld [vmem:[%s1 + $0xe0] sm:$0xff]
      %v363 = vld [vmem:[%s1 + $0xe8] sm:$0xff]
      %v364 = vld [vmem:[%s1 + $0xf0] sm:$0xff]
      %v365 = vld [vmem:[%s1 + $0xf8] sm:$0xff]
      %v366 = vld [vmem:[%s1 + $0x100] sm:$0xff]
      %v367 = vld [vmem:[%s1 + $0x108] sm:$0xff]
      %v368 = vld [vmem:[%s1 + $0x110] sm:$0xff]
      %v369 = vld [vmem:[%s1 + $0x118] sm:$0xff]
      %v370 = vld [vmem:[%s1 + $0x120] sm:$0xff]
      %v371 = vld [vmem:[%s1 + $0x128] sm:$0xff]
      %v372 = vld [vmem:[%s1 + $0x130] sm:$0xff]
      %v373 = vld [vmem:[%s1 + $0x138] sm:$0xff]
      %v374 = vld [vmem:[%s1 + $0x140] sm:$0xff]
      %v375 = vld [vmem:[%s1 + $0x148] sm:$0xff]
      %v376 = vld [vmem:[%s2] sm:$0xf]
      %v378 = vlaneseq
      %v379 = vshrl.u32 %v378, 7
      %v380 = vsub.s32 0, %v379
      %v381 = vrot.slane %v376, %v380
      %v382 = vlaneseq
      %v383 = vshrl.u32 %v382, 7
      %v384 = vsub.s32 1, %v383
      %v385 = vrot.slane %v376, %v384
      %v386 = vlaneseq
      %v387 = vshrl.u32 %v386, 7
      %v388 = vsub.s32 2, %v387
      %v389 = vrot.slane %v376, %v388
      %v390 = vlaneseq
      %v391 = vshrl.u32 %v390, 7
      %v392 = vsub.s32 3, %v391
      %v393 = vrot.slane %v376, %v392
      %v446 = vunpack.c.l.b16 %v286
      %v447 = vunpack.c.h.b16 %v286
      %v448 = vunpack.c.l.b16 %v287
      %v449 = vunpack.c.h.b16 %v287
      %v450 = vunpack.c.l.b16 %v288
      %v451 = vunpack.c.h.b16 %v288
      %v452 = vunpack.c.l.b16 %v289
      %v453 = vunpack.c.h.b16 %v289
      %v454 = vunpack.c.l.b16 %v290
      %v455 = vunpack.c.h.b16 %v290
      %v456 = vunpack.c.l.b16 %v291
      %v457 = vunpack.c.h.b16 %v291
      %v458 = vunpack.c.l.b16 %v292
      %v459 = vunpack.c.h.b16 %v292
      %v460 = vunpack.c.l.b16 %v293
      %v461 = vunpack.c.h.b16 %v293
      %v462 = vunpack.c.l.b16 %v294
      %v463 = vunpack.c.h.b16 %v294
      %v464 = vunpack.c.l.b16 %v295
      %v465 = vunpack.c.h.b16 %v295
      %v466 = vunpack.c.l.b16 %v296
      %v467 = vunpack.c.h.b16 %v296
      %v468 = vunpack.c.l.b16 %v297
      %v469 = vunpack.c.h.b16 %v297
      %v470 = vunpack.c.l.b16 %v298
      %v471 = vunpack.c.h.b16 %v298
      %v472 = vunpack.c.l.b16 %v299
      %v473 = vunpack.c.h.b16 %v299
      %v474 = vunpack.c.l.b16 %v300
      %v475 = vunpack.c.h.b16 %v300
      %v476 = vunpack.c.l.b16 %v301
      %v477 = vunpack.c.h.b16 %v301
      %v478 = vunpack.c.l.b16 %v302
      %v479 = vunpack.c.h.b16 %v302
      %v480 = vunpack.c.l.b16 %v303
      %v481 = vunpack.c.h.b16 %v303
      %v482 = vunpack.c.l.b16 %v304
      %v483 = vunpack.c.h.b16 %v304
      %v484 = vunpack.c.l.b16 %v305
      %v485 = vunpack.c.h.b16 %v305
      %v486 = vunpack.c.l.b16 %v306
      %v487 = vunpack.c.h.b16 %v306
      %v488 = vunpack.c.l.b16 %v307
      %v489 = vunpack.c.h.b16 %v307
      %v490 = vunpack.c.l.b16 %v308
      %v491 = vunpack.c.h.b16 %v308
      %v492 = vunpack.c.l.b16 %v309
      %v493 = vunpack.c.h.b16 %v309
      %v494 = vunpack.c.l.b16 %v310
      %v495 = vunpack.c.h.b16 %v310
      %v496 = vunpack.c.l.b16 %v311
      %v497 = vunpack.c.h.b16 %v311
      %v498 = vunpack.c.l.b16 %v312
      %v499 = vunpack.c.h.b16 %v312
      %v500 = vunpack.c.l.b16 %v313
      %v501 = vunpack.c.h.b16 %v313
      %v502 = vunpack.c.l.b16 %v314
      %v503 = vunpack.c.h.b16 %v314
      %v504 = vunpack.c.l.b16 %v315
      %v505 = vunpack.c.h.b16 %v315
      %v506 = vunpack.c.l.b16 %v316
      %v507 = vunpack.c.h.b16 %v316
      %v508 = vunpack.c.l.b16 %v317
      %v509 = vunpack.c.h.b16 %v317
      %v510 = vunpack.c.l.b16 %v318
      %v511 = vunpack.c.h.b16 %v318
      %v512 = vunpack.c.l.b16 %v319
      %v513 = vunpack.c.h.b16 %v319
      %v514 = vunpack.c.l.b16 %v320
      %v515 = vunpack.c.h.b16 %v320
      %v516 = vunpack.c.l.b16 %v321
      %v517 = vunpack.c.h.b16 %v321
      %v518 = vunpack.c.l.b16 %v322
      %v519 = vunpack.c.h.b16 %v322
      %v520 = vunpack.c.l.b16 %v323
      %v521 = vunpack.c.h.b16 %v323
      %v522 = vunpack.c.l.b16 %v324
      %v523 = vunpack.c.h.b16 %v324
      %v524 = vunpack.c.l.b16 %v325
      %v525 = vunpack.c.h.b16 %v325
      %v526 = vunpack.c.l.b16 %v326
      %v527 = vunpack.c.h.b16 %v326
      %v528 = vunpack.c.l.b16 %v327
      %v529 = vunpack.c.h.b16 %v327
      %v530 = vunpack.c.l.b16 %v328
      %v531 = vunpack.c.h.b16 %v328
      %v532 = vunpack.c.l.b16 %v329
      %v533 = vunpack.c.h.b16 %v329
      %v534 = vunpack.c.l.b16 %v330
      %v535 = vunpack.c.h.b16 %v330
      %v536 = vunpack.c.l.b16 %v331
      %v537 = vunpack.c.h.b16 %v331
      %v538 = vunpack.c.l.b16 %v332
      %v539 = vunpack.c.h.b16 %v332
      %v540 = vunpack.c.l.b16 %v333
      %v541 = vunpack.c.h.b16 %v333
      %v542 = vpack.c.b16 %v448, %v446
      %v543 = vpack.c.b16 %v449, %v447
      %v544 = vpack.c.b16 %v452, %v450
      %v545 = vpack.c.b16 %v453, %v451
      %v546 = vpack.c.b16 %v456, %v454
      %v547 = vpack.c.b16 %v457, %v455
      %v548 = vpack.c.b16 %v460, %v458
      %v549 = vpack.c.b16 %v461, %v459
      %v550 = vpack.c.b16 %v464, %v462
      %v551 = vpack.c.b16 %v465, %v463
      %v552 = vpack.c.b16 %v468, %v466
      %v553 = vpack.c.b16 %v469, %v467
      %v554 = vpack.c.b16 %v472, %v470
      %v555 = vpack.c.b16 %v473, %v471
      %v556 = vpack.c.b16 %v476, %v474
      %v557 = vpack.c.b16 %v477, %v475
      %v558 = vpack.c.b16 %v480, %v478
      %v559 = vpack.c.b16 %v481, %v479
      %v560 = vpack.c.b16 %v484, %v482
      %v561 = vpack.c.b16 %v485, %v483
      %v562 = vpack.c.b16 %v488, %v486
      %v563 = vpack.c.b16 %v489, %v487
      %v564 = vpack.c.b16 %v492, %v490
      %v565 = vpack.c.b16 %v493, %v491
      %v566 = vpack.c.b16 %v496, %v494
      %v567 = vpack.c.b16 %v497, %v495
      %v568 = vpack.c.b16 %v500, %v498
      %v569 = vpack.c.b16 %v501, %v499
      %v570 = vpack.c.b16 %v504, %v502
      %v571 = vpack.c.b16 %v505, %v503
      %v572 = vpack.c.b16 %v508, %v506
      %v573 = vpack.c.b16 %v509, %v507
      %v574 = vpack.c.b16 %v512, %v510
      %v575 = vpack.c.b16 %v513, %v511
      %v576 = vpack.c.b16 %v516, %v514
      %v577 = vpack.c.b16 %v517, %v515
      %v578 = vpack.c.b16 %v520, %v518
      %v579 = vpack.c.b16 %v521, %v519
      %v580 = vpack.c.b16 %v524, %v522
      %v581 = vpack.c.b16 %v525, %v523
      %v582 = vpack.c.b16 %v528, %v526
      %v583 = vpack.c.b16 %v529, %v527
      %v584 = vpack.c.b16 %v532, %v530
      %v585 = vpack.c.b16 %v533, %v531
      %v586 = vpack.c.b16 %v536, %v534
      %v587 = vpack.c.b16 %v537, %v535
      %v588 = vpack.c.b16 %v540, %v538
      %v589 = vpack.c.b16 %v541, %v539
      %v656 = vunpack.c.l.b16 %v334
      %v657 = vunpack.c.h.b16 %v334
      %v658 = vunpack.c.l.b16 %v335
      %v659 = vunpack.c.h.b16 %v335
      %v660 = vunpack.c.l.b16 %v336
      %v661 = vunpack.c.h.b16 %v336
      %v662 = vunpack.c.l.b16 %v337
      %v663 = vunpack.c.h.b16 %v337
      %v664 = vunpack.c.l.b16 %v338
      %v665 = vunpack.c.h.b16 %v338
      %v666 = vunpack.c.l.b16 %v339
      %v667 = vunpack.c.h.b16 %v339
      %v668 = vunpack.c.l.b16 %v340
      %v669 = vunpack.c.h.b16 %v340
      %v670 = vunpack.c.l.b16 %v341
      %v671 = vunpack.c.h.b16 %v341
      %v672 = vunpack.c.l.b16 %v342
      %v673 = vunpack.c.h.b16 %v342
      %v674 = vunpack.c.l.b16 %v343
      %v675 = vunpack.c.h.b16 %v343
      %v676 = vunpack.c.l.b16 %v344
      %v677 = vunpack.c.h.b16 %v344
      %v678 = vunpack.c.l.b16 %v345
      %v679 = vunpack.c.h.b16 %v345
      %v680 = vunpack.c.l.b16 %v346
      %v681 = vunpack.c.h.b16 %v346
      %v682 = vunpack.c.l.b16 %v347
      %v683 = vunpack.c.h.b16 %v347
      %v684 = vunpack.c.l.b16 %v348
      %v685 = vunpack.c.h.b16 %v348
      %v686 = vunpack.c.l.b16 %v349
      %v687 = vunpack.c.h.b16 %v349
      %v688 = vunpack.c.l.b16 %v350
      %v689 = vunpack.c.h.b16 %v350
      %v690 = vunpack.c.l.b16 %v351
      %v691 = vunpack.c.h.b16 %v351
      %v692 = vunpack.c.l.b16 %v352
      %v693 = vunpack.c.h.b16 %v352
      %v694 = vunpack.c.l.b16 %v353
      %v695 = vunpack.c.h.b16 %v353
      %v696 = vunpack.c.l.b16 %v354
      %v697 = vunpack.c.h.b16 %v354
      %v698 = vunpack.c.l.b16 %v355
      %v699 = vunpack.c.h.b16 %v355
      %v700 = vunpack.c.l.b16 %v356
      %v701 = vunpack.c.h.b16 %v356
      %v702 = vunpack.c.l.b16 %v357
      %v703 = vunpack.c.h.b16 %v357
      %v704 = vunpack.c.l.b16 %v358
      %v705 = vunpack.c.h.b16 %v358
      %v706 = vunpack.c.l.b16 %v359
      %v707 = vunpack.c.h.b16 %v359
      %v708 = vunpack.c.l.b16 %v360
      %v709 = vunpack.c.h.b16 %v360
      %v710 = vunpack.c.l.b16 %v361
      %v711 = vunpack.c.h.b16 %v361
      %v712 = vunpack.c.l.b16 %v362
      %v713 = vunpack.c.h.b16 %v362
      %v714 = vunpack.c.l.b16 %v363
      %v715 = vunpack.c.h.b16 %v363
      %v716 = vunpack.c.l.b16 %v364
      %v717 = vunpack.c.h.b16 %v364
      %v718 = vunpack.c.l.b16 %v365
      %v719 = vunpack.c.h.b16 %v365
      %v720 = vunpack.c.l.b16 %v366
      %v721 = vunpack.c.h.b16 %v366
      %v722 = vunpack.c.l.b16 %v367
      %v723 = vunpack.c.h.b16 %v367
      %v724 = vunpack.c.l.b16 %v368
      %v725 = vunpack.c.h.b16 %v368
      %v726 = vunpack.c.l.b16 %v369
      %v727 = vunpack.c.h.b16 %v369
      %v728 = vunpack.c.l.b16 %v370
      %v729 = vunpack.c.h.b16 %v370
      %v730 = vunpack.c.l.b16 %v371
      %v731 = vunpack.c.h.b16 %v371
      %v732 = vunpack.c.l.b16 %v372
      %v733 = vunpack.c.h.b16 %v372
      %v734 = vunpack.c.l.b16 %v373
      %v735 = vunpack.c.h.b16 %v373
      %v736 = vunpack.c.l.b16 %v374
      %v737 = vunpack.c.h.b16 %v374
      %v738 = vunpack.c.l.b16 %v375
      %v739 = vunpack.c.h.b16 %v375
      %v740 = vpack.c.b16 %v660, %v656
      %v741 = vpack.c.b16 %v661, %v657
      %v742 = vpack.c.b16 %v662, %v658
      %v743 = vpack.c.b16 %v663, %v659
      %v744 = vpack.c.b16 %v668, %v664
      %v745 = vpack.c.b16 %v669, %v665
      %v746 = vpack.c.b16 %v670, %v666
      %v747 = vpack.c.b16 %v671, %v667
      %v748 = vpack.c.b16 %v676, %v672
      %v749 = vpack.c.b16 %v677, %v673
      %v750 = vpack.c.b16 %v678, %v674
      %v751 = vpack.c.b16 %v679, %v675
      %v752 = vpack.c.b16 %v684, %v680
      %v753 = vpack.c.b16 %v685, %v681
      %v754 = vpack.c.b16 %v686, %v682
      %v755 = vpack.c.b16 %v687, %v683
      %v756 = vpack.c.b16 %v692, %v688
      %v757 = vpack.c.b16 %v693, %v689
      %v758 = vpack.c.b16 %v694, %v690
      %v759 = vpack.c.b16 %v695, %v691
      %v760 = vpack.c.b16 %v700, %v696
      %v761 = vpack.c.b16 %v701, %v697
      %v762 = vpack.c.b16 %v702, %v698
      %v763 = vpack.c.b16 %v703, %v699
      %v764 = vpack.c.b16 %v708, %v704
      %v765 = vpack.c.b16 %v709, %v705
      %v766 = vpack.c.b16 %v710, %v706
      %v767 = vpack.c.b16 %v711, %v707
      %v768 = vpack.c.b16 %v716, %v712
      %v769 = vpack.c.b16 %v717, %v713
      %v770 = vpack.c.b16 %v718, %v714
      %v771 = vpack.c.b16 %v719, %v715
      %v772 = vpack.c.b16 %v724, %v720
      %v773 = vpack.c.b16 %v725, %v721
      %v774 = vpack.c.b16 %v726, %v722
      %v775 = vpack.c.b16 %v727, %v723
      %v776 = vpack.c.b16 %v732, %v728
      %v777 = vpack.c.b16 %v733, %v729
      %v778 = vpack.c.b16 %v734, %v730
      %v779 = vpack.c.b16 %v735, %v731
      %v780 = vpack.c.b16 %v736, %v736
      %v781 = vpack.c.b16 %v737, %v737
      %v782 = vpack.c.b16 %v738, %v738
      %v783 = vpack.c.b16 %v739, %v739
      %vm824 = vcmask 326656
      %v826 = vsel %vm824, %v543, 0
      %v829 = vsel %vm824, %v545, 0
      %v832 = vsel %vm824, %v547, 0
      %v835 = vsel %vm824, %v549, 0
      %v838 = vsel %vm824, %v551, 0
      %v841 = vsel %vm824, %v553, 0
      %v844 = vsel %vm824, %v555, 0
      %v847 = vsel %vm824, %v557, 0
      %v850 = vsel %vm824, %v559, 0
      %v853 = vsel %vm824, %v561, 0
      %v856 = vsel %vm824, %v563, 0
      %v859 = vsel %vm824, %v565, 0
      %v862 = vsel %vm824, %v567, 0
      %v865 = vsel %vm824, %v569, 0
      %v868 = vsel %vm824, %v571, 0
      %v871 = vsel %vm824, %v573, 0
      %v874 = vsel %vm824, %v575, 0
      %v877 = vsel %vm824, %v577, 0
      %v880 = vsel %vm824, %v579, 0
      %v883 = vsel %vm824, %v581, 0
      %v886 = vsel %vm824, %v583, 0
      %v889 = vsel %vm824, %v585, 0
      %v892 = vsel %vm824, %v587, 0
      %v895 = vsel %vm824, %v589, 0
      %vm897 = vcmask 1043456
      %v899 = vsel %vm897, %v780, 0
      %v902 = vsel %vm897, %v781, 0
      %v905 = vsel %vm897, %v782, 0
      %v908 = vsel %vm897, %v783, 0
      %910 = vmatprep.subr.bf16.mxu0 %v741
      %911 = vmatpush1.bf16.msra.mxu0 %v740
      %912 = vmatprep.subr.bf16.mxu0 %v745
      %913 = vmatpush1.bf16.msra.mxu0 %v744
      %914 = vmatprep.subr.bf16.mxu0 %v749
      %915 = vmatpush1.bf16.msra.mxu0 %v748
      %916 = vmatprep.subr.bf16.mxu0 %v753
      %917 = vmatpush1.bf16.msra.mxu0 %v752
      %918 = vmatprep.subr.bf16.mxu0 %v757
      %919 = vmatpush1.bf16.msra.mxu0 %v756
      %920 = vmatprep.subr.bf16.mxu0 %v761
      %921 = vmatpush1.bf16.msra.mxu0 %v760
      %922 = vmatprep.subr.bf16.mxu0 %v765
      %923 = vmatpush1.bf16.msra.mxu0 %v764
      %924 = vmatprep.subr.bf16.mxu0 %v769
      %925 = vmatpush1.bf16.msra.mxu0 %v768
      %926 = vmatprep.subr.bf16.mxu0 %v773
      %927 = vmatpush1.bf16.msra.mxu0 %v772
      %928 = vmatprep.subr.bf16.mxu0 %v777
      %929 = vmatpush1.bf16.msra.mxu0 %v776
      %930 = vmatprep.subr.bf16.mxu0 %v902
      %931 = vmatpush1.bf16.msra.mxu0 %v899
      %932 = vmatprep.subr.bf16.mxu0 0
      %933 = vmatpush1.bf16.msra.mxu0 0
      %934 = vmatprep.subr.bf16.mxu0 0
      %935 = vmatpush1.bf16.msra.mxu0 0
      %936 = vmatprep.subr.bf16.mxu0 0
      %937 = vmatpush1.bf16.msra.mxu0 0
      %938 = vmatprep.subr.bf16.mxu0 0
      %939 = vmatpush1.bf16.msra.mxu0 0
      %940 = vmatprep.subr.bf16.mxu0 0
      %941 = vmatpush1.bf16.msra.mxu0 0
      %942 = vmatprep.mubr.bf16.mxu0 %v826
      %943 = vmatmul.mubr.bf16.gmra.mrb[0].mxu0 %v542
      %v944 = vpop.f32.mrb[0].mxu0
      %v945 = vadd.f32 %v381, %v944
      %v946 = vpop.f32.mrb[0].mxu0
      %v947 = vadd.f32 %v385, %v946
      %v948 = vpop.f32.mrb[0].mxu0
      %v949 = vadd.f32 %v381, %v948
      %v950 = vpop.f32.mrb[0].mxu0
      %v951 = vadd.f32 %v385, %v950
      %952 = vmatprep.mubr.bf16.mxu0 %v829
      %953 = vmatmul.mubr.bf16.gmra.mrb[0].mxu0 %v544
      %v954 = vpop.f32.mrb[0].mxu0
      %v955 = vadd.f32 %v381, %v954
      %v956 = vpop.f32.mrb[0].mxu0
      %v957 = vadd.f32 %v385, %v956
      %v958 = vpop.f32.mrb[0].mxu0
      %v959 = vadd.f32 %v381, %v958
      %v960 = vpop.f32.mrb[0].mxu0
      %v961 = vadd.f32 %v385, %v960
      %962 = vmatprep.mubr.bf16.mxu0 %v832
      %963 = vmatmul.mubr.bf16.gmra.mrb[0].mxu0 %v546
      %v964 = vpop.f32.mrb[0].mxu0
      %v965 = vadd.f32 %v381, %v964
      %v966 = vpop.f32.mrb[0].mxu0
      %v967 = vadd.f32 %v385, %v966
      %v968 = vpop.f32.mrb[0].mxu0
      %v969 = vadd.f32 %v381, %v968
      %v970 = vpop.f32.mrb[0].mxu0
      %v971 = vadd.f32 %v385, %v970
      %972 = vmatprep.mubr.bf16.mxu0 %v835
      %973 = vmatmul.mubr.bf16.gmra.mrb[0].mxu0 %v548
      %v974 = vpop.f32.mrb[0].mxu0
      %v975 = vadd.f32 %v381, %v974
      %v976 = vpop.f32.mrb[0].mxu0
      %v977 = vadd.f32 %v385, %v976
      %v978 = vpop.f32.mrb[0].mxu0
      %v979 = vadd.f32 %v381, %v978
      %v980 = vpop.f32.mrb[0].mxu0
      %v981 = vadd.f32 %v385, %v980
      %982 = vmatprep.mubr.bf16.mxu0 %v838
      %983 = vmatmul.mubr.bf16.gmra.mrb[0].mxu0 %v550
      %v984 = vpop.f32.mrb[0].mxu0
      %v985 = vadd.f32 %v381, %v984
      %v986 = vpop.f32.mrb[0].mxu0
      %v987 = vadd.f32 %v385, %v986
      %v988 = vpop.f32.mrb[0].mxu0
      %v989 = vadd.f32 %v381, %v988
      %v990 = vpop.f32.mrb[0].mxu0
      %v991 = vadd.f32 %v385, %v990
      %992 = vmatprep.mubr.bf16.mxu0 %v841
      %993 = vmatmul.mubr.bf16.gmra.mrb[0].mxu0 %v552
      %v994 = vpop.f32.mrb[0].mxu0
      %v995 = vadd.f32 %v381, %v994
      %v996 = vpop.f32.mrb[0].mxu0
      %v997 = vadd.f32 %v385, %v996
      %v998 = vpop.f32.mrb[0].mxu0
      %v999 = vadd.f32 %v381, %v998
      %v1000 = vpop.f32.mrb[0].mxu0
      %v1001 = vadd.f32 %v385, %v1000
      %1002 = vmatprep.mubr.bf16.mxu0 %v844
      %1003 = vmatmul.mubr.bf16.gmra.mrb[0].mxu0 %v554
      %v1004 = vpop.f32.mrb[0].mxu0
      %v1005 = vadd.f32 %v381, %v1004
      %v1006 = vpop.f32.mrb[0].mxu0
      %v1007 = vadd.f32 %v385, %v1006
      %v1008 = vpop.f32.mrb[0].mxu0
      %v1009 = vadd.f32 %v381, %v1008
      %v1010 = vpop.f32.mrb[0].mxu0
      %v1011 = vadd.f32 %v385, %v1010
      %1012 = vmatprep.mubr.bf16.mxu0 %v847
      %1013 = vmatmul.mubr.bf16.gmra.mrb[0].mxu0 %v556
      %v1014 = vpop.f32.mrb[0].mxu0
      %v1015 = vadd.f32 %v381, %v1014
      %v1016 = vpop.f32.mrb[0].mxu0
      %v1017 = vadd.f32 %v385, %v1016
      %v1018 = vpop.f32.mrb[0].mxu0
      %v1019 = vadd.f32 %v381, %v1018
      %v1020 = vpop.f32.mrb[0].mxu0
      %v1021 = vadd.f32 %v385, %v1020
      %1022 = vmatprep.mubr.bf16.mxu0 %v850
      %1023 = vmatmul.mubr.bf16.gmra.mrb[0].mxu0 %v558
      %v1024 = vpop.f32.mrb[0].mxu0
      %v1025 = vadd.f32 %v381, %v1024
      %v1026 = vpop.f32.mrb[0].mxu0
      %v1027 = vadd.f32 %v385, %v1026
      %v1028 = vpop.f32.mrb[0].mxu0
      %v1029 = vadd.f32 %v381, %v1028
      %v1030 = vpop.f32.mrb[0].mxu0
      %v1031 = vadd.f32 %v385, %v1030
      %1032 = vmatprep.mubr.bf16.mxu0 %v853
      %1033 = vmatmul.mubr.bf16.gmra.mrb[0].mxu0 %v560
      %v1034 = vpop.f32.mrb[0].mxu0
      %v1035 = vadd.f32 %v381, %v1034
      %v1036 = vpop.f32.mrb[0].mxu0
      %v1037 = vadd.f32 %v385, %v1036
      %v1038 = vpop.f32.mrb[0].mxu0
      %v1039 = vadd.f32 %v381, %v1038
      %v1040 = vpop.f32.mrb[0].mxu0
      %v1041 = vadd.f32 %v385, %v1040
      %1042 = vmatprep.mubr.bf16.mxu0 %v856
      %1043 = vmatmul.mubr.bf16.gmra.mrb[0].mxu0 %v562
      %v1044 = vpop.f32.mrb[0].mxu0
      %v1045 = vadd.f32 %v381, %v1044
      %v1046 = vpop.f32.mrb[0].mxu0
      %v1047 = vadd.f32 %v385, %v1046
      %v1048 = vpop.f32.mrb[0].mxu0
      %v1049 = vadd.f32 %v381, %v1048
      %v1050 = vpop.f32.mrb[0].mxu0
      %v1051 = vadd.f32 %v385, %v1050
      %1052 = vmatprep.mubr.bf16.mxu0 %v859
      %1053 = vmatmul.mubr.bf16.gmra.mrb[0].mxu0 %v564
      %v1054 = vpop.f32.mrb[0].mxu0
      %v1055 = vadd.f32 %v381, %v1054
      %v1056 = vpop.f32.mrb[0].mxu0
      %v1057 = vadd.f32 %v385, %v1056
      %v1058 = vpop.f32.mrb[0].mxu0
      %v1059 = vadd.f32 %v381, %v1058
      %v1060 = vpop.f32.mrb[0].mxu0
      %v1061 = vadd.f32 %v385, %v1060
      %1062 = vmatprep.mubr.bf16.mxu0 %v862
      %1063 = vmatmul.mubr.bf16.gmra.mrb[0].mxu0 %v566
      %v1064 = vpop.f32.mrb[0].mxu0
      %v1065 = vadd.f32 %v381, %v1064
      %v1066 = vpop.f32.mrb[0].mxu0
      %v1067 = vadd.f32 %v385, %v1066
      %v1068 = vpop.f32.mrb[0].mxu0
      %v1069 = vadd.f32 %v381, %v1068
      %v1070 = vpop.f32.mrb[0].mxu0
      %v1071 = vadd.f32 %v385, %v1070
      %1072 = vmatprep.mubr.bf16.mxu0 %v865
      %1073 = vmatmul.mubr.bf16.gmra.mrb[0].mxu0 %v568
      %v1074 = vpop.f32.mrb[0].mxu0
      %v1075 = vadd.f32 %v381, %v1074
      %v1076 = vpop.f32.mrb[0].mxu0
      %v1077 = vadd.f32 %v385, %v1076
      %v1078 = vpop.f32.mrb[0].mxu0
      %v1079 = vadd.f32 %v381, %v1078
      %v1080 = vpop.f32.mrb[0].mxu0
      %v1081 = vadd.f32 %v385, %v1080
      %1082 = vmatprep.mubr.bf16.mxu0 %v868
      %1083 = vmatmul.mubr.bf16.gmra.mrb[0].mxu0 %v570
      %v1084 = vpop.f32.mrb[0].mxu0
      %v1085 = vadd.f32 %v381, %v1084
      %v1086 = vpop.f32.mrb[0].mxu0
      %v1087 = vadd.f32 %v385, %v1086
      %v1088 = vpop.f32.mrb[0].mxu0
      %v1089 = vadd.f32 %v381, %v1088
      %v1090 = vpop.f32.mrb[0].mxu0
      %v1091 = vadd.f32 %v385, %v1090
      %1092 = vmatprep.mubr.bf16.mxu0 %v871
      %1093 = vmatmul.mubr.bf16.gmra.mrb[0].mxu0 %v572
      %v1094 = vpop.f32.mrb[0].mxu0
      %v1095 = vadd.f32 %v381, %v1094
      %v1096 = vpop.f32.mrb[0].mxu0
      %v1097 = vadd.f32 %v385, %v1096
      %v1098 = vpop.f32.mrb[0].mxu0
      %v1099 = vadd.f32 %v381, %v1098
      %v1100 = vpop.f32.mrb[0].mxu0
      %v1101 = vadd.f32 %v385, %v1100
      %1102 = vmatprep.mubr.bf16.mxu0 %v874
      %1103 = vmatmul.mubr.bf16.gmra.mrb[0].mxu0 %v574
      %v1104 = vpop.f32.mrb[0].mxu0
      %v1105 = vadd.f32 %v381, %v1104
      %v1106 = vpop.f32.mrb[0].mxu0
      %v1107 = vadd.f32 %v385, %v1106
      %v1108 = vpop.f32.mrb[0].mxu0
      %v1109 = vadd.f32 %v381, %v1108
      %v1110 = vpop.f32.mrb[0].mxu0
      %v1111 = vadd.f32 %v385, %v1110
      %1112 = vmatprep.mubr.bf16.mxu0 %v877
      %1113 = vmatmul.mubr.bf16.gmra.mrb[0].mxu0 %v576
      %v1114 = vpop.f32.mrb[0].mxu0
      %v1115 = vadd.f32 %v381, %v1114
      %v1116 = vpop.f32.mrb[0].mxu0
      %v1117 = vadd.f32 %v385, %v1116
      %v1118 = vpop.f32.mrb[0].mxu0
      %v1119 = vadd.f32 %v381, %v1118
      %v1120 = vpop.f32.mrb[0].mxu0
      %v1121 = vadd.f32 %v385, %v1120
      %1122 = vmatprep.mubr.bf16.mxu0 %v880
      %1123 = vmatmul.mubr.bf16.gmra.mrb[0].mxu0 %v578
      %v1124 = vpop.f32.mrb[0].mxu0
      %v1125 = vadd.f32 %v381, %v1124
      %v1126 = vpop.f32.mrb[0].mxu0
      %v1127 = vadd.f32 %v385, %v1126
      %v1128 = vpop.f32.mrb[0].mxu0
      %v1129 = vadd.f32 %v381, %v1128
      %v1130 = vpop.f32.mrb[0].mxu0
      %v1131 = vadd.f32 %v385, %v1130
      %1132 = vmatprep.mubr.bf16.mxu0 %v883
      %1133 = vmatmul.mubr.bf16.gmra.mrb[0].mxu0 %v580
      %v1134 = vpop.f32.mrb[0].mxu0
      %v1135 = vadd.f32 %v381, %v1134
      %v1136 = vpop.f32.mrb[0].mxu0
      %v1137 = vadd.f32 %v385, %v1136
      %v1138 = vpop.f32.mrb[0].mxu0
      %v1139 = vadd.f32 %v381, %v1138
      %v1140 = vpop.f32.mrb[0].mxu0
      %v1141 = vadd.f32 %v385, %v1140
      %1142 = vmatprep.mubr.bf16.mxu0 %v886
      %1143 = vmatmul.mubr.bf16.gmra.mrb[0].mxu0 %v582
      %v1144 = vpop.f32.mrb[0].mxu0
      %v1145 = vadd.f32 %v381, %v1144
      %v1146 = vpop.f32.mrb[0].mxu0
      %v1147 = vadd.f32 %v385, %v1146
      %v1148 = vpop.f32.mrb[0].mxu0
      %v1149 = vadd.f32 %v381, %v1148
      %v1150 = vpop.f32.mrb[0].mxu0
      %v1151 = vadd.f32 %v385, %v1150
      %1152 = vmatprep.mubr.bf16.mxu0 %v889
      %1153 = vmatmul.mubr.bf16.gmra.mrb[0].mxu0 %v584
      %v1154 = vpop.f32.mrb[0].mxu0
      %v1155 = vadd.f32 %v381, %v1154
      %v1156 = vpop.f32.mrb[0].mxu0
      %v1157 = vadd.f32 %v385, %v1156
      %v1158 = vpop.f32.mrb[0].mxu0
      %v1159 = vadd.f32 %v381, %v1158
      %v1160 = vpop.f32.mrb[0].mxu0
      %v1161 = vadd.f32 %v385, %v1160
      %1162 = vmatprep.mubr.bf16.mxu0 %v892
      %1163 = vmatmul.mubr.bf16.gmra.mrb[0].mxu0 %v586
      %v1164 = vpop.f32.mrb[0].mxu0
      %v1165 = vadd.f32 %v381, %v1164
      %v1166 = vpop.f32.mrb[0].mxu0
      %v1167 = vadd.f32 %v385, %v1166
      %v1168 = vpop.f32.mrb[0].mxu0
      %v1169 = vadd.f32 %v381, %v1168
      %v1170 = vpop.f32.mrb[0].mxu0
      %v1171 = vadd.f32 %v385, %v1170
      %1172 = vmatprep.mubr.bf16.mxu0 %v895
      %1173 = vmatmul.mubr.bf16.gmra.mrb[0].mxu0 %v588
      %v1174 = vpop.f32.mrb[0].mxu0
      %v1175 = vadd.f32 %v381, %v1174
      %v1176 = vpop.f32.mrb[0].mxu0
      %v1177 = vadd.f32 %v385, %v1176
      %v1178 = vpop.f32.mrb[0].mxu0
      %v1179 = vadd.f32 %v381, %v1178
      %v1180 = vpop.f32.mrb[0].mxu0
      %v1181 = vadd.f32 %v385, %v1180
      %1182 = vdwg.mxu0
      %1183 = vmatprep.subr.bf16.mxu0 %v743
      %1184 = vmatpush1.bf16.msra.mxu0 %v742
      %1185 = vmatprep.subr.bf16.mxu0 %v747
      %1186 = vmatpush1.bf16.msra.mxu0 %v746
      %1187 = vmatprep.subr.bf16.mxu0 %v751
      %1188 = vmatpush1.bf16.msra.mxu0 %v750
      %1189 = vmatprep.subr.bf16.mxu0 %v755
      %1190 = vmatpush1.bf16.msra.mxu0 %v754
      %1191 = vmatprep.subr.bf16.mxu0 %v759
      %1192 = vmatpush1.bf16.msra.mxu0 %v758
      %1193 = vmatprep.subr.bf16.mxu0 %v763
      %1194 = vmatpush1.bf16.msra.mxu0 %v762
      %1195 = vmatprep.subr.bf16.mxu0 %v767
      %1196 = vmatpush1.bf16.msra.mxu0 %v766
      %1197 = vmatprep.subr.bf16.mxu0 %v771
      %1198 = vmatpush1.bf16.msra.mxu0 %v770
      %1199 = vmatprep.subr.bf16.mxu0 %v775
      %1200 = vmatpush1.bf16.msra.mxu0 %v774
      %1201 = vmatprep.subr.bf16.mxu0 %v779
      %1202 = vmatpush1.bf16.msra.mxu0 %v778
      %1203 = vmatprep.subr.bf16.mxu0 %v908
      %1204 = vmatpush1.bf16.msra.mxu0 %v905
      %1205 = vmatprep.subr.bf16.mxu0 0
      %1206 = vmatpush1.bf16.msra.mxu0 0
      %1207 = vmatprep.subr.bf16.mxu0 0
      %1208 = vmatpush1.bf16.msra.mxu0 0
      %1209 = vmatprep.subr.bf16.mxu0 0
      %1210 = vmatpush1.bf16.msra.mxu0 0
      %1211 = vmatprep.subr.bf16.mxu0 0
      %1212 = vmatpush1.bf16.msra.mxu0 0
      %1213 = vmatprep.subr.bf16.mxu0 0
      %1214 = vmatpush1.bf16.msra.mxu0 0
      %1215 = vmatprep.mubr.bf16.mxu0 %v826
      %1216 = vmatmul.mubr.bf16.gmra.mrb[0].mxu0 %v542
      %v1217 = vpop.f32.mrb[0].mxu0
      %v1218 = vadd.f32 %v389, %v1217
      %v1219 = vpop.f32.mrb[0].mxu0
      %v1220 = vadd.f32 %v393, %v1219
      %v1221 = vpop.f32.mrb[0].mxu0
      %v1222 = vadd.f32 %v389, %v1221
      %v1223 = vpop.f32.mrb[0].mxu0
      %v1224 = vadd.f32 %v393, %v1223
      %1225 = vmatprep.mubr.bf16.mxu0 %v829
      %1226 = vmatmul.mubr.bf16.gmra.mrb[0].mxu0 %v544
      %v1227 = vpop.f32.mrb[0].mxu0
      %v1228 = vadd.f32 %v389, %v1227
      %v1229 = vpop.f32.mrb[0].mxu0
      %v1230 = vadd.f32 %v393, %v1229
      %v1231 = vpop.f32.mrb[0].mxu0
      %v1232 = vadd.f32 %v389, %v1231
      %v1233 = vpop.f32.mrb[0].mxu0
      %v1234 = vadd.f32 %v393, %v1233
      %1235 = vmatprep.mubr.bf16.mxu0 %v832
      %1236 = vmatmul.mubr.bf16.gmra.mrb[0].mxu0 %v546
      %v1237 = vpop.f32.mrb[0].mxu0
      %v1238 = vadd.f32 %v389, %v1237
      %v1239 = vpop.f32.mrb[0].mxu0
      %v1240 = vadd.f32 %v393, %v1239
      %v1241 = vpop.f32.mrb[0].mxu0
      %v1242 = vadd.f32 %v389, %v1241
      %v1243 = vpop.f32.mrb[0].mxu0
      %v1244 = vadd.f32 %v393, %v1243
      %1245 = vmatprep.mubr.bf16.mxu0 %v835
      %1246 = vmatmul.mubr.bf16.gmra.mrb[0].mxu0 %v548
      %v1247 = vpop.f32.mrb[0].mxu0
      %v1248 = vadd.f32 %v389, %v1247
      %v1249 = vpop.f32.mrb[0].mxu0
      %v1250 = vadd.f32 %v393, %v1249
      %v1251 = vpop.f32.mrb[0].mxu0
      %v1252 = vadd.f32 %v389, %v1251
      %v1253 = vpop.f32.mrb[0].mxu0
      %v1254 = vadd.f32 %v393, %v1253
      %1255 = vmatprep.mubr.bf16.mxu0 %v838
      %1256 = vmatmul.mubr.bf16.gmra.mrb[0].mxu0 %v550
      %v1257 = vpop.f32.mrb[0].mxu0
      %v1258 = vadd.f32 %v389, %v1257
      %v1259 = vpop.f32.mrb[0].mxu0
      %v1260 = vadd.f32 %v393, %v1259
      %v1261 = vpop.f32.mrb[0].mxu0
      %v1262 = vadd.f32 %v389, %v1261
      %v1263 = vpop.f32.mrb[0].mxu0
      %v1264 = vadd.f32 %v393, %v1263
      %1265 = vmatprep.mubr.bf16.mxu0 %v841
      %1266 = vmatmul.mubr.bf16.gmra.mrb[0].mxu0 %v552
      %v1267 = vpop.f32.mrb[0].mxu0
      %v1268 = vadd.f32 %v389, %v1267
      %v1269 = vpop.f32.mrb[0].mxu0
      %v1270 = vadd.f32 %v393, %v1269
      %v1271 = vpop.f32.mrb[0].mxu0
      %v1272 = vadd.f32 %v389, %v1271
      %v1273 = vpop.f32.mrb[0].mxu0
      %v1274 = vadd.f32 %v393, %v1273
      %1275 = vmatprep.mubr.bf16.mxu0 %v844
      %1276 = vmatmul.mubr.bf16.gmra.mrb[0].mxu0 %v554
      %v1277 = vpop.f32.mrb[0].mxu0
      %v1278 = vadd.f32 %v389, %v1277
      %v1279 = vpop.f32.mrb[0].mxu0
      %v1280 = vadd.f32 %v393, %v1279
      %v1281 = vpop.f32.mrb[0].mxu0
      %v1282 = vadd.f32 %v389, %v1281
      %v1283 = vpop.f32.mrb[0].mxu0
      %v1284 = vadd.f32 %v393, %v1283
      %1285 = vmatprep.mubr.bf16.mxu0 %v847
      %1286 = vmatmul.mubr.bf16.gmra.mrb[0].mxu0 %v556
      %v1287 = vpop.f32.mrb[0].mxu0
      %v1288 = vadd.f32 %v389, %v1287
      %v1289 = vpop.f32.mrb[0].mxu0
      %v1290 = vadd.f32 %v393, %v1289
      %v1291 = vpop.f32.mrb[0].mxu0
      %v1292 = vadd.f32 %v389, %v1291
      %v1293 = vpop.f32.mrb[0].mxu0
      %v1294 = vadd.f32 %v393, %v1293
      %1295 = vmatprep.mubr.bf16.mxu0 %v850
      %1296 = vmatmul.mubr.bf16.gmra.mrb[0].mxu0 %v558
      %v1297 = vpop.f32.mrb[0].mxu0
      %v1298 = vadd.f32 %v389, %v1297
      %v1299 = vpop.f32.mrb[0].mxu0
      %v1300 = vadd.f32 %v393, %v1299
      %v1301 = vpop.f32.mrb[0].mxu0
      %v1302 = vadd.f32 %v389, %v1301
      %v1303 = vpop.f32.mrb[0].mxu0
      %v1304 = vadd.f32 %v393, %v1303
      %1305 = vmatprep.mubr.bf16.mxu0 %v853
      %1306 = vmatmul.mubr.bf16.gmra.mrb[0].mxu0 %v560
      %v1307 = vpop.f32.mrb[0].mxu0
      %v1308 = vadd.f32 %v389, %v1307
      %v1309 = vpop.f32.mrb[0].mxu0
      %v1310 = vadd.f32 %v393, %v1309
      %v1311 = vpop.f32.mrb[0].mxu0
      %v1312 = vadd.f32 %v389, %v1311
      %v1313 = vpop.f32.mrb[0].mxu0
      %v1314 = vadd.f32 %v393, %v1313
      %1315 = vmatprep.mubr.bf16.mxu0 %v856
      %1316 = vmatmul.mubr.bf16.gmra.mrb[0].mxu0 %v562
      %v1317 = vpop.f32.mrb[0].mxu0
      %v1318 = vadd.f32 %v389, %v1317
      %v1319 = vpop.f32.mrb[0].mxu0
      %v1320 = vadd.f32 %v393, %v1319
      %v1321 = vpop.f32.mrb[0].mxu0
      %v1322 = vadd.f32 %v389, %v1321
      %v1323 = vpop.f32.mrb[0].mxu0
      %v1324 = vadd.f32 %v393, %v1323
      %1325 = vmatprep.mubr.bf16.mxu0 %v859
      %1326 = vmatmul.mubr.bf16.gmra.mrb[0].mxu0 %v564
      %v1327 = vpop.f32.mrb[0].mxu0
      %v1328 = vadd.f32 %v389, %v1327
      %v1329 = vpop.f32.mrb[0].mxu0
      %v1330 = vadd.f32 %v393, %v1329
      %v1331 = vpop.f32.mrb[0].mxu0
      %v1332 = vadd.f32 %v389, %v1331
      %v1333 = vpop.f32.mrb[0].mxu0
      %v1334 = vadd.f32 %v393, %v1333
      %1335 = vmatprep.mubr.bf16.mxu0 %v862
      %1336 = vmatmul.mubr.bf16.gmra.mrb[0].mxu0 %v566
      %v1337 = vpop.f32.mrb[0].mxu0
      %v1338 = vadd.f32 %v389, %v1337
      %v1339 = vpop.f32.mrb[0].mxu0
      %v1340 = vadd.f32 %v393, %v1339
      %v1341 = vpop.f32.mrb[0].mxu0
      %v1342 = vadd.f32 %v389, %v1341
      %v1343 = vpop.f32.mrb[0].mxu0
      %v1344 = vadd.f32 %v393, %v1343
      %1345 = vmatprep.mubr.bf16.mxu0 %v865
      %1346 = vmatmul.mubr.bf16.gmra.mrb[0].mxu0 %v568
      %v1347 = vpop.f32.mrb[0].mxu0
      %v1348 = vadd.f32 %v389, %v1347
      %v1349 = vpop.f32.mrb[0].mxu0
      %v1350 = vadd.f32 %v393, %v1349
      %v1351 = vpop.f32.mrb[0].mxu0
      %v1352 = vadd.f32 %v389, %v1351
      %v1353 = vpop.f32.mrb[0].mxu0
      %v1354 = vadd.f32 %v393, %v1353
      %1355 = vmatprep.mubr.bf16.mxu0 %v868
      %1356 = vmatmul.mubr.bf16.gmra.mrb[0].mxu0 %v570
      %v1357 = vpop.f32.mrb[0].mxu0
      %v1358 = vadd.f32 %v389, %v1357
      %v1359 = vpop.f32.mrb[0].mxu0
      %v1360 = vadd.f32 %v393, %v1359
      %v1361 = vpop.f32.mrb[0].mxu0
      %v1362 = vadd.f32 %v389, %v1361
      %v1363 = vpop.f32.mrb[0].mxu0
      %v1364 = vadd.f32 %v393, %v1363
      %1365 = vmatprep.mubr.bf16.mxu0 %v871
      %1366 = vmatmul.mubr.bf16.gmra.mrb[0].mxu0 %v572
      %v1367 = vpop.f32.mrb[0].mxu0
      %v1368 = vadd.f32 %v389, %v1367
      %v1369 = vpop.f32.mrb[0].mxu0
      %v1370 = vadd.f32 %v393, %v1369
      %v1371 = vpop.f32.mrb[0].mxu0
      %v1372 = vadd.f32 %v389, %v1371
      %v1373 = vpop.f32.mrb[0].mxu0
      %v1374 = vadd.f32 %v393, %v1373
      %1375 = vmatprep.mubr.bf16.mxu0 %v874
      %1376 = vmatmul.mubr.bf16.gmra.mrb[0].mxu0 %v574
      %v1377 = vpop.f32.mrb[0].mxu0
      %v1378 = vadd.f32 %v389, %v1377
      %v1379 = vpop.f32.mrb[0].mxu0
      %v1380 = vadd.f32 %v393, %v1379
      %v1381 = vpop.f32.mrb[0].mxu0
      %v1382 = vadd.f32 %v389, %v1381
      %v1383 = vpop.f32.mrb[0].mxu0
      %v1384 = vadd.f32 %v393, %v1383
      %1385 = vmatprep.mubr.bf16.mxu0 %v877
      %1386 = vmatmul.mubr.bf16.gmra.mrb[0].mxu0 %v576
      %v1387 = vpop.f32.mrb[0].mxu0
      %v1388 = vadd.f32 %v389, %v1387
      %v1389 = vpop.f32.mrb[0].mxu0
      %v1390 = vadd.f32 %v393, %v1389
      %v1391 = vpop.f32.mrb[0].mxu0
      %v1392 = vadd.f32 %v389, %v1391
      %v1393 = vpop.f32.mrb[0].mxu0
      %v1394 = vadd.f32 %v393, %v1393
      %1395 = vmatprep.mubr.bf16.mxu0 %v880
      %1396 = vmatmul.mubr.bf16.gmra.mrb[0].mxu0 %v578
      %v1397 = vpop.f32.mrb[0].mxu0
      %v1398 = vadd.f32 %v389, %v1397
      %v1399 = vpop.f32.mrb[0].mxu0
      %v1400 = vadd.f32 %v393, %v1399
      %v1401 = vpop.f32.mrb[0].mxu0
      %v1402 = vadd.f32 %v389, %v1401
      %v1403 = vpop.f32.mrb[0].mxu0
      %v1404 = vadd.f32 %v393, %v1403
      %1405 = vmatprep.mubr.bf16.mxu0 %v883
      %1406 = vmatmul.mubr.bf16.gmra.mrb[0].mxu0 %v580
      %v1407 = vpop.f32.mrb[0].mxu0
      %v1408 = vadd.f32 %v389, %v1407
      %v1409 = vpop.f32.mrb[0].mxu0
      %v1410 = vadd.f32 %v393, %v1409
      %v1411 = vpop.f32.mrb[0].mxu0
      %v1412 = vadd.f32 %v389, %v1411
      %v1413 = vpop.f32.mrb[0].mxu0
      %v1414 = vadd.f32 %v393, %v1413
      %1415 = vmatprep.mubr.bf16.mxu0 %v886
      %1416 = vmatmul.mubr.bf16.gmra.mrb[0].mxu0 %v582
      %v1417 = vpop.f32.mrb[0].mxu0
      %v1418 = vadd.f32 %v389, %v1417
      %v1419 = vpop.f32.mrb[0].mxu0
      %v1420 = vadd.f32 %v393, %v1419
      %v1421 = vpop.f32.mrb[0].mxu0
      %v1422 = vadd.f32 %v389, %v1421
      %v1423 = vpop.f32.mrb[0].mxu0
      %v1424 = vadd.f32 %v393, %v1423
      %1425 = vmatprep.mubr.bf16.mxu0 %v889
      %1426 = vmatmul.mubr.bf16.gmra.mrb[0].mxu0 %v584
      %v1427 = vpop.f32.mrb[0].mxu0
      %v1428 = vadd.f32 %v389, %v1427
      %v1429 = vpop.f32.mrb[0].mxu0
      %v1430 = vadd.f32 %v393, %v1429
      %v1431 = vpop.f32.mrb[0].mxu0
      %v1432 = vadd.f32 %v389, %v1431
      %v1433 = vpop.f32.mrb[0].mxu0
      %v1434 = vadd.f32 %v393, %v1433
      %1435 = vmatprep.mubr.bf16.mxu0 %v892
      %1436 = vmatmul.mubr.bf16.gmra.mrb[0].mxu0 %v586
      %v1437 = vpop.f32.mrb[0].mxu0
      %v1438 = vadd.f32 %v389, %v1437
      %v1439 = vpop.f32.mrb[0].mxu0
      %v1440 = vadd.f32 %v393, %v1439
      %v1441 = vpop.f32.mrb[0].mxu0
      %v1442 = vadd.f32 %v389, %v1441
      %v1443 = vpop.f32.mrb[0].mxu0
      %v1444 = vadd.f32 %v393, %v1443
      %1445 = vmatprep.mubr.bf16.mxu0 %v895
      %1446 = vmatmul.mubr.bf16.gmra.mrb[0].mxu0 %v588
      %v1447 = vpop.f32.mrb[0].mxu0
      %v1448 = vadd.f32 %v389, %v1447
      %v1449 = vpop.f32.mrb[0].mxu0
      %v1450 = vadd.f32 %v393, %v1449
      %v1451 = vpop.f32.mrb[0].mxu0
      %v1452 = vadd.f32 %v389, %v1451
      %v1453 = vpop.f32.mrb[0].mxu0
      %v1454 = vadd.f32 %v393, %v1453
      %1455 = vdwg.mxu0
      %v1456 = vmax.f32 %v945, 0.0
      %v1457 = vmax.f32 %v947, 0.0
      %v1458 = vmax.f32 %v1218, 0.0
      %v1459 = vmax.f32 %v1220, 0.0
      %v1460 = vmax.f32 %v949, 0.0
      %v1461 = vmax.f32 %v951, 0.0
      %v1462 = vmax.f32 %v1222, 0.0
      %v1463 = vmax.f32 %v1224, 0.0
      %v1464 = vmax.f32 %v955, 0.0
      %v1465 = vmax.f32 %v957, 0.0
      %v1466 = vmax.f32 %v1228, 0.0
      %v1467 = vmax.f32 %v1230, 0.0
      %v1468 = vmax.f32 %v959, 0.0
      %v1469 = vmax.f32 %v961, 0.0
      %v1470 = vmax.f32 %v1232, 0.0
      %v1471 = vmax.f32 %v1234, 0.0
      %v1472 = vmax.f32 %v965, 0.0
      %v1473 = vmax.f32 %v967, 0.0
      %v1474 = vmax.f32 %v1238, 0.0
      %v1475 = vmax.f32 %v1240, 0.0
      %v1476 = vmax.f32 %v969, 0.0
      %v1477 = vmax.f32 %v971, 0.0
      %v1478 = vmax.f32 %v1242, 0.0
      %v1479 = vmax.f32 %v1244, 0.0
      %v1480 = vmax.f32 %v975, 0.0
      %v1481 = vmax.f32 %v977, 0.0
      %v1482 = vmax.f32 %v1248, 0.0
      %v1483 = vmax.f32 %v1250, 0.0
      %v1484 = vmax.f32 %v979, 0.0
      %v1485 = vmax.f32 %v981, 0.0
      %v1486 = vmax.f32 %v1252, 0.0
      %v1487 = vmax.f32 %v1254, 0.0
      %v1488 = vmax.f32 %v985, 0.0
      %v1489 = vmax.f32 %v987, 0.0
      %v1490 = vmax.f32 %v1258, 0.0
      %v1491 = vmax.f32 %v1260, 0.0
      %v1492 = vmax.f32 %v989, 0.0
      %v1493 = vmax.f32 %v991, 0.0
      %v1494 = vmax.f32 %v1262, 0.0
      %v1495 = vmax.f32 %v1264, 0.0
      %v1496 = vmax.f32 %v995, 0.0
      %v1497 = vmax.f32 %v997, 0.0
      %v1498 = vmax.f32 %v1268, 0.0
      %v1499 = vmax.f32 %v1270, 0.0
      %v1500 = vmax.f32 %v999, 0.0
      %v1501 = vmax.f32 %v1001, 0.0
      %v1502 = vmax.f32 %v1272, 0.0
      %v1503 = vmax.f32 %v1274, 0.0
      %v1504 = vmax.f32 %v1005, 0.0
      %v1505 = vmax.f32 %v1007, 0.0
      %v1506 = vmax.f32 %v1278, 0.0
      %v1507 = vmax.f32 %v1280, 0.0
      %v1508 = vmax.f32 %v1009, 0.0
      %v1509 = vmax.f32 %v1011, 0.0
      %v1510 = vmax.f32 %v1282, 0.0
      %v1511 = vmax.f32 %v1284, 0.0
      %v1512 = vmax.f32 %v1015, 0.0
      %v1513 = vmax.f32 %v1017, 0.0
      %v1514 = vmax.f32 %v1288, 0.0
      %v1515 = vmax.f32 %v1290, 0.0
      %v1516 = vmax.f32 %v1019, 0.0
      %v1517 = vmax.f32 %v1021, 0.0
      %v1518 = vmax.f32 %v1292, 0.0
      %v1519 = vmax.f32 %v1294, 0.0
      %v1520 = vmax.f32 %v1025, 0.0
      %v1521 = vmax.f32 %v1027, 0.0
      %v1522 = vmax.f32 %v1298, 0.0
      %v1523 = vmax.f32 %v1300, 0.0
      %v1524 = vmax.f32 %v1029, 0.0
      %v1525 = vmax.f32 %v1031, 0.0
      %v1526 = vmax.f32 %v1302, 0.0
      %v1527 = vmax.f32 %v1304, 0.0
      %v1528 = vmax.f32 %v1035, 0.0
      %v1529 = vmax.f32 %v1037, 0.0
      %v1530 = vmax.f32 %v1308, 0.0
      %v1531 = vmax.f32 %v1310, 0.0
      %v1532 = vmax.f32 %v1039, 0.0
      %v1533 = vmax.f32 %v1041, 0.0
      %v1534 = vmax.f32 %v1312, 0.0
      %v1535 = vmax.f32 %v1314, 0.0
      %v1536 = vmax.f32 %v1045, 0.0
      %v1537 = vmax.f32 %v1047, 0.0
      %v1538 = vmax.f32 %v1318, 0.0
      %v1539 = vmax.f32 %v1320, 0.0
      %v1540 = vmax.f32 %v1049, 0.0
      %v1541 = vmax.f32 %v1051, 0.0
      %v1542 = vmax.f32 %v1322, 0.0
      %v1543 = vmax.f32 %v1324, 0.0
      %v1544 = vmax.f32 %v1055, 0.0
      %v1545 = vmax.f32 %v1057, 0.0
      %v1546 = vmax.f32 %v1328, 0.0
      %v1547 = vmax.f32 %v1330, 0.0
      %v1548 = vmax.f32 %v1059, 0.0
      %v1549 = vmax.f32 %v1061, 0.0
      %v1550 = vmax.f32 %v1332, 0.0
      %v1551 = vmax.f32 %v1334, 0.0
      %v1552 = vmax.f32 %v1065, 0.0
      %v1553 = vmax.f32 %v1067, 0.0
      %v1554 = vmax.f32 %v1338, 0.0
      %v1555 = vmax.f32 %v1340, 0.0
      %v1556 = vmax.f32 %v1069, 0.0
      %v1557 = vmax.f32 %v1071, 0.0
      %v1558 = vmax.f32 %v1342, 0.0
      %v1559 = vmax.f32 %v1344, 0.0
      %v1560 = vmax.f32 %v1075, 0.0
      %v1561 = vmax.f32 %v1077, 0.0
      %v1562 = vmax.f32 %v1348, 0.0
      %v1563 = vmax.f32 %v1350, 0.0
      %v1564 = vmax.f32 %v1079, 0.0
      %v1565 = vmax.f32 %v1081, 0.0
      %v1566 = vmax.f32 %v1352, 0.0
      %v1567 = vmax.f32 %v1354, 0.0
      %v1568 = vmax.f32 %v1085, 0.0
      %v1569 = vmax.f32 %v1087, 0.0
      %v1570 = vmax.f32 %v1358, 0.0
      %v1571 = vmax.f32 %v1360, 0.0
      %v1572 = vmax.f32 %v1089, 0.0
      %v1573 = vmax.f32 %v1091, 0.0
      %v1574 = vmax.f32 %v1362, 0.0
      %v1575 = vmax.f32 %v1364, 0.0
      %v1576 = vmax.f32 %v1095, 0.0
      %v1577 = vmax.f32 %v1097, 0.0
      %v1578 = vmax.f32 %v1368, 0.0
      %v1579 = vmax.f32 %v1370, 0.0
      %v1580 = vmax.f32 %v1099, 0.0
      %v1581 = vmax.f32 %v1101, 0.0
      %v1582 = vmax.f32 %v1372, 0.0
      %v1583 = vmax.f32 %v1374, 0.0
      %v1584 = vmax.f32 %v1105, 0.0
      %v1585 = vmax.f32 %v1107, 0.0
      %v1586 = vmax.f32 %v1378, 0.0
      %v1587 = vmax.f32 %v1380, 0.0
      %v1588 = vmax.f32 %v1109, 0.0
      %v1589 = vmax.f32 %v1111, 0.0
      %v1590 = vmax.f32 %v1382, 0.0
      %v1591 = vmax.f32 %v1384, 0.0
      %v1592 = vmax.f32 %v1115, 0.0
      %v1593 = vmax.f32 %v1117, 0.0
      %v1594 = vmax.f32 %v1388, 0.0
      %v1595 = vmax.f32 %v1390, 0.0
      %v1596 = vmax.f32 %v1119, 0.0
      %v1597 = vmax.f32 %v1121, 0.0
      %v1598 = vmax.f32 %v1392, 0.0
      %v1599 = vmax.f32 %v1394, 0.0
      %v1600 = vmax.f32 %v1125, 0.0
      %v1601 = vmax.f32 %v1127, 0.0
      %v1602 = vmax.f32 %v1398, 0.0
      %v1603 = vmax.f32 %v1400, 0.0
      %v1604 = vmax.f32 %v1129, 0.0
      %v1605 = vmax.f32 %v1131, 0.0
      %v1606 = vmax.f32 %v1402, 0.0
      %v1607 = vmax.f32 %v1404, 0.0
      %v1608 = vmax.f32 %v1135, 0.0
      %v1609 = vmax.f32 %v1137, 0.0
      %v1610 = vmax.f32 %v1408, 0.0
      %v1611 = vmax.f32 %v1410, 0.0
      %v1612 = vmax.f32 %v1139, 0.0
      %v1613 = vmax.f32 %v1141, 0.0
      %v1614 = vmax.f32 %v1412, 0.0
      %v1615 = vmax.f32 %v1414, 0.0
      %v1616 = vmax.f32 %v1145, 0.0
      %v1617 = vmax.f32 %v1147, 0.0
      %v1618 = vmax.f32 %v1418, 0.0
      %v1619 = vmax.f32 %v1420, 0.0
      %v1620 = vmax.f32 %v1149, 0.0
      %v1621 = vmax.f32 %v1151, 0.0
      %v1622 = vmax.f32 %v1422, 0.0
      %v1623 = vmax.f32 %v1424, 0.0
      %v1624 = vmax.f32 %v1155, 0.0
      %v1625 = vmax.f32 %v1157, 0.0
      %v1626 = vmax.f32 %v1428, 0.0
      %v1627 = vmax.f32 %v1430, 0.0
      %v1628 = vmax.f32 %v1159, 0.0
      %v1629 = vmax.f32 %v1161, 0.0
      %v1630 = vmax.f32 %v1432, 0.0
      %v1631 = vmax.f32 %v1434, 0.0
      %v1632 = vmax.f32 %v1165, 0.0
      %v1633 = vmax.f32 %v1167, 0.0
      %v1634 = vmax.f32 %v1438, 0.0
      %v1635 = vmax.f32 %v1440, 0.0
      %v1636 = vmax.f32 %v1169, 0.0
      %v1637 = vmax.f32 %v1171, 0.0
      %v1638 = vmax.f32 %v1442, 0.0
      %v1639 = vmax.f32 %v1444, 0.0
      %v1640 = vmax.f32 %v1175, 0.0
      %v1641 = vmax.f32 %v1177, 0.0
      %v1642 = vmax.f32 %v1448, 0.0
      %v1643 = vmax.f32 %v1450, 0.0
      %v1644 = vmax.f32 %v1179, 0.0
      %v1645 = vmax.f32 %v1181, 0.0
      %v1646 = vmax.f32 %v1452, 0.0
      %v1647 = vmax.f32 %v1454, 0.0
      %v1648 = vmax.f32 %v1456, %v1457
      %v1649 = vmax.f32 %v1460, %v1461
      %v1650 = vmax.f32 %v1464, %v1465
      %v1651 = vmax.f32 %v1468, %v1469
      %v1652 = vmax.f32 %v1472, %v1473
      %v1653 = vmax.f32 %v1476, %v1477
      %v1654 = vmax.f32 %v1480, %v1481
      %v1655 = vmax.f32 %v1484, %v1485
      %v1656 = vmax.f32 %v1488, %v1489
      %v1657 = vmax.f32 %v1492, %v1493
      %v1658 = vmax.f32 %v1496, %v1497
      %v1659 = vmax.f32 %v1500, %v1501
      %v1660 = vmax.f32 %v1504, %v1505
      %v1661 = vmax.f32 %v1508, %v1509
      %v1662 = vmax.f32 %v1512, %v1513
      %v1663 = vmax.f32 %v1516, %v1517
      %v1664 = vmax.f32 %v1520, %v1521
      %v1665 = vmax.f32 %v1524, %v1525
      %v1666 = vmax.f32 %v1528, %v1529
      %v1667 = vmax.f32 %v1532, %v1533
      %v1668 = vmax.f32 %v1536, %v1537
      %v1669 = vmax.f32 %v1540, %v1541
      %v1670 = vmax.f32 %v1544, %v1545
      %v1671 = vmax.f32 %v1548, %v1549
      %v1672 = vmax.f32 %v1552, %v1553
      %v1673 = vmax.f32 %v1556, %v1557
      %v1674 = vmax.f32 %v1560, %v1561
      %v1675 = vmax.f32 %v1564, %v1565
      %v1676 = vmax.f32 %v1568, %v1569
      %v1677 = vmax.f32 %v1572, %v1573
      %v1678 = vmax.f32 %v1576, %v1577
      %v1679 = vmax.f32 %v1580, %v1581
      %v1680 = vmax.f32 %v1584, %v1585
      %v1681 = vmax.f32 %v1588, %v1589
      %v1682 = vmax.f32 %v1592, %v1593
      %v1683 = vmax.f32 %v1596, %v1597
      %v1684 = vmax.f32 %v1600, %v1601
      %v1685 = vmax.f32 %v1604, %v1605
      %v1686 = vmax.f32 %v1608, %v1609
      %v1687 = vmax.f32 %v1612, %v1613
      %v1688 = vmax.f32 %v1616, %v1617
      %v1689 = vmax.f32 %v1620, %v1621
      %v1690 = vmax.f32 %v1624, %v1625
      %v1691 = vmax.f32 %v1628, %v1629
      %v1692 = vmax.f32 %v1632, %v1633
      %v1693 = vmax.f32 %v1636, %v1637
      %v1694 = vmax.f32 %v1640, %v1641
      %v1695 = vmax.f32 %v1644, %v1645
      %v1696 = vmax.f32 %v1458, %v1459
      %v1697 = vmax.f32 %v1462, %v1463
      %v1698 = vmax.f32 %v1466, %v1467
      %v1699 = vmax.f32 %v1470, %v1471
      %v1700 = vmax.f32 %v1474, %v1475
      %v1701 = vmax.f32 %v1478, %v1479
      %v1702 = vmax.f32 %v1482, %v1483
      %v1703 = vmax.f32 %v1486, %v1487
      %v1704 = vmax.f32 %v1490, %v1491
      %v1705 = vmax.f32 %v1494, %v1495
      %v1706 = vmax.f32 %v1498, %v1499
      %v1707 = vmax.f32 %v1502, %v1503
      %v1708 = vmax.f32 %v1506, %v1507
      %v1709 = vmax.f32 %v1510, %v1511
      %v1710 = vmax.f32 %v1514, %v1515
      %v1711 = vmax.f32 %v1518, %v1519
      %v1712 = vmax.f32 %v1522, %v1523
      %v1713 = vmax.f32 %v1526, %v1527
      %v1714 = vmax.f32 %v1530, %v1531
      %v1715 = vmax.f32 %v1534, %v1535
      %v1716 = vmax.f32 %v1538, %v1539
      %v1717 = vmax.f32 %v1542, %v1543
      %v1718 = vmax.f32 %v1546, %v1547
      %v1719 = vmax.f32 %v1550, %v1551
      %v1720 = vmax.f32 %v1554, %v1555
      %v1721 = vmax.f32 %v1558, %v1559
      %v1722 = vmax.f32 %v1562, %v1563
      %v1723 = vmax.f32 %v1566, %v1567
      %v1724 = vmax.f32 %v1570, %v1571
      %v1725 = vmax.f32 %v1574, %v1575
      %v1726 = vmax.f32 %v1578, %v1579
      %v1727 = vmax.f32 %v1582, %v1583
      %v1728 = vmax.f32 %v1586, %v1587
      %v1729 = vmax.f32 %v1590, %v1591
      %v1730 = vmax.f32 %v1594, %v1595
      %v1731 = vmax.f32 %v1598, %v1599
      %v1732 = vmax.f32 %v1602, %v1603
      %v1733 = vmax.f32 %v1606, %v1607
      %v1734 = vmax.f32 %v1610, %v1611
      %v1735 = vmax.f32 %v1614, %v1615
      %v1736 = vmax.f32 %v1618, %v1619
      %v1737 = vmax.f32 %v1622, %v1623
      %v1738 = vmax.f32 %v1626, %v1627
      %v1739 = vmax.f32 %v1630, %v1631
      %v1740 = vmax.f32 %v1634, %v1635
      %v1741 = vmax.f32 %v1638, %v1639
      %v1742 = vmax.f32 %v1642, %v1643
      %v1743 = vmax.f32 %v1646, %v1647
      %v1744 = vmax.f32 %v1648, %v1696
      %v1745 = vmax.f32 %v1649, %v1697
      %v1746 = vmax.f32 %v1650, %v1698
      %v1747 = vmax.f32 %v1651, %v1699
      %v1748 = vmax.f32 %v1652, %v1700
      %v1749 = vmax.f32 %v1653, %v1701
      %v1750 = vmax.f32 %v1654, %v1702
      %v1751 = vmax.f32 %v1655, %v1703
      %v1752 = vmax.f32 %v1656, %v1704
      %v1753 = vmax.f32 %v1657, %v1705
      %v1754 = vmax.f32 %v1658, %v1706
      %v1755 = vmax.f32 %v1659, %v1707
      %v1756 = vmax.f32 %v1660, %v1708
      %v1757 = vmax.f32 %v1661, %v1709
      %v1758 = vmax.f32 %v1662, %v1710
      %v1759 = vmax.f32 %v1663, %v1711
      %v1760 = vmax.f32 %v1664, %v1712
      %v1761 = vmax.f32 %v1665, %v1713
      %v1762 = vmax.f32 %v1666, %v1714
      %v1763 = vmax.f32 %v1667, %v1715
      %v1764 = vmax.f32 %v1668, %v1716
      %v1765 = vmax.f32 %v1669, %v1717
      %v1766 = vmax.f32 %v1670, %v1718
      %v1767 = vmax.f32 %v1671, %v1719
      %v1768 = vmax.f32 %v1672, %v1720
      %v1769 = vmax.f32 %v1673, %v1721
      %v1770 = vmax.f32 %v1674, %v1722
      %v1771 = vmax.f32 %v1675, %v1723
      %v1772 = vmax.f32 %v1676, %v1724
      %v1773 = vmax.f32 %v1677, %v1725
      %v1774 = vmax.f32 %v1678, %v1726
      %v1775 = vmax.f32 %v1679, %v1727
      %v1776 = vmax.f32 %v1680, %v1728
      %v1777 = vmax.f32 %v1681, %v1729
      %v1778 = vmax.f32 %v1682, %v1730
      %v1779 = vmax.f32 %v1683, %v1731
      %v1780 = vmax.f32 %v1684, %v1732
      %v1781 = vmax.f32 %v1685, %v1733
      %v1782 = vmax.f32 %v1686, %v1734
      %v1783 = vmax.f32 %v1687, %v1735
      %v1784 = vmax.f32 %v1688, %v1736
      %v1785 = vmax.f32 %v1689, %v1737
      %v1786 = vmax.f32 %v1690, %v1738
      %v1787 = vmax.f32 %v1691, %v1739
      %v1788 = vmax.f32 %v1692, %v1740
      %v1789 = vmax.f32 %v1693, %v1741
      %v1790 = vmax.f32 %v1694, %v1742
      %v1791 = vmax.f32 %v1695, %v1743
      %v1792 = vpack.c.bf16 %v1745, %v1744
      %v1793 = vpack.c.bf16 %v1769, %v1768
      %v1794 = vpack.c.bf16 %v1749, %v1748
      %v1795 = vpack.c.bf16 %v1773, %v1772
      %v1796 = vpack.c.bf16 %v1753, %v1752
      %v1797 = vpack.c.bf16 %v1777, %v1776
      %v1798 = vpack.c.bf16 %v1747, %v1746
      %v1799 = vpack.c.bf16 %v1771, %v1770
      %v1800 = vpack.c.bf16 %v1751, %v1750
      %v1801 = vpack.c.bf16 %v1775, %v1774
      %v1802 = vpack.c.bf16 %v1755, %v1754
      %v1803 = vpack.c.bf16 %v1779, %v1778
      %v1804 = vpack.c.bf16 %v1757, %v1756
      %v1805 = vpack.c.bf16 %v1781, %v1780
      %v1806 = vpack.c.bf16 %v1759, %v1758
      %v1807 = vpack.c.bf16 %v1783, %v1782
      %v1808 = vpack.c.bf16 %v1761, %v1760
      %v1809 = vpack.c.bf16 %v1785, %v1784
      %v1810 = vpack.c.bf16 %v1763, %v1762
      %v1811 = vpack.c.bf16 %v1787, %v1786
      %v1812 = vpack.c.bf16 %v1765, %v1764
      %v1813 = vpack.c.bf16 %v1789, %v1788
      %v1814 = vpack.c.bf16 %v1767, %v1766
      %v1815 = vpack.c.bf16 %v1791, %v1790
      %v1816 = vld [vmem:[%s3] sm:$0xff]
      %v1817 = vld [vmem:[%s3 + $0x8] sm:$0xff]
      %v1818 = vld [vmem:[%s3 + $0x10] sm:$0xff]
      %v1819 = vld [vmem:[%s3 + $0x18] sm:$0xff]
      %v1820 = vld [vmem:[%s3 + $0x20] sm:$0xff]
      %v1821 = vld [vmem:[%s3 + $0x28] sm:$0xff]
      %v1822 = vld [vmem:[%s3 + $0x30] sm:$0xff]
      %v1823 = vld [vmem:[%s3 + $0x38] sm:$0xff]
      %v1824 = vld [vmem:[%s3 + $0x40] sm:$0xff]
      %v1825 = vld [vmem:[%s3 + $0x48] sm:$0xff]
      %v1826 = vld [vmem:[%s3 + $0x50] sm:$0xff]
      %v1827 = vld [vmem:[%s3 + $0x58] sm:$0xff]
      %v1828 = vld [vmem:[%s3 + $0x60] sm:$0xff]
      %v1829 = vld [vmem:[%s3 + $0x68] sm:$0xff]
      %v1830 = vld [vmem:[%s3 + $0x70] sm:$0xff]
      %v1831 = vld [vmem:[%s3 + $0x78] sm:$0xff]
      %v1832 = vld [vmem:[%s3 + $0x80] sm:$0xff]
      %v1833 = vld [vmem:[%s3 + $0x88] sm:$0xff]
      %v1834 = vld [vmem:[%s3 + $0x90] sm:$0xff]
      %v1835 = vld [vmem:[%s3 + $0x98] sm:$0xff]
      %v1836 = vld [vmem:[%s3 + $0xa0] sm:$0xff]
      %v1837 = vld [vmem:[%s3 + $0xa8] sm:$0xff]
      %v1838 = vld [vmem:[%s3 + $0xb0] sm:$0xff]
      %v1839 = vld [vmem:[%s3 + $0xb8] sm:$0xff]
      %v1840 = vld [vmem:[%s3 + $0xc0] sm:$0xff]
      %v1841 = vld [vmem:[%s3 + $0xc8] sm:$0xff]
      %v1842 = vld [vmem:[%s3 + $0xd0] sm:$0xff]
      %v1843 = vld [vmem:[%s3 + $0xd8] sm:$0xff]
      %v1844 = vld [vmem:[%s3 + $0xe0] sm:$0xff]
      %v1845 = vld [vmem:[%s3 + $0xe8] sm:$0xff]
      %v1846 = vld [vmem:[%s3 + $0xf0] sm:$0xff]
      %v1847 = vld [vmem:[%s3 + $0xf8] sm:$0xff]
      %v1848 = vld [vmem:[%s3 + $0x100] sm:$0xff]
      %v1849 = vld [vmem:[%s3 + $0x108] sm:$0xff]
      %v1850 = vld [vmem:[%s3 + $0x110] sm:$0xff]
      %v1851 = vld [vmem:[%s3 + $0x118] sm:$0xff]
      %v1852 = vld [vmem:[%s3 + $0x120] sm:$0xff]
      %v1853 = vld [vmem:[%s3 + $0x128] sm:$0xff]
      %v1854 = vld [vmem:[%s3 + $0x130] sm:$0xff]
      %v1855 = vld [vmem:[%s3 + $0x138] sm:$0xff]
      %v1856 = vld [vmem:[%s3 + $0x140] sm:$0xff]
      %v1857 = vld [vmem:[%s3 + $0x148] sm:$0xff]
      %v1858 = vld [vmem:[%s3 + $0x150] sm:$0xff]
      %v1859 = vld [vmem:[%s3 + $0x158] sm:$0xff]
      %v1860 = vld [vmem:[%s3 + $0x160] sm:$0xff]
      %v1861 = vld [vmem:[%s3 + $0x168] sm:$0xff]
      %v1862 = vld [vmem:[%s3 + $0x170] sm:$0xff]
      %v1863 = vld [vmem:[%s3 + $0x178] sm:$0xff]
      %v1864 = vld [vmem:[%s3 + $0x180] sm:$0xff]
      %v1865 = vld [vmem:[%s3 + $0x188] sm:$0xff]
      %v1866 = vld [vmem:[%s3 + $0x190] sm:$0xff]
      %v1867 = vld [vmem:[%s3 + $0x198] sm:$0xff]
      %v1868 = vld [vmem:[%s3 + $0x1a0] sm:$0xff]
      %v1869 = vld [vmem:[%s3 + $0x1a8] sm:$0xff]
      %v1870 = vld [vmem:[%s3 + $0x1b0] sm:$0xff]
      %v1871 = vld [vmem:[%s3 + $0x1b8] sm:$0xff]
      %v1872 = vld [vmem:[%s3 + $0x1c0] sm:$0xff]
      %v1873 = vld [vmem:[%s3 + $0x1c8] sm:$0xff]
      %v1874 = vld [vmem:[%s3 + $0x1d0] sm:$0xff]
      %v1875 = vld [vmem:[%s3 + $0x1d8] sm:$0xff]
      %v1876 = vld [vmem:[%s3 + $0x1e0] sm:$0xff]
      %v1877 = vld [vmem:[%s3 + $0x1e8] sm:$0xff]
      %v1878 = vld [vmem:[%s3 + $0x1f0] sm:$0xff]
      %v1879 = vld [vmem:[%s3 + $0x1f8] sm:$0xff]
      %v1880 = vld [vmem:[%s3 + $0x200] sm:$0xff]
      %v1881 = vld [vmem:[%s3 + $0x208] sm:$0xff]
      %v1882 = vld [vmem:[%s3 + $0x210] sm:$0xff]
      %v1883 = vld [vmem:[%s3 + $0x218] sm:$0xff]
      %v1884 = vld [vmem:[%s3 + $0x220] sm:$0xff]
      %v1885 = vld [vmem:[%s3 + $0x228] sm:$0xff]
      %v1886 = vld [vmem:[%s3 + $0x230] sm:$0xff]
      %v1887 = vld [vmem:[%s3 + $0x238] sm:$0xff]
      %v1888 = vld [vmem:[%s3 + $0x240] sm:$0xff]
      %v1889 = vld [vmem:[%s3 + $0x248] sm:$0xff]
      %v1890 = vld [vmem:[%s3 + $0x250] sm:$0xff]
      %v1891 = vld [vmem:[%s3 + $0x258] sm:$0xff]
      %v1892 = vld [vmem:[%s3 + $0x260] sm:$0xff]
      %v1893 = vld [vmem:[%s3 + $0x268] sm:$0xff]
      %v1894 = vld [vmem:[%s3 + $0x270] sm:$0xff]
      %v1895 = vld [vmem:[%s3 + $0x278] sm:$0xff]
      %v1896 = vld [vmem:[%s3 + $0x280] sm:$0xff]
      %v1897 = vld [vmem:[%s3 + $0x288] sm:$0xff]
      %v1898 = vld [vmem:[%s3 + $0x290] sm:$0xff]
      %v1899 = vld [vmem:[%s3 + $0x298] sm:$0xff]
      %v1900 = vld [vmem:[%s3 + $0x2a0] sm:$0xff]
      %v1901 = vld [vmem:[%s3 + $0x2a8] sm:$0xff]
      %v1902 = vld [vmem:[%s3 + $0x2b0] sm:$0xff]
      %v1903 = vld [vmem:[%s3 + $0x2b8] sm:$0xff]
      %v1904 = vld [vmem:[%s3 + $0x2c0] sm:$0xff]
      %v1905 = vld [vmem:[%s3 + $0x2c8] sm:$0xff]
      %v1906 = vld [vmem:[%s3 + $0x2d0] sm:$0xff]
      %v1907 = vld [vmem:[%s3 + $0x2d8] sm:$0xff]
      %v1908 = vld [vmem:[%s3 + $0x2e0] sm:$0xff]
      %v1909 = vld [vmem:[%s3 + $0x2e8] sm:$0xff]
      %v1910 = vld [vmem:[%s3 + $0x2f0] sm:$0xff]
      %v1911 = vld [vmem:[%s3 + $0x2f8] sm:$0xff]
      %v1912 = vld [vmem:[%s3 + $0x300] sm:$0xff]
      %v1913 = vld [vmem:[%s3 + $0x308] sm:$0xff]
      %v1914 = vld [vmem:[%s3 + $0x310] sm:$0xff]
      %v1915 = vld [vmem:[%s3 + $0x318] sm:$0xff]
      %v1916 = vld [vmem:[%s3 + $0x320] sm:$0xff]
      %v1917 = vld [vmem:[%s3 + $0x328] sm:$0xff]
      %v1918 = vld [vmem:[%s3 + $0x330] sm:$0xff]
      %v1919 = vld [vmem:[%s3 + $0x338] sm:$0xff]
      %v1920 = vld [vmem:[%s3 + $0x340] sm:$0xff]
      %v1921 = vld [vmem:[%s3 + $0x348] sm:$0xff]
      %v1922 = vld [vmem:[%s3 + $0x350] sm:$0xff]
      %v1923 = vld [vmem:[%s3 + $0x358] sm:$0xff]
      %v1924 = vld [vmem:[%s3 + $0x360] sm:$0xff]
      %v1925 = vld [vmem:[%s3 + $0x368] sm:$0xff]
      %v1926 = vld [vmem:[%s3 + $0x370] sm:$0xff]
      %v1927 = vld [vmem:[%s3 + $0x378] sm:$0xff]
      %v1928 = vld [vmem:[%s3 + $0x380] sm:$0xff]
      %v1929 = vld [vmem:[%s3 + $0x388] sm:$0xff]
      %v1930 = vld [vmem:[%s3 + $0x390] sm:$0xff]
      %v1931 = vld [vmem:[%s3 + $0x398] sm:$0xff]
      %v1932 = vld [vmem:[%s3 + $0x3a0] sm:$0xff]
      %v1933 = vld [vmem:[%s3 + $0x3a8] sm:$0xff]
      %v1934 = vld [vmem:[%s3 + $0x3b0] sm:$0xff]
      %v1935 = vld [vmem:[%s3 + $0x3b8] sm:$0xff]
      %v1936 = vld [vmem:[%s3 + $0x3c0] sm:$0xff]
      %v1937 = vld [vmem:[%s3 + $0x3c8] sm:$0xff]
      %v1938 = vld [vmem:[%s3 + $0x3d0] sm:$0xff]
      %v1939 = vld [vmem:[%s3 + $0x3d8] sm:$0xff]
      %v1940 = vld [vmem:[%s3 + $0x3e0] sm:$0xff]
      %v1941 = vld [vmem:[%s3 + $0x3e8] sm:$0xff]
      %v1942 = vld [vmem:[%s3 + $0x3f0] sm:$0xff]
      %v1943 = vld [vmem:[%s3 + $0x3f8] sm:$0xff]
      %v1944 = vld [vmem:[%s3 + $0x400] sm:$0xff]
      %v1945 = vld [vmem:[%s3 + $0x408] sm:$0xff]
      %v1946 = vld [vmem:[%s3 + $0x410] sm:$0xff]
      %v1947 = vld [vmem:[%s3 + $0x418] sm:$0xff]
      %v1948 = vld [vmem:[%s3 + $0x420] sm:$0xff]
      %v1949 = vld [vmem:[%s3 + $0x428] sm:$0xff]
      %v1950 = vld [vmem:[%s3 + $0x430] sm:$0xff]
      %v1951 = vld [vmem:[%s3 + $0x438] sm:$0xff]
      %v1952 = vld [vmem:[%s3 + $0x440] sm:$0xff]
      %v1953 = vld [vmem:[%s3 + $0x448] sm:$0xff]
      %v1954 = vld [vmem:[%s3 + $0x450] sm:$0xff]
      %v1955 = vld [vmem:[%s3 + $0x458] sm:$0xff]
      %v1956 = vld [vmem:[%s3 + $0x460] sm:$0xff]
      %v1957 = vld [vmem:[%s3 + $0x468] sm:$0xff]
      %v1958 = vld [vmem:[%s3 + $0x470] sm:$0xff]
      %v1959 = vld [vmem:[%s3 + $0x478] sm:$0xff]
      %v1960 = vld [vmem:[%s3 + $0x480] sm:$0xff]
      %v1961 = vld [vmem:[%s3 + $0x488] sm:$0xff]
      %v1962 = vld [vmem:[%s3 + $0x490] sm:$0xff]
      %v1963 = vld [vmem:[%s3 + $0x498] sm:$0xff]
      %v1964 = vld [vmem:[%s3 + $0x4a0] sm:$0xff]
      %v1965 = vld [vmem:[%s3 + $0x4a8] sm:$0xff]
      %v1966 = vld [vmem:[%s3 + $0x4b0] sm:$0xff]
      %v1967 = vld [vmem:[%s3 + $0x4b8] sm:$0xff]
      %v1968 = vld [vmem:[%s3 + $0x4c0] sm:$0xff]
      %v1969 = vld [vmem:[%s3 + $0x4c8] sm:$0xff]
      %v1970 = vld [vmem:[%s3 + $0x4d0] sm:$0xff]
      %v1971 = vld [vmem:[%s3 + $0x4d8] sm:$0xff]
      %v1972 = vld [vmem:[%s3 + $0x4e0] sm:$0xff]
      %v1973 = vld [vmem:[%s3 + $0x4e8] sm:$0xff]
      %v1974 = vld [vmem:[%s3 + $0x4f0] sm:$0xff]
      %v1975 = vld [vmem:[%s3 + $0x4f8] sm:$0xff]
      %v1976 = vld [vmem:[%s3 + $0x500] sm:$0xff]
      %v1977 = vld [vmem:[%s3 + $0x508] sm:$0xff]
      %v1978 = vld [vmem:[%s3 + $0x510] sm:$0xff]
      %v1979 = vld [vmem:[%s3 + $0x518] sm:$0xff]
      %v1980 = vld [vmem:[%s3 + $0x520] sm:$0xff]
      %v1981 = vld [vmem:[%s3 + $0x528] sm:$0xff]
      %v1982 = vld [vmem:[%s3 + $0x530] sm:$0xff]
      %v1983 = vld [vmem:[%s3 + $0x538] sm:$0xff]
      %v1984 = vld [vmem:[%s3 + $0x540] sm:$0xff]
      %v1985 = vld [vmem:[%s3 + $0x548] sm:$0xff]
      %v1986 = vld [vmem:[%s3 + $0x550] sm:$0xff]
      %v1987 = vld [vmem:[%s3 + $0x558] sm:$0xff]
      %v1988 = vld [vmem:[%s3 + $0x560] sm:$0xff]
      %v1989 = vld [vmem:[%s3 + $0x568] sm:$0xff]
      %v1990 = vld [vmem:[%s3 + $0x570] sm:$0xff]
      %v1991 = vld [vmem:[%s3 + $0x578] sm:$0xff]
      %v1992 = vld [vmem:[%s3 + $0x580] sm:$0xff]
      %v1993 = vld [vmem:[%s3 + $0x588] sm:$0xff]
      %v1994 = vld [vmem:[%s3 + $0x590] sm:$0xff]
      %v1995 = vld [vmem:[%s3 + $0x598] sm:$0xff]
      %v1996 = vld [vmem:[%s3 + $0x5a0] sm:$0xff]
      %v1997 = vld [vmem:[%s3 + $0x5a8] sm:$0xff]
      %v1998 = vld [vmem:[%s3 + $0x5b0] sm:$0xff]
      %v1999 = vld [vmem:[%s3 + $0x5b8] sm:$0xff]
      %v2000 = vld [vmem:[%s3 + $0x5c0] sm:$0xff]
      %v2001 = vld [vmem:[%s3 + $0x5c8] sm:$0xff]
      %v2002 = vld [vmem:[%s3 + $0x5d0] sm:$0xff]
      %v2003 = vld [vmem:[%s3 + $0x5d8] sm:$0xff]
      %v2004 = vld [vmem:[%s3 + $0x5e0] sm:$0xff]
      %v2005 = vld [vmem:[%s3 + $0x5e8] sm:$0xff]
      %v2006 = vld [vmem:[%s3 + $0x5f0] sm:$0xff]
      %v2007 = vld [vmem:[%s3 + $0x5f8] sm:$0xff]
      %v2008 = vld [vmem:[%s4] sm:$0xf]
      %v2010 = vlaneseq
      %v2011 = vshrl.u32 %v2010, 7
      %v2012 = vsub.s32 0, %v2011
      %v2013 = vrot.slane %v2008, %v2012
      %v2014 = vlaneseq
      %v2015 = vshrl.u32 %v2014, 7
      %v2016 = vsub.s32 1, %v2015
      %v2017 = vrot.slane %v2008, %v2016
      %v2018 = vlaneseq
      %v2019 = vshrl.u32 %v2018, 7
      %v2020 = vsub.s32 2, %v2019
      %v2021 = vrot.slane %v2008, %v2020
      %v2022 = vlaneseq
      %v2023 = vshrl.u32 %v2022, 7
      %v2024 = vsub.s32 3, %v2023
      %v2025 = vrot.slane %v2008, %v2024
      %v2222 = vunpack.c.l.b16 %v1816
      %v2223 = vunpack.c.h.b16 %v1816
      %v2224 = vunpack.c.l.b16 %v1817
      %v2225 = vunpack.c.h.b16 %v1817
      %v2226 = vunpack.c.l.b16 %v1818
      %v2227 = vunpack.c.h.b16 %v1818
      %v2228 = vunpack.c.l.b16 %v1819
      %v2229 = vunpack.c.h.b16 %v1819
      %v2230 = vunpack.c.l.b16 %v1820
      %v2231 = vunpack.c.h.b16 %v1820
      %v2232 = vunpack.c.l.b16 %v1821
      %v2233 = vunpack.c.h.b16 %v1821
      %v2234 = vunpack.c.l.b16 %v1822
      %v2235 = vunpack.c.h.b16 %v1822
      %v2236 = vunpack.c.l.b16 %v1823
      %v2237 = vunpack.c.h.b16 %v1823
      %v2238 = vunpack.c.l.b16 %v1824
      %v2239 = vunpack.c.h.b16 %v1824
      %v2240 = vunpack.c.l.b16 %v1825
      %v2241 = vunpack.c.h.b16 %v1825
      %v2242 = vunpack.c.l.b16 %v1826
      %v2243 = vunpack.c.h.b16 %v1826
      %v2244 = vunpack.c.l.b16 %v1827
      %v2245 = vunpack.c.h.b16 %v1827
      %v2246 = vunpack.c.l.b16 %v1828
      %v2247 = vunpack.c.h.b16 %v1828
      %v2248 = vunpack.c.l.b16 %v1829
      %v2249 = vunpack.c.h.b16 %v1829
      %v2250 = vunpack.c.l.b16 %v1830
      %v2251 = vunpack.c.h.b16 %v1830
      %v2252 = vunpack.c.l.b16 %v1831
      %v2253 = vunpack.c.h.b16 %v1831
      %v2254 = vunpack.c.l.b16 %v1832
      %v2255 = vunpack.c.h.b16 %v1832
      %v2256 = vunpack.c.l.b16 %v1833
      %v2257 = vunpack.c.h.b16 %v1833
      %v2258 = vunpack.c.l.b16 %v1834
      %v2259 = vunpack.c.h.b16 %v1834
      %v2260 = vunpack.c.l.b16 %v1835
      %v2261 = vunpack.c.h.b16 %v1835
      %v2262 = vunpack.c.l.b16 %v1836
      %v2263 = vunpack.c.h.b16 %v1836
      %v2264 = vunpack.c.l.b16 %v1837
      %v2265 = vunpack.c.h.b16 %v1837
      %v2266 = vunpack.c.l.b16 %v1838
      %v2267 = vunpack.c.h.b16 %v1838
      %v2268 = vunpack.c.l.b16 %v1839
      %v2269 = vunpack.c.h.b16 %v1839
      %v2270 = vunpack.c.l.b16 %v1840
      %v2271 = vunpack.c.h.b16 %v1840
      %v2272 = vunpack.c.l.b16 %v1841
      %v2273 = vunpack.c.h.b16 %v1841
      %v2274 = vunpack.c.l.b16 %v1842
      %v2275 = vunpack.c.h.b16 %v1842
      %v2276 = vunpack.c.l.b16 %v1843
      %v2277 = vunpack.c.h.b16 %v1843
      %v2278 = vunpack.c.l.b16 %v1844
      %v2279 = vunpack.c.h.b16 %v1844
      %v2280 = vunpack.c.l.b16 %v1845
      %v2281 = vunpack.c.h.b16 %v1845
      %v2282 = vunpack.c.l.b16 %v1846
      %v2283 = vunpack.c.h.b16 %v1846
      %v2284 = vunpack.c.l.b16 %v1847
      %v2285 = vunpack.c.h.b16 %v1847
      %v2286 = vunpack.c.l.b16 %v1848
      %v2287 = vunpack.c.h.b16 %v1848
      %v2288 = vunpack.c.l.b16 %v1849
      %v2289 = vunpack.c.h.b16 %v1849
      %v2290 = vunpack.c.l.b16 %v1850
      %v2291 = vunpack.c.h.b16 %v1850
      %v2292 = vunpack.c.l.b16 %v1851
      %v2293 = vunpack.c.h.b16 %v1851
      %v2294 = vunpack.c.l.b16 %v1852
      %v2295 = vunpack.c.h.b16 %v1852
      %v2296 = vunpack.c.l.b16 %v1853
      %v2297 = vunpack.c.h.b16 %v1853
      %v2298 = vunpack.c.l.b16 %v1854
      %v2299 = vunpack.c.h.b16 %v1854
      %v2300 = vunpack.c.l.b16 %v1855
      %v2301 = vunpack.c.h.b16 %v1855
      %v2302 = vunpack.c.l.b16 %v1856
      %v2303 = vunpack.c.h.b16 %v1856
      %v2304 = vunpack.c.l.b16 %v1857
      %v2305 = vunpack.c.h.b16 %v1857
      %v2306 = vunpack.c.l.b16 %v1858
      %v2307 = vunpack.c.h.b16 %v1858
      %v2308 = vunpack.c.l.b16 %v1859
      %v2309 = vunpack.c.h.b16 %v1859
      %v2310 = vunpack.c.l.b16 %v1860
      %v2311 = vunpack.c.h.b16 %v1860
      %v2312 = vunpack.c.l.b16 %v1861
      %v2313 = vunpack.c.h.b16 %v1861
      %v2314 = vunpack.c.l.b16 %v1862
      %v2315 = vunpack.c.h.b16 %v1862
      %v2316 = vunpack.c.l.b16 %v1863
      %v2317 = vunpack.c.h.b16 %v1863
      %v2318 = vunpack.c.l.b16 %v1864
      %v2319 = vunpack.c.h.b16 %v1864
      %v2320 = vunpack.c.l.b16 %v1865
      %v2321 = vunpack.c.h.b16 %v1865
      %v2322 = vunpack.c.l.b16 %v1866
      %v2323 = vunpack.c.h.b16 %v1866
      %v2324 = vunpack.c.l.b16 %v1867
      %v2325 = vunpack.c.h.b16 %v1867
      %v2326 = vunpack.c.l.b16 %v1868
      %v2327 = vunpack.c.h.b16 %v1868
      %v2328 = vunpack.c.l.b16 %v1869
      %v2329 = vunpack.c.h.b16 %v1869
      %v2330 = vunpack.c.l.b16 %v1870
      %v2331 = vunpack.c.h.b16 %v1870
      %v2332 = vunpack.c.l.b16 %v1871
      %v2333 = vunpack.c.h.b16 %v1871
      %v2334 = vunpack.c.l.b16 %v1872
      %v2335 = vunpack.c.h.b16 %v1872
      %v2336 = vunpack.c.l.b16 %v1873
      %v2337 = vunpack.c.h.b16 %v1873
      %v2338 = vunpack.c.l.b16 %v1874
      %v2339 = vunpack.c.h.b16 %v1874
      %v2340 = vunpack.c.l.b16 %v1875
      %v2341 = vunpack.c.h.b16 %v1875
      %v2342 = vunpack.c.l.b16 %v1876
      %v2343 = vunpack.c.h.b16 %v1876
      %v2344 = vunpack.c.l.b16 %v1877
      %v2345 = vunpack.c.h.b16 %v1877
      %v2346 = vunpack.c.l.b16 %v1878
      %v2347 = vunpack.c.h.b16 %v1878
      %v2348 = vunpack.c.l.b16 %v1879
      %v2349 = vunpack.c.h.b16 %v1879
      %v2350 = vunpack.c.l.b16 %v1880
      %v2351 = vunpack.c.h.b16 %v1880
      %v2352 = vunpack.c.l.b16 %v1881
      %v2353 = vunpack.c.h.b16 %v1881
      %v2354 = vunpack.c.l.b16 %v1882
      %v2355 = vunpack.c.h.b16 %v1882
      %v2356 = vunpack.c.l.b16 %v1883
      %v2357 = vunpack.c.h.b16 %v1883
      %v2358 = vunpack.c.l.b16 %v1884
      %v2359 = vunpack.c.h.b16 %v1884
      %v2360 = vunpack.c.l.b16 %v1885
      %v2361 = vunpack.c.h.b16 %v1885
      %v2362 = vunpack.c.l.b16 %v1886
      %v2363 = vunpack.c.h.b16 %v1886
      %v2364 = vunpack.c.l.b16 %v1887
      %v2365 = vunpack.c.h.b16 %v1887
      %v2366 = vunpack.c.l.b16 %v1888
      %v2367 = vunpack.c.h.b16 %v1888
      %v2368 = vunpack.c.l.b16 %v1889
      %v2369 = vunpack.c.h.b16 %v1889
      %v2370 = vunpack.c.l.b16 %v1890
      %v2371 = vunpack.c.h.b16 %v1890
      %v2372 = vunpack.c.l.b16 %v1891
      %v2373 = vunpack.c.h.b16 %v1891
      %v2374 = vunpack.c.l.b16 %v1892
      %v2375 = vunpack.c.h.b16 %v1892
      %v2376 = vunpack.c.l.b16 %v1893
      %v2377 = vunpack.c.h.b16 %v1893
      %v2378 = vunpack.c.l.b16 %v1894
      %v2379 = vunpack.c.h.b16 %v1894
      %v2380 = vunpack.c.l.b16 %v1895
      %v2381 = vunpack.c.h.b16 %v1895
      %v2382 = vunpack.c.l.b16 %v1896
      %v2383 = vunpack.c.h.b16 %v1896
      %v2384 = vunpack.c.l.b16 %v1897
      %v2385 = vunpack.c.h.b16 %v1897
      %v2386 = vunpack.c.l.b16 %v1898
      %v2387 = vunpack.c.h.b16 %v1898
      %v2388 = vunpack.c.l.b16 %v1899
      %v2389 = vunpack.c.h.b16 %v1899
      %v2390 = vunpack.c.l.b16 %v1900
      %v2391 = vunpack.c.h.b16 %v1900
      %v2392 = vunpack.c.l.b16 %v1901
      %v2393 = vunpack.c.h.b16 %v1901
      %v2394 = vunpack.c.l.b16 %v1902
      %v2395 = vunpack.c.h.b16 %v1902
      %v2396 = vunpack.c.l.b16 %v1903
      %v2397 = vunpack.c.h.b16 %v1903
      %v2398 = vunpack.c.l.b16 %v1904
      %v2399 = vunpack.c.h.b16 %v1904
      %v2400 = vunpack.c.l.b16 %v1905
      %v2401 = vunpack.c.h.b16 %v1905
      %v2402 = vunpack.c.l.b16 %v1906
      %v2403 = vunpack.c.h.b16 %v1906
      %v2404 = vunpack.c.l.b16 %v1907
      %v2405 = vunpack.c.h.b16 %v1907
      %v2406 = vunpack.c.l.b16 %v1908
      %v2407 = vunpack.c.h.b16 %v1908
      %v2408 = vunpack.c.l.b16 %v1909
      %v2409 = vunpack.c.h.b16 %v1909
      %v2410 = vunpack.c.l.b16 %v1910
      %v2411 = vunpack.c.h.b16 %v1910
      %v2412 = vunpack.c.l.b16 %v1911
      %v2413 = vunpack.c.h.b16 %v1911
      %v2414 = vunpack.c.l.b16 %v1912
      %v2415 = vunpack.c.h.b16 %v1912
      %v2416 = vunpack.c.l.b16 %v1913
      %v2417 = vunpack.c.h.b16 %v1913
      %v2418 = vunpack.c.l.b16 %v1914
      %v2419 = vunpack.c.h.b16 %v1914
      %v2420 = vunpack.c.l.b16 %v1915
      %v2421 = vunpack.c.h.b16 %v1915
      %v2422 = vunpack.c.l.b16 %v1916
      %v2423 = vunpack.c.h.b16 %v1916
      %v2424 = vunpack.c.l.b16 %v1917
      %v2425 = vunpack.c.h.b16 %v1917
      %v2426 = vunpack.c.l.b16 %v1918
      %v2427 = vunpack.c.h.b16 %v1918
      %v2428 = vunpack.c.l.b16 %v1919
      %v2429 = vunpack.c.h.b16 %v1919
      %v2430 = vunpack.c.l.b16 %v1920
      %v2431 = vunpack.c.h.b16 %v1920
      %v2432 = vunpack.c.l.b16 %v1921
      %v2433 = vunpack.c.h.b16 %v1921
      %v2434 = vunpack.c.l.b16 %v1922
      %v2435 = vunpack.c.h.b16 %v1922
      %v2436 = vunpack.c.l.b16 %v1923
      %v2437 = vunpack.c.h.b16 %v1923
      %v2438 = vunpack.c.l.b16 %v1924
      %v2439 = vunpack.c.h.b16 %v1924
      %v2440 = vunpack.c.l.b16 %v1925
      %v2441 = vunpack.c.h.b16 %v1925
      %v2442 = vunpack.c.l.b16 %v1926
      %v2443 = vunpack.c.h.b16 %v1926
      %v2444 = vunpack.c.l.b16 %v1927
      %v2445 = vunpack.c.h.b16 %v1927
      %v2446 = vunpack.c.l.b16 %v1928
      %v2447 = vunpack.c.h.b16 %v1928
      %v2448 = vunpack.c.l.b16 %v1929
      %v2449 = vunpack.c.h.b16 %v1929
      %v2450 = vunpack.c.l.b16 %v1930
      %v2451 = vunpack.c.h.b16 %v1930
      %v2452 = vunpack.c.l.b16 %v1931
      %v2453 = vunpack.c.h.b16 %v1931
      %v2454 = vunpack.c.l.b16 %v1932
      %v2455 = vunpack.c.h.b16 %v1932
      %v2456 = vunpack.c.l.b16 %v1933
      %v2457 = vunpack.c.h.b16 %v1933
      %v2458 = vunpack.c.l.b16 %v1934
      %v2459 = vunpack.c.h.b16 %v1934
      %v2460 = vunpack.c.l.b16 %v1935
      %v2461 = vunpack.c.h.b16 %v1935
      %v2462 = vunpack.c.l.b16 %v1936
      %v2463 = vunpack.c.h.b16 %v1936
      %v2464 = vunpack.c.l.b16 %v1937
      %v2465 = vunpack.c.h.b16 %v1937
      %v2466 = vunpack.c.l.b16 %v1938
      %v2467 = vunpack.c.h.b16 %v1938
      %v2468 = vunpack.c.l.b16 %v1939
      %v2469 = vunpack.c.h.b16 %v1939
      %v2470 = vunpack.c.l.b16 %v1940
      %v2471 = vunpack.c.h.b16 %v1940
      %v2472 = vunpack.c.l.b16 %v1941
      %v2473 = vunpack.c.h.b16 %v1941
      %v2474 = vunpack.c.l.b16 %v1942
      %v2475 = vunpack.c.h.b16 %v1942
      %v2476 = vunpack.c.l.b16 %v1943
      %v2477 = vunpack.c.h.b16 %v1943
      %v2478 = vunpack.c.l.b16 %v1944
      %v2479 = vunpack.c.h.b16 %v1944
      %v2480 = vunpack.c.l.b16 %v1945
      %v2481 = vunpack.c.h.b16 %v1945
      %v2482 = vunpack.c.l.b16 %v1946
      %v2483 = vunpack.c.h.b16 %v1946
      %v2484 = vunpack.c.l.b16 %v1947
      %v2485 = vunpack.c.h.b16 %v1947
      %v2486 = vunpack.c.l.b16 %v1948
      %v2487 = vunpack.c.h.b16 %v1948
      %v2488 = vunpack.c.l.b16 %v1949
      %v2489 = vunpack.c.h.b16 %v1949
      %v2490 = vunpack.c.l.b16 %v1950
      %v2491 = vunpack.c.h.b16 %v1950
      %v2492 = vunpack.c.l.b16 %v1951
      %v2493 = vunpack.c.h.b16 %v1951
      %v2494 = vunpack.c.l.b16 %v1952
      %v2495 = vunpack.c.h.b16 %v1952
      %v2496 = vunpack.c.l.b16 %v1953
      %v2497 = vunpack.c.h.b16 %v1953
      %v2498 = vunpack.c.l.b16 %v1954
      %v2499 = vunpack.c.h.b16 %v1954
      %v2500 = vunpack.c.l.b16 %v1955
      %v2501 = vunpack.c.h.b16 %v1955
      %v2502 = vunpack.c.l.b16 %v1956
      %v2503 = vunpack.c.h.b16 %v1956
      %v2504 = vunpack.c.l.b16 %v1957
      %v2505 = vunpack.c.h.b16 %v1957
      %v2506 = vunpack.c.l.b16 %v1958
      %v2507 = vunpack.c.h.b16 %v1958
      %v2508 = vunpack.c.l.b16 %v1959
      %v2509 = vunpack.c.h.b16 %v1959
      %v2510 = vunpack.c.l.b16 %v1960
      %v2511 = vunpack.c.h.b16 %v1960
      %v2512 = vunpack.c.l.b16 %v1961
      %v2513 = vunpack.c.h.b16 %v1961
      %v2514 = vunpack.c.l.b16 %v1962
      %v2515 = vunpack.c.h.b16 %v1962
      %v2516 = vunpack.c.l.b16 %v1963
      %v2517 = vunpack.c.h.b16 %v1963
      %v2518 = vunpack.c.l.b16 %v1964
      %v2519 = vunpack.c.h.b16 %v1964
      %v2520 = vunpack.c.l.b16 %v1965
      %v2521 = vunpack.c.h.b16 %v1965
      %v2522 = vunpack.c.l.b16 %v1966
      %v2523 = vunpack.c.h.b16 %v1966
      %v2524 = vunpack.c.l.b16 %v1967
      %v2525 = vunpack.c.h.b16 %v1967
      %v2526 = vunpack.c.l.b16 %v1968
      %v2527 = vunpack.c.h.b16 %v1968
      %v2528 = vunpack.c.l.b16 %v1969
      %v2529 = vunpack.c.h.b16 %v1969
      %v2530 = vunpack.c.l.b16 %v1970
      %v2531 = vunpack.c.h.b16 %v1970
      %v2532 = vunpack.c.l.b16 %v1971
      %v2533 = vunpack.c.h.b16 %v1971
      %v2534 = vunpack.c.l.b16 %v1972
      %v2535 = vunpack.c.h.b16 %v1972
      %v2536 = vunpack.c.l.b16 %v1973
      %v2537 = vunpack.c.h.b16 %v1973
      %v2538 = vunpack.c.l.b16 %v1974
      %v2539 = vunpack.c.h.b16 %v1974
      %v2540 = vunpack.c.l.b16 %v1975
      %v2541 = vunpack.c.h.b16 %v1975
      %v2542 = vunpack.c.l.b16 %v1976
      %v2543 = vunpack.c.h.b16 %v1976
      %v2544 = vunpack.c.l.b16 %v1977
      %v2545 = vunpack.c.h.b16 %v1977
      %v2546 = vunpack.c.l.b16 %v1978
      %v2547 = vunpack.c.h.b16 %v1978
      %v2548 = vunpack.c.l.b16 %v1979
      %v2549 = vunpack.c.h.b16 %v1979
      %v2550 = vunpack.c.l.b16 %v1980
      %v2551 = vunpack.c.h.b16 %v1980
      %v2552 = vunpack.c.l.b16 %v1981
      %v2553 = vunpack.c.h.b16 %v1981
      %v2554 = vunpack.c.l.b16 %v1982
      %v2555 = vunpack.c.h.b16 %v1982
      %v2556 = vunpack.c.l.b16 %v1983
      %v2557 = vunpack.c.h.b16 %v1983
      %v2558 = vunpack.c.l.b16 %v1984
      %v2559 = vunpack.c.h.b16 %v1984
      %v2560 = vunpack.c.l.b16 %v1985
      %v2561 = vunpack.c.h.b16 %v1985
      %v2562 = vunpack.c.l.b16 %v1986
      %v2563 = vunpack.c.h.b16 %v1986
      %v2564 = vunpack.c.l.b16 %v1987
      %v2565 = vunpack.c.h.b16 %v1987
      %v2566 = vunpack.c.l.b16 %v1988
      %v2567 = vunpack.c.h.b16 %v1988
      %v2568 = vunpack.c.l.b16 %v1989
      %v2569 = vunpack.c.h.b16 %v1989
      %v2570 = vunpack.c.l.b16 %v1990
      %v2571 = vunpack.c.h.b16 %v1990
      %v2572 = vunpack.c.l.b16 %v1991
      %v2573 = vunpack.c.h.b16 %v1991
      %v2574 = vunpack.c.l.b16 %v1992
      %v2575 = vunpack.c.h.b16 %v1992
      %v2576 = vunpack.c.l.b16 %v1993
      %v2577 = vunpack.c.h.b16 %v1993
      %v2578 = vunpack.c.l.b16 %v1994
      %v2579 = vunpack.c.h.b16 %v1994
      %v2580 = vunpack.c.l.b16 %v1995
      %v2581 = vunpack.c.h.b16 %v1995
      %v2582 = vunpack.c.l.b16 %v1996
      %v2583 = vunpack.c.h.b16 %v1996
      %v2584 = vunpack.c.l.b16 %v1997
      %v2585 = vunpack.c.h.b16 %v1997
      %v2586 = vunpack.c.l.b16 %v1998
      %v2587 = vunpack.c.h.b16 %v1998
      %v2588 = vunpack.c.l.b16 %v1999
      %v2589 = vunpack.c.h.b16 %v1999
      %v2590 = vunpack.c.l.b16 %v2000
      %v2591 = vunpack.c.h.b16 %v2000
      %v2592 = vunpack.c.l.b16 %v2001
      %v2593 = vunpack.c.h.b16 %v2001
      %v2594 = vunpack.c.l.b16 %v2002
      %v2595 = vunpack.c.h.b16 %v2002
      %v2596 = vunpack.c.l.b16 %v2003
      %v2597 = vunpack.c.h.b16 %v2003
      %v2598 = vunpack.c.l.b16 %v2004
      %v2599 = vunpack.c.h.b16 %v2004
      %v2600 = vunpack.c.l.b16 %v2005
      %v2601 = vunpack.c.h.b16 %v2005
      %v2602 = vunpack.c.l.b16 %v2006
      %v2603 = vunpack.c.h.b16 %v2006
      %v2604 = vunpack.c.l.b16 %v2007
      %v2605 = vunpack.c.h.b16 %v2007
      %v2606 = vpack.c.b16 %v2226, %v2222
      %v2607 = vpack.c.b16 %v2227, %v2223
      %v2608 = vpack.c.b16 %v2228, %v2224
      %v2609 = vpack.c.b16 %v2229, %v2225
      %v2610 = vpack.c.b16 %v2234, %v2230
      %v2611 = vpack.c.b16 %v2235, %v2231
      %v2612 = vpack.c.b16 %v2236, %v2232
      %v2613 = vpack.c.b16 %v2237, %v2233
      %v2614 = vpack.c.b16 %v2242, %v2238
      %v2615 = vpack.c.b16 %v2243, %v2239
      %v2616 = vpack.c.b16 %v2244, %v2240
      %v2617 = vpack.c.b16 %v2245, %v2241
      %v2618 = vpack.c.b16 %v2250, %v2246
      %v2619 = vpack.c.b16 %v2251, %v2247
      %v2620 = vpack.c.b16 %v2252, %v2248
      %v2621 = vpack.c.b16 %v2253, %v2249
      %v2622 = vpack.c.b16 %v2258, %v2254
      %v2623 = vpack.c.b16 %v2259, %v2255
      %v2624 = vpack.c.b16 %v2260, %v2256
      %v2625 = vpack.c.b16 %v2261, %v2257
      %v2626 = vpack.c.b16 %v2266, %v2262
      %v2627 = vpack.c.b16 %v2267, %v2263
      %v2628 = vpack.c.b16 %v2268, %v2264
      %v2629 = vpack.c.b16 %v2269, %v2265
      %v2630 = vpack.c.b16 %v2274, %v2270
      %v2631 = vpack.c.b16 %v2275, %v2271
      %v2632 = vpack.c.b16 %v2276, %v2272
      %v2633 = vpack.c.b16 %v2277, %v2273
      %v2634 = vpack.c.b16 %v2282, %v2278
      %v2635 = vpack.c.b16 %v2283, %v2279
      %v2636 = vpack.c.b16 %v2284, %v2280
      %v2637 = vpack.c.b16 %v2285, %v2281
      %v2638 = vpack.c.b16 %v2290, %v2286
      %v2639 = vpack.c.b16 %v2291, %v2287
      %v2640 = vpack.c.b16 %v2292, %v2288
      %v2641 = vpack.c.b16 %v2293, %v2289
      %v2642 = vpack.c.b16 %v2298, %v2294
      %v2643 = vpack.c.b16 %v2299, %v2295
      %v2644 = vpack.c.b16 %v2300, %v2296
      %v2645 = vpack.c.b16 %v2301, %v2297
      %v2646 = vpack.c.b16 %v2306, %v2302
      %v2647 = vpack.c.b16 %v2307, %v2303
      %v2648 = vpack.c.b16 %v2308, %v2304
      %v2649 = vpack.c.b16 %v2309, %v2305
      %v2650 = vpack.c.b16 %v2314, %v2310
      %v2651 = vpack.c.b16 %v2315, %v2311
      %v2652 = vpack.c.b16 %v2316, %v2312
      %v2653 = vpack.c.b16 %v2317, %v2313
      %v2654 = vpack.c.b16 %v2322, %v2318
      %v2655 = vpack.c.b16 %v2323, %v2319
      %v2656 = vpack.c.b16 %v2324, %v2320
      %v2657 = vpack.c.b16 %v2325, %v2321
      %v2658 = vpack.c.b16 %v2330, %v2326
      %v2659 = vpack.c.b16 %v2331, %v2327
      %v2660 = vpack.c.b16 %v2332, %v2328
      %v2661 = vpack.c.b16 %v2333, %v2329
      %v2662 = vpack.c.b16 %v2338, %v2334
      %v2663 = vpack.c.b16 %v2339, %v2335
      %v2664 = vpack.c.b16 %v2340, %v2336
      %v2665 = vpack.c.b16 %v2341, %v2337
      %v2666 = vpack.c.b16 %v2346, %v2342
      %v2667 = vpack.c.b16 %v2347, %v2343
      %v2668 = vpack.c.b16 %v2348, %v2344
      %v2669 = vpack.c.b16 %v2349, %v2345
      %v2670 = vpack.c.b16 %v2354, %v2350
      %v2671 = vpack.c.b16 %v2355, %v2351
      %v2672 = vpack.c.b16 %v2356, %v2352
      %v2673 = vpack.c.b16 %v2357, %v2353
      %v2674 = vpack.c.b16 %v2362, %v2358
      %v2675 = vpack.c.b16 %v2363, %v2359
      %v2676 = vpack.c.b16 %v2364, %v2360
      %v2677 = vpack.c.b16 %v2365, %v2361
      %v2678 = vpack.c.b16 %v2370, %v2366
      %v2679 = vpack.c.b16 %v2371, %v2367
      %v2680 = vpack.c.b16 %v2372, %v2368
      %v2681 = vpack.c.b16 %v2373, %v2369
      %v2682 = vpack.c.b16 %v2378, %v2374
      %v2683 = vpack.c.b16 %v2379, %v2375
      %v2684 = vpack.c.b16 %v2380, %v2376
      %v2685 = vpack.c.b16 %v2381, %v2377
      %v2686 = vpack.c.b16 %v2386, %v2382
      %v2687 = vpack.c.b16 %v2387, %v2383
      %v2688 = vpack.c.b16 %v2388, %v2384
      %v2689 = vpack.c.b16 %v2389, %v2385
      %v2690 = vpack.c.b16 %v2394, %v2390
      %v2691 = vpack.c.b16 %v2395, %v2391
      %v2692 = vpack.c.b16 %v2396, %v2392
      %v2693 = vpack.c.b16 %v2397, %v2393
      %v2694 = vpack.c.b16 %v2402, %v2398
      %v2695 = vpack.c.b16 %v2403, %v2399
      %v2696 = vpack.c.b16 %v2404, %v2400
      %v2697 = vpack.c.b16 %v2405, %v2401
      %v2698 = vpack.c.b16 %v2410, %v2406
      %v2699 = vpack.c.b16 %v2411, %v2407
      %v2700 = vpack.c.b16 %v2412, %v2408
      %v2701 = vpack.c.b16 %v2413, %v2409
      %v2702 = vpack.c.b16 %v2418, %v2414
      %v2703 = vpack.c.b16 %v2419, %v2415
      %v2704 = vpack.c.b16 %v2420, %v2416
      %v2705 = vpack.c.b16 %v2421, %v2417
      %v2706 = vpack.c.b16 %v2426, %v2422
      %v2707 = vpack.c.b16 %v2427, %v2423
      %v2708 = vpack.c.b16 %v2428, %v2424
      %v2709 = vpack.c.b16 %v2429, %v2425
      %v2710 = vpack.c.b16 %v2434, %v2430
      %v2711 = vpack.c.b16 %v2435, %v2431
      %v2712 = vpack.c.b16 %v2436, %v2432
      %v2713 = vpack.c.b16 %v2437, %v2433
      %v2714 = vpack.c.b16 %v2442, %v2438
      %v2715 = vpack.c.b16 %v2443, %v2439
      %v2716 = vpack.c.b16 %v2444, %v2440
      %v2717 = vpack.c.b16 %v2445, %v2441
      %v2718 = vpack.c.b16 %v2450, %v2446
      %v2719 = vpack.c.b16 %v2451, %v2447
      %v2720 = vpack.c.b16 %v2452, %v2448
      %v2721 = vpack.c.b16 %v2453, %v2449
      %v2722 = vpack.c.b16 %v2458, %v2454
      %v2723 = vpack.c.b16 %v2459, %v2455
      %v2724 = vpack.c.b16 %v2460, %v2456
      %v2725 = vpack.c.b16 %v2461, %v2457
      %v2726 = vpack.c.b16 %v2466, %v2462
      %v2727 = vpack.c.b16 %v2467, %v2463
      %v2728 = vpack.c.b16 %v2468, %v2464
      %v2729 = vpack.c.b16 %v2469, %v2465
      %v2730 = vpack.c.b16 %v2474, %v2470
      %v2731 = vpack.c.b16 %v2475, %v2471
      %v2732 = vpack.c.b16 %v2476, %v2472
      %v2733 = vpack.c.b16 %v2477, %v2473
      %v2734 = vpack.c.b16 %v2482, %v2478
      %v2735 = vpack.c.b16 %v2483, %v2479
      %v2736 = vpack.c.b16 %v2484, %v2480
      %v2737 = vpack.c.b16 %v2485, %v2481
      %v2738 = vpack.c.b16 %v2490, %v2486
      %v2739 = vpack.c.b16 %v2491, %v2487
      %v2740 = vpack.c.b16 %v2492, %v2488
      %v2741 = vpack.c.b16 %v2493, %v2489
      %v2742 = vpack.c.b16 %v2498, %v2494
      %v2743 = vpack.c.b16 %v2499, %v2495
      %v2744 = vpack.c.b16 %v2500, %v2496
      %v2745 = vpack.c.b16 %v2501, %v2497
      %v2746 = vpack.c.b16 %v2506, %v2502
      %v2747 = vpack.c.b16 %v2507, %v2503
      %v2748 = vpack.c.b16 %v2508, %v2504
      %v2749 = vpack.c.b16 %v2509, %v2505
      %v2750 = vpack.c.b16 %v2514, %v2510
      %v2751 = vpack.c.b16 %v2515, %v2511
      %v2752 = vpack.c.b16 %v2516, %v2512
      %v2753 = vpack.c.b16 %v2517, %v2513
      %v2754 = vpack.c.b16 %v2522, %v2518
      %v2755 = vpack.c.b16 %v2523, %v2519
      %v2756 = vpack.c.b16 %v2524, %v2520
      %v2757 = vpack.c.b16 %v2525, %v2521
      %v2758 = vpack.c.b16 %v2530, %v2526
      %v2759 = vpack.c.b16 %v2531, %v2527
      %v2760 = vpack.c.b16 %v2532, %v2528
      %v2761 = vpack.c.b16 %v2533, %v2529
      %v2762 = vpack.c.b16 %v2538, %v2534
      %v2763 = vpack.c.b16 %v2539, %v2535
      %v2764 = vpack.c.b16 %v2540, %v2536
      %v2765 = vpack.c.b16 %v2541, %v2537
      %v2766 = vpack.c.b16 %v2546, %v2542
      %v2767 = vpack.c.b16 %v2547, %v2543
      %v2768 = vpack.c.b16 %v2548, %v2544
      %v2769 = vpack.c.b16 %v2549, %v2545
      %v2770 = vpack.c.b16 %v2554, %v2550
      %v2771 = vpack.c.b16 %v2555, %v2551
      %v2772 = vpack.c.b16 %v2556, %v2552
      %v2773 = vpack.c.b16 %v2557, %v2553
      %v2774 = vpack.c.b16 %v2562, %v2558
      %v2775 = vpack.c.b16 %v2563, %v2559
      %v2776 = vpack.c.b16 %v2564, %v2560
      %v2777 = vpack.c.b16 %v2565, %v2561
      %v2778 = vpack.c.b16 %v2570, %v2566
      %v2779 = vpack.c.b16 %v2571, %v2567
      %v2780 = vpack.c.b16 %v2572, %v2568
      %v2781 = vpack.c.b16 %v2573, %v2569
      %v2782 = vpack.c.b16 %v2578, %v2574
      %v2783 = vpack.c.b16 %v2579, %v2575
      %v2784 = vpack.c.b16 %v2580, %v2576
      %v2785 = vpack.c.b16 %v2581, %v2577
      %v2786 = vpack.c.b16 %v2586, %v2582
      %v2787 = vpack.c.b16 %v2587, %v2583
      %v2788 = vpack.c.b16 %v2588, %v2584
      %v2789 = vpack.c.b16 %v2589, %v2585
      %v2790 = vpack.c.b16 %v2594, %v2590
      %v2791 = vpack.c.b16 %v2595, %v2591
      %v2792 = vpack.c.b16 %v2596, %v2592
      %v2793 = vpack.c.b16 %v2597, %v2593
      %v2794 = vpack.c.b16 %v2602, %v2598
      %v2795 = vpack.c.b16 %v2603, %v2599
      %v2796 = vpack.c.b16 %v2604, %v2600
      %v2797 = vpack.c.b16 %v2605, %v2601
      %2990 = vmatprep.subr.bf16.mxu0 %v2607
      %2991 = vmatpush1.bf16.msra.mxu0 %v2606
      %2992 = vmatprep.subr.bf16.mxu0 %v2611
      %2993 = vmatpush1.bf16.msra.mxu0 %v2610
      %2994 = vmatprep.subr.bf16.mxu0 %v2615
      %2995 = vmatpush1.bf16.msra.mxu0 %v2614
      %2996 = vmatprep.subr.bf16.mxu0 %v2619
      %2997 = vmatpush1.bf16.msra.mxu0 %v2618
      %2998 = vmatprep.subr.bf16.mxu0 %v2623
      %2999 = vmatpush1.bf16.msra.mxu0 %v2622
      %3000 = vmatprep.subr.bf16.mxu0 %v2627
      %3001 = vmatpush1.bf16.msra.mxu0 %v2626
      %3002 = vmatprep.subr.bf16.mxu0 %v2631
      %3003 = vmatpush1.bf16.msra.mxu0 %v2630
      %3004 = vmatprep.subr.bf16.mxu0 %v2635
      %3005 = vmatpush1.bf16.msra.mxu0 %v2634
      %3006 = vmatprep.subr.bf16.mxu0 %v2639
      %3007 = vmatpush1.bf16.msra.mxu0 %v2638
      %3008 = vmatprep.subr.bf16.mxu0 %v2643
      %3009 = vmatpush1.bf16.msra.mxu0 %v2642
      %3010 = vmatprep.subr.bf16.mxu0 %v2647
      %3011 = vmatpush1.bf16.msra.mxu0 %v2646
      %3012 = vmatprep.subr.bf16.mxu0 %v2651
      %3013 = vmatpush1.bf16.msra.mxu0 %v2650
      %3014 = vmatprep.subr.bf16.mxu0 %v2655
      %3015 = vmatpush1.bf16.msra.mxu0 %v2654
      %3016 = vmatprep.subr.bf16.mxu0 %v2659
      %3017 = vmatpush1.bf16.msra.mxu0 %v2658
      %3018 = vmatprep.subr.bf16.mxu0 %v2663
      %3019 = vmatpush1.bf16.msra.mxu0 %v2662
      %3020 = vmatprep.subr.bf16.mxu0 %v2667
      %3021 = vmatpush1.bf16.msra.mxu0 %v2666
      %3022 = vmatprep.mubr.bf16.mxu0 %v1793
      %3023 = vmatmul.mubr.bf16.gmra.mrb[0].mxu0 %v1792
      %v3024 = vpop.f32.mrb[0].mxu0
      %v3025 = vadd.f32 %v2013, %v3024
      %v3026 = vpop.f32.mrb[0].mxu0
      %v3027 = vadd.f32 %v2017, %v3026
      %v3028 = vpop.f32.mrb[0].mxu0
      %v3029 = vadd.f32 %v2013, %v3028
      %v3030 = vpop.f32.mrb[0].mxu0
      %v3031 = vadd.f32 %v2017, %v3030
      %3032 = vmatprep.mubr.bf16.mxu0 %v1799
      %3033 = vmatmul.mubr.bf16.gmra.mrb[0].mxu0 %v1798
      %v3034 = vpop.f32.mrb[0].mxu0
      %v3035 = vadd.f32 %v2013, %v3034
      %v3036 = vpop.f32.mrb[0].mxu0
      %v3037 = vadd.f32 %v2017, %v3036
      %v3038 = vpop.f32.mrb[0].mxu0
      %v3039 = vadd.f32 %v2013, %v3038
      %v3040 = vpop.f32.mrb[0].mxu0
      %v3041 = vadd.f32 %v2017, %v3040
      %3042 = vmatprep.mubr.bf16.mxu0 %v1795
      %3043 = vmatmul.mubr.bf16.gmra.mrb[0].mxu0 %v1794
      %v3044 = vpop.f32.mrb[0].mxu0
      %v3045 = vadd.f32 %v2013, %v3044
      %v3046 = vpop.f32.mrb[0].mxu0
      %v3047 = vadd.f32 %v2017, %v3046
      %v3048 = vpop.f32.mrb[0].mxu0
      %v3049 = vadd.f32 %v2013, %v3048
      %v3050 = vpop.f32.mrb[0].mxu0
      %v3051 = vadd.f32 %v2017, %v3050
      %3052 = vmatprep.mubr.bf16.mxu0 %v1801
      %3053 = vmatmul.mubr.bf16.gmra.mrb[0].mxu0 %v1800
      %v3054 = vpop.f32.mrb[0].mxu0
      %v3055 = vadd.f32 %v2013, %v3054
      %v3056 = vpop.f32.mrb[0].mxu0
      %v3057 = vadd.f32 %v2017, %v3056
      %v3058 = vpop.f32.mrb[0].mxu0
      %v3059 = vadd.f32 %v2013, %v3058
      %v3060 = vpop.f32.mrb[0].mxu0
      %v3061 = vadd.f32 %v2017, %v3060
      %3062 = vmatprep.mubr.bf16.mxu0 %v1797
      %3063 = vmatmul.mubr.bf16.gmra.mrb[0].mxu0 %v1796
      %v3064 = vpop.f32.mrb[0].mxu0
      %v3065 = vadd.f32 %v2013, %v3064
      %v3066 = vpop.f32.mrb[0].mxu0
      %v3067 = vadd.f32 %v2017, %v3066
      %v3068 = vpop.f32.mrb[0].mxu0
      %v3069 = vadd.f32 %v2013, %v3068
      %v3070 = vpop.f32.mrb[0].mxu0
      %v3071 = vadd.f32 %v2017, %v3070
      %3072 = vmatprep.mubr.bf16.mxu0 %v1803
      %3073 = vmatmul.mubr.bf16.gmra.mrb[0].mxu0 %v1802
      %v3074 = vpop.f32.mrb[0].mxu0
      %v3075 = vadd.f32 %v2013, %v3074
      %v3076 = vpop.f32.mrb[0].mxu0
      %v3077 = vadd.f32 %v2017, %v3076
      %v3078 = vpop.f32.mrb[0].mxu0
      %v3079 = vadd.f32 %v2013, %v3078
      %v3080 = vpop.f32.mrb[0].mxu0
      %v3081 = vadd.f32 %v2017, %v3080
      %3082 = vmatprep.mubr.bf16.mxu0 %v1805
      %3083 = vmatmul.mubr.bf16.gmra.mrb[0].mxu0 %v1804
      %v3084 = vpop.f32.mrb[0].mxu0
      %v3085 = vadd.f32 %v2013, %v3084
      %v3086 = vpop.f32.mrb[0].mxu0
      %v3087 = vadd.f32 %v2017, %v3086
      %v3088 = vpop.f32.mrb[0].mxu0
      %v3089 = vadd.f32 %v2013, %v3088
      %v3090 = vpop.f32.mrb[0].mxu0
      %v3091 = vadd.f32 %v2017, %v3090
      %3092 = vmatprep.mubr.bf16.mxu0 %v1807
      %3093 = vmatmul.mubr.bf16.gmra.mrb[0].mxu0 %v1806
      %v3094 = vpop.f32.mrb[0].mxu0
      %v3095 = vadd.f32 %v2013, %v3094
      %v3096 = vpop.f32.mrb[0].mxu0
      %v3097 = vadd.f32 %v2017, %v3096
      %v3098 = vpop.f32.mrb[0].mxu0
      %v3099 = vadd.f32 %v2013, %v3098
      %v3100 = vpop.f32.mrb[0].mxu0
      %v3101 = vadd.f32 %v2017, %v3100
      %3102 = vdwg.mxu0
      %3103 = vmatprep.subr.bf16.mxu0 %v2671
      %3104 = vmatpush1.bf16.msra.mxu0 %v2670
      %3105 = vmatprep.subr.bf16.mxu0 %v2675
      %3106 = vmatpush1.bf16.msra.mxu0 %v2674
      %3107 = vmatprep.subr.bf16.mxu0 %v2679
      %3108 = vmatpush1.bf16.msra.mxu0 %v2678
      %3109 = vmatprep.subr.bf16.mxu0 %v2683
      %3110 = vmatpush1.bf16.msra.mxu0 %v2682
      %3111 = vmatprep.subr.bf16.mxu0 %v2687
      %3112 = vmatpush1.bf16.msra.mxu0 %v2686
      %3113 = vmatprep.subr.bf16.mxu0 %v2691
      %3114 = vmatpush1.bf16.msra.mxu0 %v2690
      %3115 = vmatprep.subr.bf16.mxu0 %v2695
      %3116 = vmatpush1.bf16.msra.mxu0 %v2694
      %3117 = vmatprep.subr.bf16.mxu0 %v2699
      %3118 = vmatpush1.bf16.msra.mxu0 %v2698
      %3119 = vmatprep.subr.bf16.mxu0 %v2703
      %3120 = vmatpush1.bf16.msra.mxu0 %v2702
      %3121 = vmatprep.subr.bf16.mxu0 %v2707
      %3122 = vmatpush1.bf16.msra.mxu0 %v2706
      %3123 = vmatprep.subr.bf16.mxu0 %v2711
      %3124 = vmatpush1.bf16.msra.mxu0 %v2710
      %3125 = vmatprep.subr.bf16.mxu0 %v2715
      %3126 = vmatpush1.bf16.msra.mxu0 %v2714
      %3127 = vmatprep.subr.bf16.mxu0 %v2719
      %3128 = vmatpush1.bf16.msra.mxu0 %v2718
      %3129 = vmatprep.subr.bf16.mxu0 %v2723
      %3130 = vmatpush1.bf16.msra.mxu0 %v2722
      %3131 = vmatprep.subr.bf16.mxu0 %v2727
      %3132 = vmatpush1.bf16.msra.mxu0 %v2726
      %3133 = vmatprep.subr.bf16.mxu0 %v2731
      %3134 = vmatpush1.bf16.msra.mxu0 %v2730
      %3135 = vmatprep.mubr.bf16.mxu0 %v1795
      %3136 = vmatmul.mubr.bf16.gmra.mrb[0].mxu0 %v1794
      %v3137 = vpop.f32.mrb[0].mxu0
      %v3138 = vadd.f32 %v3025, %v3137
      %v3139 = vpop.f32.mrb[0].mxu0
      %v3140 = vadd.f32 %v3027, %v3139
      %v3141 = vpop.f32.mrb[0].mxu0
      %v3142 = vadd.f32 %v3029, %v3141
      %v3143 = vpop.f32.mrb[0].mxu0
      %v3144 = vadd.f32 %v3031, %v3143
      %3145 = vmatprep.mubr.bf16.mxu0 %v1801
      %3146 = vmatmul.mubr.bf16.gmra.mrb[0].mxu0 %v1800
      %v3147 = vpop.f32.mrb[0].mxu0
      %v3148 = vadd.f32 %v3035, %v3147
      %v3149 = vpop.f32.mrb[0].mxu0
      %v3150 = vadd.f32 %v3037, %v3149
      %v3151 = vpop.f32.mrb[0].mxu0
      %v3152 = vadd.f32 %v3039, %v3151
      %v3153 = vpop.f32.mrb[0].mxu0
      %v3154 = vadd.f32 %v3041, %v3153
      %3155 = vmatprep.mubr.bf16.mxu0 %v1797
      %3156 = vmatmul.mubr.bf16.gmra.mrb[0].mxu0 %v1796
      %v3157 = vpop.f32.mrb[0].mxu0
      %v3158 = vadd.f32 %v3045, %v3157
      %v3159 = vpop.f32.mrb[0].mxu0
      %v3160 = vadd.f32 %v3047, %v3159
      %v3161 = vpop.f32.mrb[0].mxu0
      %v3162 = vadd.f32 %v3049, %v3161
      %v3163 = vpop.f32.mrb[0].mxu0
      %v3164 = vadd.f32 %v3051, %v3163
      %3165 = vmatprep.mubr.bf16.mxu0 %v1803
      %3166 = vmatmul.mubr.bf16.gmra.mrb[0].mxu0 %v1802
      %v3167 = vpop.f32.mrb[0].mxu0
      %v3168 = vadd.f32 %v3055, %v3167
      %v3169 = vpop.f32.mrb[0].mxu0
      %v3170 = vadd.f32 %v3057, %v3169
      %v3171 = vpop.f32.mrb[0].mxu0
      %v3172 = vadd.f32 %v3059, %v3171
      %v3173 = vpop.f32.mrb[0].mxu0
      %v3174 = vadd.f32 %v3061, %v3173
      %3175 = vmatprep.mubr.bf16.mxu0 %v1805
      %3176 = vmatmul.mubr.bf16.gmra.mrb[0].mxu0 %v1804
      %v3177 = vpop.f32.mrb[0].mxu0
      %v3178 = vadd.f32 %v3065, %v3177
      %v3179 = vpop.f32.mrb[0].mxu0
      %v3180 = vadd.f32 %v3067, %v3179
      %v3181 = vpop.f32.mrb[0].mxu0
      %v3182 = vadd.f32 %v3069, %v3181
      %v3183 = vpop.f32.mrb[0].mxu0
      %v3184 = vadd.f32 %v3071, %v3183
      %3185 = vmatprep.mubr.bf16.mxu0 %v1807
      %3186 = vmatmul.mubr.bf16.gmra.mrb[0].mxu0 %v1806
      %v3187 = vpop.f32.mrb[0].mxu0
      %v3188 = vadd.f32 %v3075, %v3187
      %v3189 = vpop.f32.mrb[0].mxu0
      %v3190 = vadd.f32 %v3077, %v3189
      %v3191 = vpop.f32.mrb[0].mxu0
      %v3192 = vadd.f32 %v3079, %v3191
      %v3193 = vpop.f32.mrb[0].mxu0
      %v3194 = vadd.f32 %v3081, %v3193
      %3195 = vmatprep.mubr.bf16.mxu0 %v1809
      %3196 = vmatmul.mubr.bf16.gmra.mrb[0].mxu0 %v1808
      %v3197 = vpop.f32.mrb[0].mxu0
      %v3198 = vadd.f32 %v3085, %v3197
      %v3199 = vpop.f32.mrb[0].mxu0
      %v3200 = vadd.f32 %v3087, %v3199
      %v3201 = vpop.f32.mrb[0].mxu0
      %v3202 = vadd.f32 %v3089, %v3201
      %v3203 = vpop.f32.mrb[0].mxu0
      %v3204 = vadd.f32 %v3091, %v3203
      %3205 = vmatprep.mubr.bf16.mxu0 %v1811
      %3206 = vmatmul.mubr.bf16.gmra.mrb[0].mxu0 %v1810
      %v3207 = vpop.f32.mrb[0].mxu0
      %v3208 = vadd.f32 %v3095, %v3207
      %v3209 = vpop.f32.mrb[0].mxu0
      %v3210 = vadd.f32 %v3097, %v3209
      %v3211 = vpop.f32.mrb[0].mxu0
      %v3212 = vadd.f32 %v3099, %v3211
      %v3213 = vpop.f32.mrb[0].mxu0
      %v3214 = vadd.f32 %v3101, %v3213
      %3215 = vdwg.mxu0
      %3216 = vmatprep.subr.bf16.mxu0 %v2735
      %3217 = vmatpush1.bf16.msra.mxu0 %v2734
      %3218 = vmatprep.subr.bf16.mxu0 %v2739
      %3219 = vmatpush1.bf16.msra.mxu0 %v2738
      %3220 = vmatprep.subr.bf16.mxu0 %v2743
      %3221 = vmatpush1.bf16.msra.mxu0 %v2742
      %3222 = vmatprep.subr.bf16.mxu0 %v2747
      %3223 = vmatpush1.bf16.msra.mxu0 %v2746
      %3224 = vmatprep.subr.bf16.mxu0 %v2751
      %3225 = vmatpush1.bf16.msra.mxu0 %v2750
      %3226 = vmatprep.subr.bf16.mxu0 %v2755
      %3227 = vmatpush1.bf16.msra.mxu0 %v2754
      %3228 = vmatprep.subr.bf16.mxu0 %v2759
      %3229 = vmatpush1.bf16.msra.mxu0 %v2758
      %3230 = vmatprep.subr.bf16.mxu0 %v2763
      %3231 = vmatpush1.bf16.msra.mxu0 %v2762
      %3232 = vmatprep.subr.bf16.mxu0 %v2767
      %3233 = vmatpush1.bf16.msra.mxu0 %v2766
      %3234 = vmatprep.subr.bf16.mxu0 %v2771
      %3235 = vmatpush1.bf16.msra.mxu0 %v2770
      %3236 = vmatprep.subr.bf16.mxu0 %v2775
      %3237 = vmatpush1.bf16.msra.mxu0 %v2774
      %3238 = vmatprep.subr.bf16.mxu0 %v2779
      %3239 = vmatpush1.bf16.msra.mxu0 %v2778
      %3240 = vmatprep.subr.bf16.mxu0 %v2783
      %3241 = vmatpush1.bf16.msra.mxu0 %v2782
      %3242 = vmatprep.subr.bf16.mxu0 %v2787
      %3243 = vmatpush1.bf16.msra.mxu0 %v2786
      %3244 = vmatprep.subr.bf16.mxu0 %v2791
      %3245 = vmatpush1.bf16.msra.mxu0 %v2790
      %3246 = vmatprep.subr.bf16.mxu0 %v2795
      %3247 = vmatpush1.bf16.msra.mxu0 %v2794
      %3248 = vmatprep.mubr.bf16.mxu0 %v1797
      %3249 = vmatmul.mubr.bf16.gmra.mrb[0].mxu0 %v1796
      %v3250 = vpop.f32.mrb[0].mxu0
      %v3251 = vadd.f32 %v3138, %v3250
      %v3252 = vpop.f32.mrb[0].mxu0
      %v3253 = vadd.f32 %v3140, %v3252
      %v3254 = vpop.f32.mrb[0].mxu0
      %v3255 = vadd.f32 %v3142, %v3254
      %v3256 = vpop.f32.mrb[0].mxu0
      %v3257 = vadd.f32 %v3144, %v3256
      %3258 = vmatprep.mubr.bf16.mxu0 %v1803
      %3259 = vmatmul.mubr.bf16.gmra.mrb[0].mxu0 %v1802
      %v3260 = vpop.f32.mrb[0].mxu0
      %v3261 = vadd.f32 %v3148, %v3260
      %v3262 = vpop.f32.mrb[0].mxu0
      %v3263 = vadd.f32 %v3150, %v3262
      %v3264 = vpop.f32.mrb[0].mxu0
      %v3265 = vadd.f32 %v3152, %v3264
      %v3266 = vpop.f32.mrb[0].mxu0
      %v3267 = vadd.f32 %v3154, %v3266
      %3268 = vmatprep.mubr.bf16.mxu0 %v1805
      %3269 = vmatmul.mubr.bf16.gmra.mrb[0].mxu0 %v1804
      %v3270 = vpop.f32.mrb[0].mxu0
      %v3271 = vadd.f32 %v3158, %v3270
      %v3272 = vpop.f32.mrb[0].mxu0
      %v3273 = vadd.f32 %v3160, %v3272
      %v3274 = vpop.f32.mrb[0].mxu0
      %v3275 = vadd.f32 %v3162, %v3274
      %v3276 = vpop.f32.mrb[0].mxu0
      %v3277 = vadd.f32 %v3164, %v3276
      %3278 = vmatprep.mubr.bf16.mxu0 %v1807
      %3279 = vmatmul.mubr.bf16.gmra.mrb[0].mxu0 %v1806
      %v3280 = vpop.f32.mrb[0].mxu0
      %v3281 = vadd.f32 %v3168, %v3280
      %v3282 = vpop.f32.mrb[0].mxu0
      %v3283 = vadd.f32 %v3170, %v3282
      %v3284 = vpop.f32.mrb[0].mxu0
      %v3285 = vadd.f32 %v3172, %v3284
      %v3286 = vpop.f32.mrb[0].mxu0
      %v3287 = vadd.f32 %v3174, %v3286
      %3288 = vmatprep.mubr.bf16.mxu0 %v1809
      %3289 = vmatmul.mubr.bf16.gmra.mrb[0].mxu0 %v1808
      %v3290 = vpop.f32.mrb[0].mxu0
      %v3291 = vadd.f32 %v3178, %v3290
      %v3292 = vpop.f32.mrb[0].mxu0
      %v3293 = vadd.f32 %v3180, %v3292
      %v3294 = vpop.f32.mrb[0].mxu0
      %v3295 = vadd.f32 %v3182, %v3294
      %v3296 = vpop.f32.mrb[0].mxu0
      %v3297 = vadd.f32 %v3184, %v3296
      %3298 = vmatprep.mubr.bf16.mxu0 %v1811
      %3299 = vmatmul.mubr.bf16.gmra.mrb[0].mxu0 %v1810
      %v3300 = vpop.f32.mrb[0].mxu0
      %v3301 = vadd.f32 %v3188, %v3300
      %v3302 = vpop.f32.mrb[0].mxu0
      %v3303 = vadd.f32 %v3190, %v3302
      %v3304 = vpop.f32.mrb[0].mxu0
      %v3305 = vadd.f32 %v3192, %v3304
      %v3306 = vpop.f32.mrb[0].mxu0
      %v3307 = vadd.f32 %v3194, %v3306
      %3308 = vmatprep.mubr.bf16.mxu0 %v1813
      %3309 = vmatmul.mubr.bf16.gmra.mrb[0].mxu0 %v1812
      %v3310 = vpop.f32.mrb[0].mxu0
      %v3311 = vadd.f32 %v3198, %v3310
      %v3312 = vpop.f32.mrb[0].mxu0
      %v3313 = vadd.f32 %v3200, %v3312
      %v3314 = vpop.f32.mrb[0].mxu0
      %v3315 = vadd.f32 %v3202, %v3314
      %v3316 = vpop.f32.mrb[0].mxu0
      %v3317 = vadd.f32 %v3204, %v3316
      %3318 = vmatprep.mubr.bf16.mxu0 %v1815
      %3319 = vmatmul.mubr.bf16.gmra.mrb[0].mxu0 %v1814
      %v3320 = vpop.f32.mrb[0].mxu0
      %v3321 = vadd.f32 %v3208, %v3320
      %v3322 = vpop.f32.mrb[0].mxu0
      %v3323 = vadd.f32 %v3210, %v3322
      %v3324 = vpop.f32.mrb[0].mxu0
      %v3325 = vadd.f32 %v3212, %v3324
      %v3326 = vpop.f32.mrb[0].mxu0
      %v3327 = vadd.f32 %v3214, %v3326
      %3328 = vdwg.mxu0
      %3329 = vmatprep.subr.bf16.mxu0 %v2609
      %3330 = vmatpush1.bf16.msra.mxu0 %v2608
      %3331 = vmatprep.subr.bf16.mxu0 %v2613
      %3332 = vmatpush1.bf16.msra.mxu0 %v2612
      %3333 = vmatprep.subr.bf16.mxu0 %v2617
      %3334 = vmatpush1.bf16.msra.mxu0 %v2616
      %3335 = vmatprep.subr.bf16.mxu0 %v2621
      %3336 = vmatpush1.bf16.msra.mxu0 %v2620
      %3337 = vmatprep.subr.bf16.mxu0 %v2625
      %3338 = vmatpush1.bf16.msra.mxu0 %v2624
      %3339 = vmatprep.subr.bf16.mxu0 %v2629
      %3340 = vmatpush1.bf16.msra.mxu0 %v2628
      %3341 = vmatprep.subr.bf16.mxu0 %v2633
      %3342 = vmatpush1.bf16.msra.mxu0 %v2632
      %3343 = vmatprep.subr.bf16.mxu0 %v2637
      %3344 = vmatpush1.bf16.msra.mxu0 %v2636
      %3345 = vmatprep.subr.bf16.mxu0 %v2641
      %3346 = vmatpush1.bf16.msra.mxu0 %v2640
      %3347 = vmatprep.subr.bf16.mxu0 %v2645
      %3348 = vmatpush1.bf16.msra.mxu0 %v2644
      %3349 = vmatprep.subr.bf16.mxu0 %v2649
      %3350 = vmatpush1.bf16.msra.mxu0 %v2648
      %3351 = vmatprep.subr.bf16.mxu0 %v2653
      %3352 = vmatpush1.bf16.msra.mxu0 %v2652
      %3353 = vmatprep.subr.bf16.mxu0 %v2657
      %3354 = vmatpush1.bf16.msra.mxu0 %v2656
      %3355 = vmatprep.subr.bf16.mxu0 %v2661
      %3356 = vmatpush1.bf16.msra.mxu0 %v2660
      %3357 = vmatprep.subr.bf16.mxu0 %v2665
      %3358 = vmatpush1.bf16.msra.mxu0 %v2664
      %3359 = vmatprep.subr.bf16.mxu0 %v2669
      %3360 = vmatpush1.bf16.msra.mxu0 %v2668
      %3361 = vmatprep.mubr.bf16.mxu0 %v1793
      %3362 = vmatmul.mubr.bf16.gmra.mrb[0].mxu0 %v1792
      %v3363 = vpop.f32.mrb[0].mxu0
      %v3364 = vadd.f32 %v2021, %v3363
      %v3365 = vpop.f32.mrb[0].mxu0
      %v3366 = vadd.f32 %v2025, %v3365
      %v3367 = vpop.f32.mrb[0].mxu0
      %v3368 = vadd.f32 %v2021, %v3367
      %v3369 = vpop.f32.mrb[0].mxu0
      %v3370 = vadd.f32 %v2025, %v3369
      %3371 = vmatprep.mubr.bf16.mxu0 %v1799
      %3372 = vmatmul.mubr.bf16.gmra.mrb[0].mxu0 %v1798
      %v3373 = vpop.f32.mrb[0].mxu0
      %v3374 = vadd.f32 %v2021, %v3373
      %v3375 = vpop.f32.mrb[0].mxu0
      %v3376 = vadd.f32 %v2025, %v3375
      %v3377 = vpop.f32.mrb[0].mxu0
      %v3378 = vadd.f32 %v2021, %v3377
      %v3379 = vpop.f32.mrb[0].mxu0
      %v3380 = vadd.f32 %v2025, %v3379
      %3381 = vmatprep.mubr.bf16.mxu0 %v1795
      %3382 = vmatmul.mubr.bf16.gmra.mrb[0].mxu0 %v1794
      %v3383 = vpop.f32.mrb[0].mxu0
      %v3384 = vadd.f32 %v2021, %v3383
      %v3385 = vpop.f32.mrb[0].mxu0
      %v3386 = vadd.f32 %v2025, %v3385
      %v3387 = vpop.f32.mrb[0].mxu0
      %v3388 = vadd.f32 %v2021, %v3387
      %v3389 = vpop.f32.mrb[0].mxu0
      %v3390 = vadd.f32 %v2025, %v3389
      %3391 = vmatprep.mubr.bf16.mxu0 %v1801
      %3392 = vmatmul.mubr.bf16.gmra.mrb[0].mxu0 %v1800
      %v3393 = vpop.f32.mrb[0].mxu0
      %v3394 = vadd.f32 %v2021, %v3393
      %v3395 = vpop.f32.mrb[0].mxu0
      %v3396 = vadd.f32 %v2025, %v3395
      %v3397 = vpop.f32.mrb[0].mxu0
      %v3398 = vadd.f32 %v2021, %v3397
      %v3399 = vpop.f32.mrb[0].mxu0
      %v3400 = vadd.f32 %v2025, %v3399
      %3401 = vmatprep.mubr.bf16.mxu0 %v1797
      %3402 = vmatmul.mubr.bf16.gmra.mrb[0].mxu0 %v1796
      %v3403 = vpop.f32.mrb[0].mxu0
      %v3404 = vadd.f32 %v2021, %v3403
      %v3405 = vpop.f32.mrb[0].mxu0
      %v3406 = vadd.f32 %v2025, %v3405
      %v3407 = vpop.f32.mrb[0].mxu0
      %v3408 = vadd.f32 %v2021, %v3407
      %v3409 = vpop.f32.mrb[0].mxu0
      %v3410 = vadd.f32 %v2025, %v3409
      %3411 = vmatprep.mubr.bf16.mxu0 %v1803
      %3412 = vmatmul.mubr.bf16.gmra.mrb[0].mxu0 %v1802
      %v3413 = vpop.f32.mrb[0].mxu0
      %v3414 = vadd.f32 %v2021, %v3413
      %v3415 = vpop.f32.mrb[0].mxu0
      %v3416 = vadd.f32 %v2025, %v3415
      %v3417 = vpop.f32.mrb[0].mxu0
      %v3418 = vadd.f32 %v2021, %v3417
      %v3419 = vpop.f32.mrb[0].mxu0
      %v3420 = vadd.f32 %v2025, %v3419
      %3421 = vmatprep.mubr.bf16.mxu0 %v1805
      %3422 = vmatmul.mubr.bf16.gmra.mrb[0].mxu0 %v1804
      %v3423 = vpop.f32.mrb[0].mxu0
      %v3424 = vadd.f32 %v2021, %v3423
      %v3425 = vpop.f32.mrb[0].mxu0
      %v3426 = vadd.f32 %v2025, %v3425
      %v3427 = vpop.f32.mrb[0].mxu0
      %v3428 = vadd.f32 %v2021, %v3427
      %v3429 = vpop.f32.mrb[0].mxu0
      %v3430 = vadd.f32 %v2025, %v3429
      %3431 = vmatprep.mubr.bf16.mxu0 %v1807
      %3432 = vmatmul.mubr.bf16.gmra.mrb[0].mxu0 %v1806
      %v3433 = vpop.f32.mrb[0].mxu0
      %v3434 = vadd.f32 %v2021, %v3433
      %v3435 = vpop.f32.mrb[0].mxu0
      %v3436 = vadd.f32 %v2025, %v3435
      %v3437 = vpop.f32.mrb[0].mxu0
      %v3438 = vadd.f32 %v2021, %v3437
      %v3439 = vpop.f32.mrb[0].mxu0
      %v3440 = vadd.f32 %v2025, %v3439
      %3441 = vdwg.mxu0
      %3442 = vmatprep.subr.bf16.mxu0 %v2673
      %3443 = vmatpush1.bf16.msra.mxu0 %v2672
      %3444 = vmatprep.subr.bf16.mxu0 %v2677
      %3445 = vmatpush1.bf16.msra.mxu0 %v2676
      %3446 = vmatprep.subr.bf16.mxu0 %v2681
      %3447 = vmatpush1.bf16.msra.mxu0 %v2680
      %3448 = vmatprep.subr.bf16.mxu0 %v2685
      %3449 = vmatpush1.bf16.msra.mxu0 %v2684
      %3450 = vmatprep.subr.bf16.mxu0 %v2689
      %3451 = vmatpush1.bf16.msra.mxu0 %v2688
      %3452 = vmatprep.subr.bf16.mxu0 %v2693
      %3453 = vmatpush1.bf16.msra.mxu0 %v2692
      %3454 = vmatprep.subr.bf16.mxu0 %v2697
      %3455 = vmatpush1.bf16.msra.mxu0 %v2696
      %3456 = vmatprep.subr.bf16.mxu0 %v2701
      %3457 = vmatpush1.bf16.msra.mxu0 %v2700
      %3458 = vmatprep.subr.bf16.mxu0 %v2705
      %3459 = vmatpush1.bf16.msra.mxu0 %v2704
      %3460 = vmatprep.subr.bf16.mxu0 %v2709
      %3461 = vmatpush1.bf16.msra.mxu0 %v2708
      %3462 = vmatprep.subr.bf16.mxu0 %v2713
      %3463 = vmatpush1.bf16.msra.mxu0 %v2712
      %3464 = vmatprep.subr.bf16.mxu0 %v2717
      %3465 = vmatpush1.bf16.msra.mxu0 %v2716
      %3466 = vmatprep.subr.bf16.mxu0 %v2721
      %3467 = vmatpush1.bf16.msra.mxu0 %v2720
      %3468 = vmatprep.subr.bf16.mxu0 %v2725
      %3469 = vmatpush1.bf16.msra.mxu0 %v2724
      %3470 = vmatprep.subr.bf16.mxu0 %v2729
      %3471 = vmatpush1.bf16.msra.mxu0 %v2728
      %3472 = vmatprep.subr.bf16.mxu0 %v2733
      %3473 = vmatpush1.bf16.msra.mxu0 %v2732
      %3474 = vmatprep.mubr.bf16.mxu0 %v1795
      %3475 = vmatmul.mubr.bf16.gmra.mrb[0].mxu0 %v1794
      %v3476 = vpop.f32.mrb[0].mxu0
      %v3477 = vadd.f32 %v3364, %v3476
      %v3478 = vpop.f32.mrb[0].mxu0
      %v3479 = vadd.f32 %v3366, %v3478
      %v3480 = vpop.f32.mrb[0].mxu0
      %v3481 = vadd.f32 %v3368, %v3480
      %v3482 = vpop.f32.mrb[0].mxu0
      %v3483 = vadd.f32 %v3370, %v3482
      %3484 = vmatprep.mubr.bf16.mxu0 %v1801
      %3485 = vmatmul.mubr.bf16.gmra.mrb[0].mxu0 %v1800
      %v3486 = vpop.f32.mrb[0].mxu0
      %v3487 = vadd.f32 %v3374, %v3486
      %v3488 = vpop.f32.mrb[0].mxu0
      %v3489 = vadd.f32 %v3376, %v3488
      %v3490 = vpop.f32.mrb[0].mxu0
      %v3491 = vadd.f32 %v3378, %v3490
      %v3492 = vpop.f32.mrb[0].mxu0
      %v3493 = vadd.f32 %v3380, %v3492
      %3494 = vmatprep.mubr.bf16.mxu0 %v1797
      %3495 = vmatmul.mubr.bf16.gmra.mrb[0].mxu0 %v1796
      %v3496 = vpop.f32.mrb[0].mxu0
      %v3497 = vadd.f32 %v3384, %v3496
      %v3498 = vpop.f32.mrb[0].mxu0
      %v3499 = vadd.f32 %v3386, %v3498
      %v3500 = vpop.f32.mrb[0].mxu0
      %v3501 = vadd.f32 %v3388, %v3500
      %v3502 = vpop.f32.mrb[0].mxu0
      %v3503 = vadd.f32 %v3390, %v3502
      %3504 = vmatprep.mubr.bf16.mxu0 %v1803
      %3505 = vmatmul.mubr.bf16.gmra.mrb[0].mxu0 %v1802
      %v3506 = vpop.f32.mrb[0].mxu0
      %v3507 = vadd.f32 %v3394, %v3506
      %v3508 = vpop.f32.mrb[0].mxu0
      %v3509 = vadd.f32 %v3396, %v3508
      %v3510 = vpop.f32.mrb[0].mxu0
      %v3511 = vadd.f32 %v3398, %v3510
      %v3512 = vpop.f32.mrb[0].mxu0
      %v3513 = vadd.f32 %v3400, %v3512
      %3514 = vmatprep.mubr.bf16.mxu0 %v1805
      %3515 = vmatmul.mubr.bf16.gmra.mrb[0].mxu0 %v1804
      %v3516 = vpop.f32.mrb[0].mxu0
      %v3517 = vadd.f32 %v3404, %v3516
      %v3518 = vpop.f32.mrb[0].mxu0
      %v3519 = vadd.f32 %v3406, %v3518
      %v3520 = vpop.f32.mrb[0].mxu0
      %v3521 = vadd.f32 %v3408, %v3520
      %v3522 = vpop.f32.mrb[0].mxu0
      %v3523 = vadd.f32 %v3410, %v3522
      %3524 = vmatprep.mubr.bf16.mxu0 %v1807
      %3525 = vmatmul.mubr.bf16.gmra.mrb[0].mxu0 %v1806
      %v3526 = vpop.f32.mrb[0].mxu0
      %v3527 = vadd.f32 %v3414, %v3526
      %v3528 = vpop.f32.mrb[0].mxu0
      %v3529 = vadd.f32 %v3416, %v3528
      %v3530 = vpop.f32.mrb[0].mxu0
      %v3531 = vadd.f32 %v3418, %v3530
      %v3532 = vpop.f32.mrb[0].mxu0
      %v3533 = vadd.f32 %v3420, %v3532
      %3534 = vmatprep.mubr.bf16.mxu0 %v1809
      %3535 = vmatmul.mubr.bf16.gmra.mrb[0].mxu0 %v1808
      %v3536 = vpop.f32.mrb[0].mxu0
      %v3537 = vadd.f32 %v3424, %v3536
      %v3538 = vpop.f32.mrb[0].mxu0
      %v3539 = vadd.f32 %v3426, %v3538
      %v3540 = vpop.f32.mrb[0].mxu0
      %v3541 = vadd.f32 %v3428, %v3540
      %v3542 = vpop.f32.mrb[0].mxu0
      %v3543 = vadd.f32 %v3430, %v3542
      %3544 = vmatprep.mubr.bf16.mxu0 %v1811
      %3545 = vmatmul.mubr.bf16.gmra.mrb[0].mxu0 %v1810
      %v3546 = vpop.f32.mrb[0].mxu0
      %v3547 = vadd.f32 %v3434, %v3546
      %v3548 = vpop.f32.mrb[0].mxu0
      %v3549 = vadd.f32 %v3436, %v3548
      %v3550 = vpop.f32.mrb[0].mxu0
      %v3551 = vadd.f32 %v3438, %v3550
      %v3552 = vpop.f32.mrb[0].mxu0
      %v3553 = vadd.f32 %v3440, %v3552
      %3554 = vdwg.mxu0
      %3555 = vmatprep.subr.bf16.mxu0 %v2737
      %3556 = vmatpush1.bf16.msra.mxu0 %v2736
      %3557 = vmatprep.subr.bf16.mxu0 %v2741
      %3558 = vmatpush1.bf16.msra.mxu0 %v2740
      %3559 = vmatprep.subr.bf16.mxu0 %v2745
      %3560 = vmatpush1.bf16.msra.mxu0 %v2744
      %3561 = vmatprep.subr.bf16.mxu0 %v2749
      %3562 = vmatpush1.bf16.msra.mxu0 %v2748
      %3563 = vmatprep.subr.bf16.mxu0 %v2753
      %3564 = vmatpush1.bf16.msra.mxu0 %v2752
      %3565 = vmatprep.subr.bf16.mxu0 %v2757
      %3566 = vmatpush1.bf16.msra.mxu0 %v2756
      %3567 = vmatprep.subr.bf16.mxu0 %v2761
      %3568 = vmatpush1.bf16.msra.mxu0 %v2760
      %3569 = vmatprep.subr.bf16.mxu0 %v2765
      %3570 = vmatpush1.bf16.msra.mxu0 %v2764
      %3571 = vmatprep.subr.bf16.mxu0 %v2769
      %3572 = vmatpush1.bf16.msra.mxu0 %v2768
      %3573 = vmatprep.subr.bf16.mxu0 %v2773
      %3574 = vmatpush1.bf16.msra.mxu0 %v2772
      %3575 = vmatprep.subr.bf16.mxu0 %v2777
      %3576 = vmatpush1.bf16.msra.mxu0 %v2776
      %3577 = vmatprep.subr.bf16.mxu0 %v2781
      %3578 = vmatpush1.bf16.msra.mxu0 %v2780
      %3579 = vmatprep.subr.bf16.mxu0 %v2785
      %3580 = vmatpush1.bf16.msra.mxu0 %v2784
      %3581 = vmatprep.subr.bf16.mxu0 %v2789
      %3582 = vmatpush1.bf16.msra.mxu0 %v2788
      %3583 = vmatprep.subr.bf16.mxu0 %v2793
      %3584 = vmatpush1.bf16.msra.mxu0 %v2792
      %3585 = vmatprep.subr.bf16.mxu0 %v2797
      %3586 = vmatpush1.bf16.msra.mxu0 %v2796
      %3587 = vmatprep.mubr.bf16.mxu0 %v1797
      %3588 = vmatmul.mubr.bf16.gmra.mrb[0].mxu0 %v1796
      %v3589 = vpop.f32.mrb[0].mxu0
      %v3590 = vadd.f32 %v3477, %v3589
      %v3591 = vpop.f32.mrb[0].mxu0
      %v3592 = vadd.f32 %v3479, %v3591
      %v3593 = vpop.f32.mrb[0].mxu0
      %v3594 = vadd.f32 %v3481, %v3593
      %v3595 = vpop.f32.mrb[0].mxu0
      %v3596 = vadd.f32 %v3483, %v3595
      %3597 = vmatprep.mubr.bf16.mxu0 %v1803
      %3598 = vmatmul.mubr.bf16.gmra.mrb[0].mxu0 %v1802
      %v3599 = vpop.f32.mrb[0].mxu0
      %v3600 = vadd.f32 %v3487, %v3599
      %v3601 = vpop.f32.mrb[0].mxu0
      %v3602 = vadd.f32 %v3489, %v3601
      %v3603 = vpop.f32.mrb[0].mxu0
      %v3604 = vadd.f32 %v3491, %v3603
      %v3605 = vpop.f32.mrb[0].mxu0
      %v3606 = vadd.f32 %v3493, %v3605
      %3607 = vmatprep.mubr.bf16.mxu0 %v1805
      %3608 = vmatmul.mubr.bf16.gmra.mrb[0].mxu0 %v1804
      %v3609 = vpop.f32.mrb[0].mxu0
      %v3610 = vadd.f32 %v3497, %v3609
      %v3611 = vpop.f32.mrb[0].mxu0
      %v3612 = vadd.f32 %v3499, %v3611
      %v3613 = vpop.f32.mrb[0].mxu0
      %v3614 = vadd.f32 %v3501, %v3613
      %v3615 = vpop.f32.mrb[0].mxu0
      %v3616 = vadd.f32 %v3503, %v3615
      %3617 = vmatprep.mubr.bf16.mxu0 %v1807
      %3618 = vmatmul.mubr.bf16.gmra.mrb[0].mxu0 %v1806
      %v3619 = vpop.f32.mrb[0].mxu0
      %v3620 = vadd.f32 %v3507, %v3619
      %v3621 = vpop.f32.mrb[0].mxu0
      %v3622 = vadd.f32 %v3509, %v3621
      %v3623 = vpop.f32.mrb[0].mxu0
      %v3624 = vadd.f32 %v3511, %v3623
      %v3625 = vpop.f32.mrb[0].mxu0
      %v3626 = vadd.f32 %v3513, %v3625
      %3627 = vmatprep.mubr.bf16.mxu0 %v1809
      %3628 = vmatmul.mubr.bf16.gmra.mrb[0].mxu0 %v1808
      %v3629 = vpop.f32.mrb[0].mxu0
      %v3630 = vadd.f32 %v3517, %v3629
      %v3631 = vpop.f32.mrb[0].mxu0
      %v3632 = vadd.f32 %v3519, %v3631
      %v3633 = vpop.f32.mrb[0].mxu0
      %v3634 = vadd.f32 %v3521, %v3633
      %v3635 = vpop.f32.mrb[0].mxu0
      %v3636 = vadd.f32 %v3523, %v3635
      %3637 = vmatprep.mubr.bf16.mxu0 %v1811
      %3638 = vmatmul.mubr.bf16.gmra.mrb[0].mxu0 %v1810
      %v3639 = vpop.f32.mrb[0].mxu0
      %v3640 = vadd.f32 %v3527, %v3639
      %v3641 = vpop.f32.mrb[0].mxu0
      %v3642 = vadd.f32 %v3529, %v3641
      %v3643 = vpop.f32.mrb[0].mxu0
      %v3644 = vadd.f32 %v3531, %v3643
      %v3645 = vpop.f32.mrb[0].mxu0
      %v3646 = vadd.f32 %v3533, %v3645
      %3647 = vmatprep.mubr.bf16.mxu0 %v1813
      %3648 = vmatmul.mubr.bf16.gmra.mrb[0].mxu0 %v1812
      %v3649 = vpop.f32.mrb[0].mxu0
      %v3650 = vadd.f32 %v3537, %v3649
      %v3651 = vpop.f32.mrb[0].mxu0
      %v3652 = vadd.f32 %v3539, %v3651
      %v3653 = vpop.f32.mrb[0].mxu0
      %v3654 = vadd.f32 %v3541, %v3653
      %v3655 = vpop.f32.mrb[0].mxu0
      %v3656 = vadd.f32 %v3543, %v3655
      %3657 = vmatprep.mubr.bf16.mxu0 %v1815
      %3658 = vmatmul.mubr.bf16.gmra.mrb[0].mxu0 %v1814
      %v3659 = vpop.f32.mrb[0].mxu0
      %v3660 = vadd.f32 %v3547, %v3659
      %v3661 = vpop.f32.mrb[0].mxu0
      %v3662 = vadd.f32 %v3549, %v3661
      %v3663 = vpop.f32.mrb[0].mxu0
      %v3664 = vadd.f32 %v3551, %v3663
      %v3665 = vpop.f32.mrb[0].mxu0
      %v3666 = vadd.f32 %v3553, %v3665
      %3667 = vdwg.mxu0
      %v3668 = vmax.f32 %v3251, 0.0
      %v3669 = vmax.f32 %v3253, 0.0
      %v3670 = vmax.f32 %v3590, 0.0
      %v3671 = vmax.f32 %v3592, 0.0
      %v3672 = vmax.f32 %v3255, 0.0
      %v3673 = vmax.f32 %v3257, 0.0
      %v3674 = vmax.f32 %v3594, 0.0
      %v3675 = vmax.f32 %v3596, 0.0
      %v3676 = vmax.f32 %v3261, 0.0
      %v3677 = vmax.f32 %v3263, 0.0
      %v3678 = vmax.f32 %v3600, 0.0
      %v3679 = vmax.f32 %v3602, 0.0
      %v3680 = vmax.f32 %v3265, 0.0
      %v3681 = vmax.f32 %v3267, 0.0
      %v3682 = vmax.f32 %v3604, 0.0
      %v3683 = vmax.f32 %v3606, 0.0
      %v3684 = vmax.f32 %v3271, 0.0
      %v3685 = vmax.f32 %v3273, 0.0
      %v3686 = vmax.f32 %v3610, 0.0
      %v3687 = vmax.f32 %v3612, 0.0
      %v3688 = vmax.f32 %v3275, 0.0
      %v3689 = vmax.f32 %v3277, 0.0
      %v3690 = vmax.f32 %v3614, 0.0
      %v3691 = vmax.f32 %v3616, 0.0
      %v3692 = vmax.f32 %v3281, 0.0
      %v3693 = vmax.f32 %v3283, 0.0
      %v3694 = vmax.f32 %v3620, 0.0
      %v3695 = vmax.f32 %v3622, 0.0
      %v3696 = vmax.f32 %v3285, 0.0
      %v3697 = vmax.f32 %v3287, 0.0
      %v3698 = vmax.f32 %v3624, 0.0
      %v3699 = vmax.f32 %v3626, 0.0
      %v3700 = vmax.f32 %v3291, 0.0
      %v3701 = vmax.f32 %v3293, 0.0
      %v3702 = vmax.f32 %v3630, 0.0
      %v3703 = vmax.f32 %v3632, 0.0
      %v3704 = vmax.f32 %v3295, 0.0
      %v3705 = vmax.f32 %v3297, 0.0
      %v3706 = vmax.f32 %v3634, 0.0
      %v3707 = vmax.f32 %v3636, 0.0
      %v3708 = vmax.f32 %v3301, 0.0
      %v3709 = vmax.f32 %v3303, 0.0
      %v3710 = vmax.f32 %v3640, 0.0
      %v3711 = vmax.f32 %v3642, 0.0
      %v3712 = vmax.f32 %v3305, 0.0
      %v3713 = vmax.f32 %v3307, 0.0
      %v3714 = vmax.f32 %v3644, 0.0
      %v3715 = vmax.f32 %v3646, 0.0
      %v3716 = vmax.f32 %v3311, 0.0
      %v3717 = vmax.f32 %v3313, 0.0
      %v3718 = vmax.f32 %v3650, 0.0
      %v3719 = vmax.f32 %v3652, 0.0
      %v3720 = vmax.f32 %v3315, 0.0
      %v3721 = vmax.f32 %v3317, 0.0
      %v3722 = vmax.f32 %v3654, 0.0
      %v3723 = vmax.f32 %v3656, 0.0
      %v3724 = vmax.f32 %v3321, 0.0
      %v3725 = vmax.f32 %v3323, 0.0
      %v3726 = vmax.f32 %v3660, 0.0
      %v3727 = vmax.f32 %v3662, 0.0
      %v3728 = vmax.f32 %v3325, 0.0
      %v3729 = vmax.f32 %v3327, 0.0
      %v3730 = vmax.f32 %v3664, 0.0
      %v3731 = vmax.f32 %v3666, 0.0
      %v3732 = vmax.f32 %v3668, %v3669
      %v3733 = vmax.f32 %v3672, %v3673
      %v3734 = vmax.f32 %v3676, %v3677
      %v3735 = vmax.f32 %v3680, %v3681
      %v3736 = vmax.f32 %v3684, %v3685
      %v3737 = vmax.f32 %v3688, %v3689
      %v3738 = vmax.f32 %v3692, %v3693
      %v3739 = vmax.f32 %v3696, %v3697
      %v3740 = vmax.f32 %v3700, %v3701
      %v3741 = vmax.f32 %v3704, %v3705
      %v3742 = vmax.f32 %v3708, %v3709
      %v3743 = vmax.f32 %v3712, %v3713
      %v3744 = vmax.f32 %v3716, %v3717
      %v3745 = vmax.f32 %v3720, %v3721
      %v3746 = vmax.f32 %v3724, %v3725
      %v3747 = vmax.f32 %v3728, %v3729
      %v3748 = vmax.f32 %v3670, %v3671
      %v3749 = vmax.f32 %v3674, %v3675
      %v3750 = vmax.f32 %v3678, %v3679
      %v3751 = vmax.f32 %v3682, %v3683
      %v3752 = vmax.f32 %v3686, %v3687
      %v3753 = vmax.f32 %v3690, %v3691
      %v3754 = vmax.f32 %v3694, %v3695
      %v3755 = vmax.f32 %v3698, %v3699
      %v3756 = vmax.f32 %v3702, %v3703
      %v3757 = vmax.f32 %v3706, %v3707
      %v3758 = vmax.f32 %v3710, %v3711
      %v3759 = vmax.f32 %v3714, %v3715
      %v3760 = vmax.f32 %v3718, %v3719
      %v3761 = vmax.f32 %v3722, %v3723
      %v3762 = vmax.f32 %v3726, %v3727
      %v3763 = vmax.f32 %v3730, %v3731
      %v3764 = vmax.f32 %v3732, %v3748
      %v3765 = vmax.f32 %v3733, %v3749
      %v3766 = vmax.f32 %v3734, %v3750
      %v3767 = vmax.f32 %v3735, %v3751
      %v3768 = vmax.f32 %v3736, %v3752
      %v3769 = vmax.f32 %v3737, %v3753
      %v3770 = vmax.f32 %v3738, %v3754
      %v3771 = vmax.f32 %v3739, %v3755
      %v3772 = vmax.f32 %v3740, %v3756
      %v3773 = vmax.f32 %v3741, %v3757
      %v3774 = vmax.f32 %v3742, %v3758
      %v3775 = vmax.f32 %v3743, %v3759
      %v3776 = vmax.f32 %v3744, %v3760
      %v3777 = vmax.f32 %v3745, %v3761
      %v3778 = vmax.f32 %v3746, %v3762
      %v3779 = vmax.f32 %v3747, %v3763
      %v3780 = vld [vmem:[%s5] sm:$0xff]
      %v3781 = vld [vmem:[%s5 + $0x8] sm:$0xff]
      %v3782 = vld [vmem:[%s5 + $0x10] sm:$0xff]
      %v3783 = vld [vmem:[%s5 + $0x18] sm:$0xff]
      %v3784 = vld [vmem:[%s5 + $0x20] sm:$0xff]
      %v3785 = vld [vmem:[%s5 + $0x28] sm:$0xff]
      %v3786 = vld [vmem:[%s5 + $0x30] sm:$0xff]
      %v3787 = vld [vmem:[%s5 + $0x38] sm:$0xff]
      %v3788 = vld [vmem:[%s5 + $0x40] sm:$0xff]
      %v3789 = vld [vmem:[%s5 + $0x48] sm:$0xff]
      %v3790 = vld [vmem:[%s5 + $0x50] sm:$0xff]
      %v3791 = vld [vmem:[%s5 + $0x58] sm:$0xff]
      %v3792 = vld [vmem:[%s5 + $0x60] sm:$0xff]
      %v3793 = vld [vmem:[%s5 + $0x68] sm:$0xff]
      %v3794 = vld [vmem:[%s5 + $0x70] sm:$0xff]
      %v3795 = vld [vmem:[%s5 + $0x78] sm:$0xff]
      %v3796 = vld [vmem:[%s5 + $0x80] sm:$0xff]
      %v3797 = vld [vmem:[%s5 + $0x88] sm:$0xff]
      %v3798 = vld [vmem:[%s5 + $0x90] sm:$0xff]
      %v3799 = vld [vmem:[%s5 + $0x98] sm:$0xff]
      %v3800 = vld [vmem:[%s5 + $0xa0] sm:$0xff]
      %v3801 = vld [vmem:[%s5 + $0xa8] sm:$0xff]
      %v3802 = vld [vmem:[%s5 + $0xb0] sm:$0xff]
      %v3803 = vld [vmem:[%s5 + $0xb8] sm:$0xff]
      %v3804 = vld [vmem:[%s5 + $0xc0] sm:$0xff]
      %v3805 = vld [vmem:[%s5 + $0xc8] sm:$0xff]
      %v3806 = vld [vmem:[%s5 + $0xd0] sm:$0xff]
      %v3807 = vld [vmem:[%s5 + $0xd8] sm:$0xff]
      %v3808 = vld [vmem:[%s5 + $0xe0] sm:$0xff]
      %v3809 = vld [vmem:[%s5 + $0xe8] sm:$0xff]
      %v3810 = vld [vmem:[%s5 + $0xf0] sm:$0xff]
      %v3811 = vld [vmem:[%s5 + $0xf8] sm:$0xff]
      %v3812 = vld [vmem:[%s5 + $0x100] sm:$0xff]
      %v3813 = vld [vmem:[%s5 + $0x108] sm:$0xff]
      %v3814 = vld [vmem:[%s5 + $0x110] sm:$0xff]
      %v3815 = vld [vmem:[%s5 + $0x118] sm:$0xff]
      %v3816 = vld [vmem:[%s5 + $0x120] sm:$0xff]
      %v3817 = vld [vmem:[%s5 + $0x128] sm:$0xff]
      %v3818 = vld [vmem:[%s5 + $0x130] sm:$0xff]
      %v3819 = vld [vmem:[%s5 + $0x138] sm:$0xff]
      %v3820 = vld [vmem:[%s5 + $0x140] sm:$0xff]
      %v3821 = vld [vmem:[%s5 + $0x148] sm:$0xff]
      %v3822 = vld [vmem:[%s5 + $0x150] sm:$0xff]
      %v3823 = vld [vmem:[%s5 + $0x158] sm:$0xff]
      %v3824 = vld [vmem:[%s5 + $0x160] sm:$0xff]
      %v3825 = vld [vmem:[%s5 + $0x168] sm:$0xff]
      %v3826 = vld [vmem:[%s5 + $0x170] sm:$0xff]
      %v3827 = vld [vmem:[%s5 + $0x178] sm:$0xff]
      %v3828 = vld [vmem:[%s5 + $0x180] sm:$0xff]
      %v3829 = vld [vmem:[%s5 + $0x188] sm:$0xff]
      %v3830 = vld [vmem:[%s5 + $0x190] sm:$0xff]
      %v3831 = vld [vmem:[%s5 + $0x198] sm:$0xff]
      %v3832 = vld [vmem:[%s5 + $0x1a0] sm:$0xff]
      %v3833 = vld [vmem:[%s5 + $0x1a8] sm:$0xff]
      %v3834 = vld [vmem:[%s5 + $0x1b0] sm:$0xff]
      %v3835 = vld [vmem:[%s5 + $0x1b8] sm:$0xff]
      %v3836 = vld [vmem:[%s5 + $0x1c0] sm:$0xff]
      %v3837 = vld [vmem:[%s5 + $0x1c8] sm:$0xff]
      %v3838 = vld [vmem:[%s5 + $0x1d0] sm:$0xff]
      %v3839 = vld [vmem:[%s5 + $0x1d8] sm:$0xff]
      %v3840 = vld [vmem:[%s5 + $0x1e0] sm:$0xff]
      %v3841 = vld [vmem:[%s5 + $0x1e8] sm:$0xff]
      %v3842 = vld [vmem:[%s5 + $0x1f0] sm:$0xff]
      %v3843 = vld [vmem:[%s5 + $0x1f8] sm:$0xff]
      %v3844 = vld [vmem:[%s6] sm:$0x1]
      %v3846 = vlaneseq
      %v3847 = vshrl.u32 %v3846, 7
      %v3848 = vsub.s32 0, %v3847
      %v3849 = vrot.slane %v3844, %v3848
      %3851 = vmatprep.subr.mxu0 0.0
      %3852 = vmatpush1.msra.mxu0 %v3780
      %3853 = vmatprep.subr.mxu0 0.0
      %3854 = vmatpush1.msra.mxu0 %v3781
      %3855 = vmatprep.subr.mxu0 0.0
      %3856 = vmatpush1.msra.mxu0 %v3782
      %3857 = vmatprep.subr.mxu0 0.0
      %3858 = vmatpush1.msra.mxu0 %v3783
      %3859 = vmatprep.subr.mxu0 0.0
      %3860 = vmatpush1.msra.mxu0 %v3784
      %3861 = vmatprep.subr.mxu0 0.0
      %3862 = vmatpush1.msra.mxu0 %v3785
      %3863 = vmatprep.subr.mxu0 0.0
      %3864 = vmatpush1.msra.mxu0 %v3786
      %3865 = vmatprep.subr.mxu0 0.0
      %3866 = vmatpush1.msra.mxu0 %v3787
      %3867 = vmatprep.subr.mxu0 0.0
      %3868 = vmatpush1.msra.mxu0 %v3788
      %3869 = vmatprep.subr.mxu0 0.0
      %3870 = vmatpush1.msra.mxu0 %v3789
      %3871 = vmatprep.subr.mxu0 0.0
      %3872 = vmatpush1.msra.mxu0 %v3790
      %3873 = vmatprep.subr.mxu0 0.0
      %3874 = vmatpush1.msra.mxu0 %v3791
      %3875 = vmatprep.subr.mxu0 0.0
      %3876 = vmatpush1.msra.mxu0 %v3792
      %3877 = vmatprep.subr.mxu0 0.0
      %3878 = vmatpush1.msra.mxu0 %v3793
      %3879 = vmatprep.subr.mxu0 0.0
      %3880 = vmatpush1.msra.mxu0 %v3794
      %3881 = vmatprep.subr.mxu0 0.0
      %3882 = vmatpush1.msra.mxu0 %v3795
      %3883 = vmatprep.subr.mxu0 0.0
      %3884 = vmatpush1.msra.mxu0 %v3796
      %3885 = vmatprep.subr.mxu0 0.0
      %3886 = vmatpush1.msra.mxu0 %v3797
      %3887 = vmatprep.subr.mxu0 0.0
      %3888 = vmatpush1.msra.mxu0 %v3798
      %3889 = vmatprep.subr.mxu0 0.0
      %3890 = vmatpush1.msra.mxu0 %v3799
      %3891 = vmatprep.subr.mxu0 0.0
      %3892 = vmatpush1.msra.mxu0 %v3800
      %3893 = vmatprep.subr.mxu0 0.0
      %3894 = vmatpush1.msra.mxu0 %v3801
      %3895 = vmatprep.subr.mxu0 0.0
      %3896 = vmatpush1.msra.mxu0 %v3802
      %3897 = vmatprep.subr.mxu0 0.0
      %3898 = vmatpush1.msra.mxu0 %v3803
      %3899 = vmatprep.subr.mxu0 0.0
      %3900 = vmatpush1.msra.mxu0 %v3804
      %3901 = vmatprep.subr.mxu0 0.0
      %3902 = vmatpush1.msra.mxu0 %v3805
      %3903 = vmatprep.subr.mxu0 0.0
      %3904 = vmatpush1.msra.mxu0 %v3806
      %3905 = vmatprep.subr.mxu0 0.0
      %3906 = vmatpush1.msra.mxu0 %v3807
      %3907 = vmatprep.subr.mxu0 0.0
      %3908 = vmatpush1.msra.mxu0 %v3808
      %3909 = vmatprep.subr.mxu0 0.0
      %3910 = vmatpush1.msra.mxu0 %v3809
      %3911 = vmatprep.subr.mxu0 0.0
      %3912 = vmatpush1.msra.mxu0 %v3810
      %3913 = vmatprep.subr.mxu0 0.0
      %3914 = vmatpush1.msra.mxu0 %v3811
      %3915 = vmatprep.mubr.f32.mxu0 %v3768
      %3916 = vmatmul.mubr.f32.gmra.mrb[0].mxu0 %v3764
      %v3917 = vpop.f32.mrb[0].mxu0
      %v3918 = vadd.f32 %v3849, %v3917
      %v3919 = vpop.f32.mrb[0].mxu0
      %3920 = vmatprep.mubr.f32.mxu0 %v3769
      %3921 = vmatmul.mubr.f32.gmra.mrb[0].mxu0 %v3765
      %v3922 = vpop.f32.mrb[0].mxu0
      %v3923 = vadd.f32 %v3849, %v3922
      %v3924 = vpop.f32.mrb[0].mxu0
      %3925 = vmatprep.mubr.f32.mxu0 %v3770
      %3926 = vmatmul.mubr.f32.gmra.mrb[0].mxu0 %v3766
      %v3927 = vpop.f32.mrb[0].mxu0
      %v3928 = vadd.f32 %v3849, %v3927
      %v3929 = vpop.f32.mrb[0].mxu0
      %3930 = vmatprep.mubr.f32.mxu0 %v3771
      %3931 = vmatmul.mubr.f32.gmra.mrb[0].mxu0 %v3767
      %v3932 = vpop.f32.mrb[0].mxu0
      %v3933 = vadd.f32 %v3849, %v3932
      %v3934 = vpop.f32.mrb[0].mxu0
      %3935 = vdwg.mxu0
      %3936 = vmatprep.subr.mxu0 0.0
      %3937 = vmatpush1.msra.mxu0 %v3812
      %3938 = vmatprep.subr.mxu0 0.0
      %3939 = vmatpush1.msra.mxu0 %v3813
      %3940 = vmatprep.subr.mxu0 0.0
      %3941 = vmatpush1.msra.mxu0 %v3814
      %3942 = vmatprep.subr.mxu0 0.0
      %3943 = vmatpush1.msra.mxu0 %v3815
      %3944 = vmatprep.subr.mxu0 0.0
      %3945 = vmatpush1.msra.mxu0 %v3816
      %3946 = vmatprep.subr.mxu0 0.0
      %3947 = vmatpush1.msra.mxu0 %v3817
      %3948 = vmatprep.subr.mxu0 0.0
      %3949 = vmatpush1.msra.mxu0 %v3818
      %3950 = vmatprep.subr.mxu0 0.0
      %3951 = vmatpush1.msra.mxu0 %v3819
      %3952 = vmatprep.subr.mxu0 0.0
      %3953 = vmatpush1.msra.mxu0 %v3820
      %3954 = vmatprep.subr.mxu0 0.0
      %3955 = vmatpush1.msra.mxu0 %v3821
      %3956 = vmatprep.subr.mxu0 0.0
      %3957 = vmatpush1.msra.mxu0 %v3822
      %3958 = vmatprep.subr.mxu0 0.0
      %3959 = vmatpush1.msra.mxu0 %v3823
      %3960 = vmatprep.subr.mxu0 0.0
      %3961 = vmatpush1.msra.mxu0 %v3824
      %3962 = vmatprep.subr.mxu0 0.0
      %3963 = vmatpush1.msra.mxu0 %v3825
      %3964 = vmatprep.subr.mxu0 0.0
      %3965 = vmatpush1.msra.mxu0 %v3826
      %3966 = vmatprep.subr.mxu0 0.0
      %3967 = vmatpush1.msra.mxu0 %v3827
      %3968 = vmatprep.subr.mxu0 0.0
      %3969 = vmatpush1.msra.mxu0 %v3828
      %3970 = vmatprep.subr.mxu0 0.0
      %3971 = vmatpush1.msra.mxu0 %v3829
      %3972 = vmatprep.subr.mxu0 0.0
      %3973 = vmatpush1.msra.mxu0 %v3830
      %3974 = vmatprep.subr.mxu0 0.0
      %3975 = vmatpush1.msra.mxu0 %v3831
      %3976 = vmatprep.subr.mxu0 0.0
      %3977 = vmatpush1.msra.mxu0 %v3832
      %3978 = vmatprep.subr.mxu0 0.0
      %3979 = vmatpush1.msra.mxu0 %v3833
      %3980 = vmatprep.subr.mxu0 0.0
      %3981 = vmatpush1.msra.mxu0 %v3834
      %3982 = vmatprep.subr.mxu0 0.0
      %3983 = vmatpush1.msra.mxu0 %v3835
      %3984 = vmatprep.subr.mxu0 0.0
      %3985 = vmatpush1.msra.mxu0 %v3836
      %3986 = vmatprep.subr.mxu0 0.0
      %3987 = vmatpush1.msra.mxu0 %v3837
      %3988 = vmatprep.subr.mxu0 0.0
      %3989 = vmatpush1.msra.mxu0 %v3838
      %3990 = vmatprep.subr.mxu0 0.0
      %3991 = vmatpush1.msra.mxu0 %v3839
      %3992 = vmatprep.subr.mxu0 0.0
      %3993 = vmatpush1.msra.mxu0 %v3840
      %3994 = vmatprep.subr.mxu0 0.0
      %3995 = vmatpush1.msra.mxu0 %v3841
      %3996 = vmatprep.subr.mxu0 0.0
      %3997 = vmatpush1.msra.mxu0 %v3842
      %3998 = vmatprep.subr.mxu0 0.0
      %3999 = vmatpush1.msra.mxu0 %v3843
      %4000 = vmatprep.mubr.f32.mxu0 %v3776
      %4001 = vmatmul.mubr.f32.gmra.mrb[0].mxu0 %v3772
      %v4002 = vpop.f32.mrb[0].mxu0
      %v4003 = vadd.f32 %v3918, %v4002
      %v4004 = vpop.f32.mrb[0].mxu0
      %4005 = vmatprep.mubr.f32.mxu0 %v3777
      %4006 = vmatmul.mubr.f32.gmra.mrb[0].mxu0 %v3773
      %v4007 = vpop.f32.mrb[0].mxu0
      %v4008 = vadd.f32 %v3923, %v4007
      %v4009 = vpop.f32.mrb[0].mxu0
      %4010 = vmatprep.mubr.f32.mxu0 %v3778
      %4011 = vmatmul.mubr.f32.gmra.mrb[0].mxu0 %v3774
      %v4012 = vpop.f32.mrb[0].mxu0
      %v4013 = vadd.f32 %v3928, %v4012
      %v4014 = vpop.f32.mrb[0].mxu0
      %4015 = vmatprep.mubr.f32.mxu0 %v3779
      %4016 = vmatmul.mubr.f32.gmra.mrb[0].mxu0 %v3775
      %v4017 = vpop.f32.mrb[0].mxu0
      %v4018 = vadd.f32 %v3933, %v4017
      %v4019 = vpop.f32.mrb[0].mxu0
      %4020 = vdwg.mxu0
      %4021 = vst [vmem:[%s283] sm:$0xff] %v4003
      %4022 = vst [vmem:[%s283 + $0x8] sm:$0xff] %v4008
      %4023 = vst [vmem:[%s283 + $0x10] sm:$0xff] %v4013
      %4024 = vst [vmem:[%s283 + $0x18] sm:$0xff] %v4018
      %s4025 = smul.u32 4, %s18
      %p4026 = scmp.lt.s32.totalorder %s4025, 7
      %s4027 = scalar_select %p4026, %s4025, 7
      %s4028 = smul.addr %s4027, 8
      %s4029 = scalar_lea.vmem %s7, %s4028
      // Predicated region
      $region49: #{net_forward.1} parent=47 // pred_check
        %p4030 = pneg %p188
      $region50: #{net_forward.1} parent=47 // pred_check_branch
        %4032 = sbr.rel (%p4030) target = $region52
      $region51: #{net_forward.1} parent=47 // pred_region
        %s4033 = smul.u32 4, %s18
      $region52: #{net_forward.1} parent=47 // pred_fallthru
        _
    $region48: #{net_forward.1} parent=5 // pred_fallthru
      _
    %p4034 = scmp.le.s32.totalorder 2, %s13
    // Predicated region
    $region53: #{net_forward.1} parent=5 // pred_check
      %p4035 = pneg %p4034
    $region54: #{net_forward.1} parent=5 // pred_check_branch
      %4037 = sbr.rel (%p4035) target = $region56
    $region55: #{net_forward.1} parent=5 // pred_region
      %s4038 = ssub.s32 %s13, 2
      // Predicated region
      $region57: #{net_forward.1} parent=55 // pred_check
        %p4039 = pneg %p194
      $region58: #{net_forward.1} parent=55 // pred_check_branch
        %4041 = sbr.rel (%p4039) target = $region60
      $region59: #{net_forward.1} parent=55 // pred_region
        %s4042 = smul.u32 4, %s19
        %p4043 = scmp.lt.s32.totalorder %s4042, 7
        %s4044 = scalar_select %p4043, %s4042, 7
        %s4045 = smul.addr %s4044, 8
        %s4046 = scalar_lea.vmem %s7, %s4045
      $region60: #{net_forward.1} parent=55 // pred_fallthru
        _
    $region56: #{net_forward.1} parent=5 // pred_fallthru
      _
  $region6: #{net_forward.1} parent=0 // loop_footer
    %s17 = sadd.s32 1, %s13
  $region7: #{net_forward.1} parent=0 // loop_footer_branch
    %12 = sbr.rel target = $region3
  $region8: #{net_forward.1} parent=0 // loop_exit
    _

</llo_original>
